<compile_context>
chip_gen: v7x
topology: tpu7x:2x2x1
jax: 0.10.0
libtpu: 0.0.40
codegen_flags: <defaults>
</compile_context>

<pallas_src>
import functools

import jax
import jax.numpy as jnp
from jax import lax
from jax.experimental import pallas as pl
from jax.experimental.pallas import tpu as pltpu

EPS = 1e-5
MXU_DTYPE = jnp.bfloat16     # MXU-native operand dtype; accumulation stays f32.


# ---------------------------------------------------------------------------
# Fused kernel: both branches + gate + final LayerNorm
# ---------------------------------------------------------------------------

def fused_graph_encoders_kernel(
        adj_gcn_ref,   # (Np, Np)       GCN adjacency A (bf16; 0/1 exact)
        adj_gat_ref,   # (Np, Np)       GAT adjacency (used as >0 mask)
        x_ref,         # (Np, Hp)       row/lane padded g_reps
        ln_g_ref,      # (2, 1, Hp)     per-branch LayerNorm gamma
        ln_b_ref,      # (2, 1, Hp)     per-branch LayerNorm beta
        gcn_w_ref,     # (2, L, Hp, Hp)
        gcn_b_ref,     # (2, L, 1, Hp)
        gat_w_ref,     # (2, Hp, Hp)
        gat_al_ref,    # (2, 1, Hp)
        gat_ar_ref,    # (2, 1, Hp)
        gate_w_ref,    # (2*Hp, Hp)     concat([Wx; Wy], axis=0)
        gate_b_ref,    # (1, Hp)        bx + by
        fln_g_ref,     # (1, Hp)        final LayerNorm gamma
        fln_b_ref,     # (1, Hp)        final LayerNorm beta
        o_ref,         # (Np, Hp)
        *, real_h, num_gcn):
    inv_h = 1.0 / float(real_h)
    hp = x_ref.shape[-1]

    # Lane mask over the real hidden dim; hoisted once, reused by every LN.
    lane_idx = lax.broadcasted_iota(jnp.int32, (1, hp), 1)
    lane_mask = (lane_idx < real_h).astype(jnp.float32)

    def layer_norm(v, g, b):
        # two-pass variance over the real H lanes (padded lanes of v are zero)
        mean = jnp.sum(v, axis=-1, keepdims=True) * inv_h
        c = (v - mean) * lane_mask
        var = jnp.sum(c * c, axis=-1, keepdims=True) * inv_h
        return c * lax.rsqrt(var + EPS) * g + b

    x_in = x_ref[...].astype(jnp.float32)
    a_gcn = adj_gcn_ref[...].astype(MXU_DTYPE)
    mask_f = (adj_gat_ref[...].astype(jnp.float32) > 0.0).astype(jnp.float32)
    neg_bias = (mask_f - 1.0) * 1e9          # 0 where connected, -1e9 elsewhere

    branch_out = []
    for b in range(2):                        # statically unrolled: fwd / bwd branch
        x = layer_norm(x_in,
                       ln_g_ref[b].astype(jnp.float32),
                       ln_b_ref[b].astype(jnp.float32))
        residual = x                          # dropout -> identity (inference)

        # --- num_gcn x (GCN + tanh), unrolled (num_gcn is small) ------------
        for l in range(num_gcn):
            xb = x.astype(MXU_DTYPE)
            if b == 0:
                ax = jnp.dot(a_gcn, xb, preferred_element_type=jnp.float32)
            else:
                # backward branch: A^T @ X via contraction over A's axis 0
                # (no host- or kernel-side transpose materialized)
                ax = lax.dot_general(a_gcn, xb, (((0,), (0,)), ((), ())),
                                     preferred_element_type=jnp.float32)
            x = jnp.tanh(
                jnp.dot(ax.astype(MXU_DTYPE), gcn_w_ref[b, l].astype(MXU_DTYPE),
                        preferred_element_type=jnp.float32)
                + gcn_b_ref[b, l].astype(jnp.float32))

        x = x + residual                      # dropout -> identity (inference)

        # --- GAT (single-head additive attention) + relu --------------------
        h = jnp.dot(x.astype(MXU_DTYPE), gat_w_ref[b].astype(MXU_DTYPE),
                    preferred_element_type=jnp.float32)                  # (Np, Hp)
        hb = h.astype(MXU_DTYPE)
        # left projection: VPU multiply + lane reduce (no width-1 MXU matmul)
        el = jnp.sum(h * gat_al_ref[b].astype(jnp.float32),
                     axis=-1, keepdims=True)                             # (Np, 1)
        # right projection: lane-dense (1, Np) MXU contraction
        er = lax.dot_general(gat_ar_ref[b].astype(MXU_DTYPE), hb,
                             (((1,), (1,)), ((), ())),
                             preferred_element_type=jnp.float32)         # (1, Np)
        e = el + er                                                      # (Np, Np)
        e = jnp.where(e > 0, e, 0.2 * e) + neg_bias     # LeakyReLU(0.2) + mask bias
        e = e - jnp.max(e, axis=-1, keepdims=True)
        p = jnp.exp(e) * mask_f                         # re-mask with one multiply
        denom = jnp.maximum(jnp.sum(p, axis=-1, keepdims=True), 1e-20)
        p = p * pl.reciprocal(denom, approx=True)       # EUP vrcp
        out = jnp.dot(p.astype(MXU_DTYPE), hb, preferred_element_type=jnp.float32)
        branch_out.append(jnp.maximum(out, 0.0))        # relu

    # --- GateUnit: one K=2*Hp contraction instead of two H contractions -----
    x, y = branch_out
    xcat = jnp.concatenate([x, y], axis=-1).astype(MXU_DTYPE)            # (Np, 2Hp)
    z = (jnp.dot(xcat, gate_w_ref[...].astype(MXU_DTYPE),
                 preferred_element_type=jnp.float32)
         + gate_b_ref[...].astype(jnp.float32))
    gate = 1.0 / (1.0 + jnp.exp(-z))
    out = gate * x + (1.0 - gate) * y

    # --- final LayerNorm -----------------------------------------------------
    out = layer_norm(out, fln_g_ref[...].astype(jnp.float32),
                     fln_b_ref[...].astype(jnp.float32))
    o_ref[...] = out.astype(o_ref.dtype)


# ---------------------------------------------------------------------------
# Parameter packing (lane-pad to Hp, stack the two branches)
# ---------------------------------------------------------------------------

def _round_up(x, m):
    return (x + m - 1) // m * m


def _pad_to(x, shape):
    return jnp.pad(x, [(0, t - s) for s, t in zip(x.shape, shape)])


def pack_params(params, hp):
    layers = params["layers"]
    num_gcn = len(layers[0]["gcns"])
    return {
        "num_gcn": num_gcn,
        "ln_g": jnp.stack([_pad_to(p["gamma"], (1, hp)) for p in params["ln"]]),
        "ln_b": jnp.stack([_pad_to(p["beta"], (1, hp)) for p in params["ln"]]),
        "gcn_w": jnp.stack([jnp.stack([_pad_to(g["w"], (hp, hp)) for g in lp["gcns"]])
                            for lp in layers]),
        "gcn_b": jnp.stack([jnp.stack([_pad_to(g["b"], (1, hp)) for g in lp["gcns"]])
                            for lp in layers]),
        "gat_w": jnp.stack([_pad_to(lp["gat"]["w"], (hp, hp)) for lp in layers]),
        "gat_al": jnp.stack([_pad_to(lp["gat"]["a_l"], (1, hp)) for lp in layers]),
        "gat_ar": jnp.stack([_pad_to(lp["gat"]["a_r"], (1, hp)) for lp in layers]),
        "gate_w": jnp.concatenate([_pad_to(params["gate"]["wx"], (hp, hp)),
                                   _pad_to(params["gate"]["wy"], (hp, hp))], axis=0),
        "gate_b": _pad_to(params["gate"]["bx"] + params["gate"]["by"], (1, hp)),
        "fln_g": _pad_to(params["final_ln"]["gamma"], (1, hp)),
        "fln_b": _pad_to(params["final_ln"]["beta"], (1, hp)),
    }


# ---------------------------------------------------------------------------
# GraphEncoders.forward (shared_layers=False branch)
# ---------------------------------------------------------------------------

def graph_encoders_forward(g_reps, graph, params):
    n, h = g_reps.shape
    hp = max(_round_up(h, 128), 128)
    np_ = max(_round_up(n, 128), 128)
    pk = pack_params(params, hp)
    num_gcn = pk["num_gcn"]

    adj_gcn, adj_gat = graph[0], graph[-1]
    # 0/1 adjacency values are exact in bf16; halves adjacency HBM/VMEM traffic.
    # TODO(synk): keep the GCN adjacency in f32 if a normalized (non-binary)
    #             adjacency is used and full precision matters.
    a_gcn_p = _pad_to(adj_gcn, (np_, np_)).astype(MXU_DTYPE)
    a_gat_p = _pad_to(adj_gat, (np_, np_)).astype(MXU_DTYPE)
    x_p = _pad_to(g_reps, (np_, hp))

    vmem_spec = lambda: pl.BlockSpec(memory_space=pltpu.MemorySpace.VMEM)
    out = pl.pallas_call(
        functools.partial(fused_graph_encoders_kernel, real_h=h, num_gcn=num_gcn),
        out_shape=jax.ShapeDtypeStruct((np_, hp), g_reps.dtype),
        in_specs=[vmem_spec() for _ in range(14)],
        out_specs=vmem_spec(),
        # Whole-graph VMEM residency (single gridless call, no double buffering):
        # v7x usage must stay under its 64 MiB physical VMEM; v5e/v6e can go larger.
        compiler_params=pltpu.CompilerParams(vmem_limit_bytes=64 * 1024 * 1024),
    )(a_gcn_p, a_gat_p, x_p, pk["ln_g"], pk["ln_b"], pk["gcn_w"], pk["gcn_b"],
      pk["gat_w"], pk["gat_al"], pk["gat_ar"], pk["gate_w"], pk["gate_b"],
      pk["fln_g"], pk["fln_b"])

    return out[:n, :h]


# ---------------------------------------------------------------------------
# Pure-JAX reference (mirrors the assumed PyTorch semantics, f32, unpadded)
# ---------------------------------------------------------------------------

def _ref_ln(x, p):
    m = jnp.mean(x, axis=-1, keepdims=True)
    v = jnp.mean((x - m) ** 2, axis=-1, keepdims=True)
    return (x - m) * lax.rsqrt(v + EPS) * p["gamma"] + p["beta"]


def reference_forward(g_reps, graph, params):
    adj_gcn, adj_gat = graph[0], graph[-1]
    outs = []
    for i, edge_type in enumerate(("forward", "backward")):
        x = _ref_ln(g_reps, params["ln"][i])
        residual = x
        a = adj_gcn.T if edge_type == "backward" else adj_gcn
        for gp in params["layers"][i]["gcns"]:
            x = jnp.tanh(a @ x @ gp["w"] + gp["b"])
        x = x + residual
        gat = params["layers"][i]["gat"]
        h = x @ gat["w"]
        el = h @ gat["a_l"].T
        er = (h @ gat["a_r"].T).T
        e = el + er
        e = jnp.where(e > 0, e, 0.2 * e)
        mask = adj_gat > 0
        e = jnp.where(mask, e, -1e9)
        e = e - jnp.max(e, axis=-1, keepdims=True)
        p = jnp.where(mask, jnp.exp(e), 0.0)
        p = p / jnp.maximum(jnp.sum(p, axis=-1, keepdims=True), 1e-20)
        outs.append(jnp.maximum(p @ h, 0.0))
    x, y = outs
    gate = jax.nn.sigmoid(x @ params["gate"]["wx"] + params["gate"]["bx"]
                          + y @ params["gate"]["wy"] + params["gate"]["by"])
    out = gate * x + (1.0 - gate) * y
    return _ref_ln(out, params["final_ln"])


# ---------------------------------------------------------------------------
# Deterministic parameter init (xavier uniform weights, zero bias)
# ---------------------------------------------------------------------------

def _xavier(key, fan_in, fan_out, shape):
    bound = (6.0 / (fan_in + fan_out)) ** 0.5
    return jax.random.uniform(key, shape, jnp.float32, -bound, bound)


def init_params(key, hidden, num_gcn_layers=2):
    ks = iter(jax.random.split(key, 64))

    def linear_hh():
        return {"w": _xavier(next(ks), hidden, hidden, (hidden, hidden)),
                "b": jnp.zeros((1, hidden), jnp.float32)}

    def ln():
        return {"gamma": jnp.ones((1, hidden), jnp.float32),
                "beta": jnp.zeros((1, hidden), jnp.float32)}

    def graph_layer():
        return {
            "gcns": [linear_hh() for _ in range(num_gcn_layers)],
            "gat": {
                "w": _xavier(next(ks), hidden, hidden, (hidden, hidden)),
                "a_l": _xavier(next(ks), hidden, 1, (1, hidden)),
                "a_r": _xavier(next(ks), hidden, 1, (1, hidden)),
            },
        }

    return {
        "ln": [ln(), ln()],
        "layers": [graph_layer(), graph_layer()],
        "gate": {
            "wx": _xavier(next(ks), hidden, hidden, (hidden, hidden)),
            "bx": jnp.zeros((1, hidden), jnp.float32),
            "wy": _xavier(next(ks), hidden, hidden, (hidden, hidden)),
            "by": jnp.zeros((1, hidden), jnp.float32),
        },
        "final_ln": ln(),
    }


# ---------------------------------------------------------------------------

if __name__ == "__main__":
    N, H = 16, 64          # nodes, encoder_embed_dim (small synthetic shapes)
    key = jax.random.PRNGKey(0)
    k_x, k_a0, k_a1, k_p = jax.random.split(key, 4)

    g_reps = jax.random.normal(k_x, (N, H), jnp.float32)

    eye = jnp.eye(N, dtype=jnp.float32)
    adj0 = jnp.maximum((jax.random.uniform(k_a0, (N, N)) > 0.6).astype(jnp.float32), eye)
    adj1 = jnp.maximum((jax.random.uniform(k_a1, (N, N)) > 0.6).astype(jnp.float32), eye)
    graph = (adj0, adj1)

    params = init_params(k_p, H, num_gcn_layers=2)

    fwd = jax.jit(graph_encoders_forward)
    out = jax.block_until_ready(fwd(g_reps, graph, params))

    ref = jax.block_until_ready(reference_forward(g_reps, graph, params))
    assert out.shape == (N, H)
    assert bool(jnp.all(jnp.isfinite(out)))
    max_err = float(jnp.max(jnp.abs(out - ref)))
    # bf16 MXU operands + approx reciprocal vs. the pure-f32 reference.
    assert bool(jnp.allclose(out, ref, atol=5e-2, rtol=5e-2)), max_err
    print("KERNEL_OK")
</pallas_src>

<mosaic_0001>
module attributes {stable_mosaic.version = 11 : i64} {
  func.func @fused_graph_encoders_kernel(%arg0: memref<128x128xbf16, #tpu.memory_space<vmem>>, %arg1: memref<128x128xbf16, #tpu.memory_space<vmem>>, %arg2: memref<128x128xf32, #tpu.memory_space<vmem>>, %arg3: memref<2x1x128xf32, #tpu.memory_space<vmem>>, %arg4: memref<2x1x128xf32, #tpu.memory_space<vmem>>, %arg5: memref<2x2x128x128xf32, #tpu.memory_space<vmem>>, %arg6: memref<2x2x1x128xf32, #tpu.memory_space<vmem>>, %arg7: memref<2x128x128xf32, #tpu.memory_space<vmem>>, %arg8: memref<2x1x128xf32, #tpu.memory_space<vmem>>, %arg9: memref<2x1x128xf32, #tpu.memory_space<vmem>>, %arg10: memref<256x128xf32, #tpu.memory_space<vmem>>, %arg11: memref<1x128xf32, #tpu.memory_space<vmem>>, %arg12: memref<1x128xf32, #tpu.memory_space<vmem>>, %arg13: memref<1x128xf32, #tpu.memory_space<vmem>>, %arg14: memref<128x128xf32, #tpu.memory_space<vmem>>) attributes {dimension_semantics = [], scalar_prefetch = 0 : i64, scratch_operands = 0 : i64, tpu.core_type = #tpu.core_type<tc>} {
    %0 = tpu.iota {dimensions = array<i32: 1>} : vector<1x128xi32>
    %c64_i32 = arith.constant 64 : i32
    %1 = vector.broadcast %c64_i32 : i32 to vector<1x128xi32>
    %2 = arith.cmpi slt, %0, %1 : vector<1x128xi32>
    %3 = arith.extui %2 : vector<1x128xi1> to vector<1x128xi32>
    %4 = arith.sitofp %3 : vector<1x128xi32> to vector<1x128xf32>
    %c0 = arith.constant 0 : index
    %c0_0 = arith.constant 0 : index
    %5 = vector.load %arg2[%c0, %c0_0] : memref<128x128xf32, #tpu.memory_space<vmem>>, vector<128x128xf32>
    %c0_1 = arith.constant 0 : index
    %c0_2 = arith.constant 0 : index
    %6 = vector.load %arg0[%c0_1, %c0_2] : memref<128x128xbf16, #tpu.memory_space<vmem>>, vector<128x128xbf16>
    %c0_3 = arith.constant 0 : index
    %c0_4 = arith.constant 0 : index
    %7 = vector.load %arg1[%c0_3, %c0_4] : memref<128x128xbf16, #tpu.memory_space<vmem>>, vector<128x128xbf16>
    %8 = arith.extf %7 : vector<128x128xbf16> to vector<128x128xf32>
    %cst = arith.constant 0.000000e+00 : f32
    %9 = vector.broadcast %cst : f32 to vector<128x128xf32>
    %10 = arith.cmpf ogt, %8, %9 : vector<128x128xf32>
    %11 = arith.extui %10 : vector<128x128xi1> to vector<128x128xi32>
    %12 = arith.sitofp %11 : vector<128x128xi32> to vector<128x128xf32>
    %cst_5 = arith.constant 1.000000e+00 : f32
    %13 = vector.broadcast %cst_5 : f32 to vector<128x128xf32>
    %14 = arith.subf %12, %13 : vector<128x128xf32>
    %cst_6 = arith.constant 1.000000e+09 : f32
    %15 = vector.broadcast %cst_6 : f32 to vector<128x128xf32>
    %16 = arith.mulf %14, %15 : vector<128x128xf32>
    %c0_7 = arith.constant 0 : index
    %c0_8 = arith.constant 0 : index
    %c0_9 = arith.constant 0 : index
    %17 = vector.load %arg3[%c0_7, %c0_8, %c0_9] : memref<2x1x128xf32, #tpu.memory_space<vmem>>, vector<1x1x128xf32>
    %18 = vector.shape_cast %17 : vector<1x1x128xf32> to vector<1x128xf32>
    %c0_10 = arith.constant 0 : index
    %c0_11 = arith.constant 0 : index
    %c0_12 = arith.constant 0 : index
    %19 = vector.load %arg4[%c0_10, %c0_11, %c0_12] : memref<2x1x128xf32, #tpu.memory_space<vmem>>, vector<1x1x128xf32>
    %20 = vector.shape_cast %19 : vector<1x1x128xf32> to vector<1x128xf32>
    %cst_13 = arith.constant dense<0.000000e+00> : vector<128xf32>
    %21 = vector.multi_reduction <add>, %5, %cst_13 [1] : vector<128x128xf32> to vector<128xf32>
    %22 = vector.shape_cast %21 : vector<128xf32> to vector<128x1xf32>
    %cst_14 = arith.constant 1.562500e-02 : f32
    %23 = vector.broadcast %cst_14 : f32 to vector<128x1xf32>
    %24 = arith.mulf %22, %23 : vector<128x1xf32>
    %25 = vector.broadcast %24 : vector<128x1xf32> to vector<128x128xf32>
    %26 = arith.subf %5, %25 : vector<128x128xf32>
    %27 = vector.broadcast %4 : vector<1x128xf32> to vector<128x128xf32>
    %28 = arith.mulf %26, %27 : vector<128x128xf32>
    %29 = arith.mulf %28, %28 : vector<128x128xf32>
    %cst_15 = arith.constant dense<0.000000e+00> : vector<128xf32>
    %30 = vector.multi_reduction <add>, %29, %cst_15 [1] : vector<128x128xf32> to vector<128xf32>
    %31 = vector.shape_cast %30 : vector<128xf32> to vector<128x1xf32>
    %cst_16 = arith.constant 1.562500e-02 : f32
    %32 = vector.broadcast %cst_16 : f32 to vector<128x1xf32>
    %33 = arith.mulf %31, %32 : vector<128x1xf32>
    %cst_17 = arith.constant 9.99999974E-6 : f32
    %34 = vector.broadcast %cst_17 : f32 to vector<128x1xf32>
    %35 = arith.addf %33, %34 : vector<128x1xf32>
    %36 = math.rsqrt %35 : vector<128x1xf32>
    %37 = vector.broadcast %36 : vector<128x1xf32> to vector<128x128xf32>
    %38 = arith.mulf %28, %37 : vector<128x128xf32>
    %39 = vector.broadcast %18 : vector<1x128xf32> to vector<128x128xf32>
    %40 = arith.mulf %38, %39 : vector<128x128xf32>
    %41 = vector.broadcast %20 : vector<1x128xf32> to vector<128x128xf32>
    %42 = arith.addf %40, %41 : vector<128x128xf32>
    %43 = arith.truncf %42 : vector<128x128xf32> to vector<128x128xbf16>
    %cst_18 = arith.constant dense<0.000000e+00> : vector<128x128xf32>
    %44 = tpu.matmul %6, %43, %cst_18 {dimension_numbers = #tpu.dot_dimension_numbers<[1], [0], [0], [1], [0, 0, 1, 1], [], []>} : vector<128x128xbf16>, vector<128x128xbf16>, vector<128x128xf32> -> vector<128x128xf32>
    %45 = arith.truncf %44 : vector<128x128xf32> to vector<128x128xbf16>
    %c0_19 = arith.constant 0 : index
    %c0_20 = arith.constant 0 : index
    %c0_21 = arith.constant 0 : index
    %c0_22 = arith.constant 0 : index
    %46 = vector.load %arg5[%c0_19, %c0_20, %c0_21, %c0_22] : memref<2x2x128x128xf32, #tpu.memory_space<vmem>>, vector<1x1x128x128xf32>
    %47 = vector.shape_cast %46 : vector<1x1x128x128xf32> to vector<128x128xf32>
    %48 = arith.truncf %47 : vector<128x128xf32> to vector<128x128xbf16>
    %cst_23 = arith.constant dense<0.000000e+00> : vector<128x128xf32>
    %49 = tpu.matmul %45, %48, %cst_23 {dimension_numbers = #tpu.dot_dimension_numbers<[1], [0], [0], [1], [0, 0, 1, 1], [], []>} : vector<128x128xbf16>, vector<128x128xbf16>, vector<128x128xf32> -> vector<128x128xf32>
    %c0_24 = arith.constant 0 : index
    %c0_25 = arith.constant 0 : index
    %c0_26 = arith.constant 0 : index
    %c0_27 = arith.constant 0 : index
    %50 = vector.load %arg6[%c0_24, %c0_25, %c0_26, %c0_27] : memref<2x2x1x128xf32, #tpu.memory_space<vmem>>, vector<1x1x1x128xf32>
    %51 = vector.shape_cast %50 : vector<1x1x1x128xf32> to vector<1x128xf32>
    %52 = vector.broadcast %51 : vector<1x128xf32> to vector<128x128xf32>
    %53 = arith.addf %49, %52 : vector<128x128xf32>
    %54 = math.tanh %53 : vector<128x128xf32>
    %55 = arith.truncf %54 : vector<128x128xf32> to vector<128x128xbf16>
    %cst_28 = arith.constant dense<0.000000e+00> : vector<128x128xf32>
    %56 = tpu.matmul %6, %55, %cst_28 {dimension_numbers = #tpu.dot_dimension_numbers<[1], [0], [0], [1], [0, 0, 1, 1], [], []>} : vector<128x128xbf16>, vector<128x128xbf16>, vector<128x128xf32> -> vector<128x128xf32>
    %57 = arith.truncf %56 : vector<128x128xf32> to vector<128x128xbf16>
    %c0_29 = arith.constant 0 : index
    %c1 = arith.constant 1 : index
    %c0_30 = arith.constant 0 : index
    %c0_31 = arith.constant 0 : index
    %58 = vector.load %arg5[%c0_29, %c1, %c0_30, %c0_31] : memref<2x2x128x128xf32, #tpu.memory_space<vmem>>, vector<1x1x128x128xf32>
    %59 = vector.shape_cast %58 : vector<1x1x128x128xf32> to vector<128x128xf32>
    %60 = arith.truncf %59 : vector<128x128xf32> to vector<128x128xbf16>
    %cst_32 = arith.constant dense<0.000000e+00> : vector<128x128xf32>
    %61 = tpu.matmul %57, %60, %cst_32 {dimension_numbers = #tpu.dot_dimension_numbers<[1], [0], [0], [1], [0, 0, 1, 1], [], []>} : vector<128x128xbf16>, vector<128x128xbf16>, vector<128x128xf32> -> vector<128x128xf32>
    %c0_33 = arith.constant 0 : index
    %c1_34 = arith.constant 1 : index
    %c0_35 = arith.constant 0 : index
    %c0_36 = arith.constant 0 : index
    %62 = vector.load %arg6[%c0_33, %c1_34, %c0_35, %c0_36] : memref<2x2x1x128xf32, #tpu.memory_space<vmem>>, vector<1x1x1x128xf32>
    %63 = vector.shape_cast %62 : vector<1x1x1x128xf32> to vector<1x128xf32>
    %64 = vector.broadcast %63 : vector<1x128xf32> to vector<128x128xf32>
    %65 = arith.addf %61, %64 : vector<128x128xf32>
    %66 = math.tanh %65 : vector<128x128xf32>
    %67 = arith.addf %66, %42 : vector<128x128xf32>
    %68 = arith.truncf %67 : vector<128x128xf32> to vector<128x128xbf16>
    %c0_37 = arith.constant 0 : index
    %c0_38 = arith.constant 0 : index
    %c0_39 = arith.constant 0 : index
    %69 = vector.load %arg7[%c0_37, %c0_38, %c0_39] : memref<2x128x128xf32, #tpu.memory_space<vmem>>, vector<1x128x128xf32>
    %70 = vector.shape_cast %69 : vector<1x128x128xf32> to vector<128x128xf32>
    %71 = arith.truncf %70 : vector<128x128xf32> to vector<128x128xbf16>
    %cst_40 = arith.constant dense<0.000000e+00> : vector<128x128xf32>
    %72 = tpu.matmul %68, %71, %cst_40 {dimension_numbers = #tpu.dot_dimension_numbers<[1], [0], [0], [1], [0, 0, 1, 1], [], []>} : vector<128x128xbf16>, vector<128x128xbf16>, vector<128x128xf32> -> vector<128x128xf32>
    %73 = arith.truncf %72 : vector<128x128xf32> to vector<128x128xbf16>
    %c0_41 = arith.constant 0 : index
    %c0_42 = arith.constant 0 : index
    %c0_43 = arith.constant 0 : index
    %74 = vector.load %arg8[%c0_41, %c0_42, %c0_43] : memref<2x1x128xf32, #tpu.memory_space<vmem>>, vector<1x1x128xf32>
    %75 = vector.shape_cast %74 : vector<1x1x128xf32> to vector<1x128xf32>
    %76 = vector.broadcast %75 : vector<1x128xf32> to vector<128x128xf32>
    %77 = arith.mulf %72, %76 : vector<128x128xf32>
    %cst_44 = arith.constant dense<0.000000e+00> : vector<128xf32>
    %78 = vector.multi_reduction <add>, %77, %cst_44 [1] : vector<128x128xf32> to vector<128xf32>
    %79 = vector.shape_cast %78 : vector<128xf32> to vector<128x1xf32>
    %c0_45 = arith.constant 0 : index
    %c0_46 = arith.constant 0 : index
    %c0_47 = arith.constant 0 : index
    %80 = vector.load %arg9[%c0_45, %c0_46, %c0_47] : memref<2x1x128xf32, #tpu.memory_space<vmem>>, vector<1x1x128xf32>
    %81 = vector.shape_cast %80 : vector<1x1x128xf32> to vector<1x128xf32>
    %82 = arith.truncf %81 : vector<1x128xf32> to vector<1x128xbf16>
    %cst_48 = arith.constant dense<0.000000e+00> : vector<1x128xf32>
    %83 = tpu.matmul %82, %73, %cst_48 {dimension_numbers = #tpu.dot_dimension_numbers<[1], [1], [0], [0], [0, 0, 1, 0], [], []>} : vector<1x128xbf16>, vector<128x128xbf16>, vector<1x128xf32> -> vector<1x128xf32>
    %84 = vector.broadcast %79 : vector<128x1xf32> to vector<128x128xf32>
    %85 = vector.broadcast %83 : vector<1x128xf32> to vector<128x128xf32>
    %86 = arith.addf %84, %85 : vector<128x128xf32>
    %cst_49 = arith.constant 0.000000e+00 : f32
    %87 = vector.broadcast %cst_49 : f32 to vector<128x128xf32>
    %88 = arith.cmpf ogt, %86, %87 : vector<128x128xf32>
    %cst_50 = arith.constant 2.000000e-01 : f32
    %89 = vector.broadcast %cst_50 : f32 to vector<128x128xf32>
    %90 = arith.mulf %89, %86 : vector<128x128xf32>
    %91 = arith.select %88, %86, %90 : vector<128x128xi1>, vector<128x128xf32>
    %92 = arith.addf %91, %16 : vector<128x128xf32>
    %cst_51 = arith.constant dense<0xFF800000> : vector<128xf32>
    %93 = vector.multi_reduction <maximumf>, %92, %cst_51 [1] : vector<128x128xf32> to vector<128xf32>
    %94 = vector.shape_cast %93 : vector<128xf32> to vector<128x1xf32>
    %95 = vector.broadcast %94 : vector<128x1xf32> to vector<128x128xf32>
    %96 = arith.subf %92, %95 : vector<128x128xf32>
    %97 = math.exp %96 : vector<128x128xf32>
    %98 = arith.mulf %97, %12 : vector<128x128xf32>
    %cst_52 = arith.constant dense<0.000000e+00> : vector<128xf32>
    %99 = vector.multi_reduction <add>, %98, %cst_52 [1] : vector<128x128xf32> to vector<128xf32>
    %100 = vector.shape_cast %99 : vector<128xf32> to vector<128x1xf32>
    %cst_53 = arith.constant 9.99999968E-21 : f32
    %101 = vector.broadcast %cst_53 : f32 to vector<128x1xf32>
    %102 = arith.maximumf %100, %101 : vector<128x1xf32>
    %103 = tpu.reciprocal %102 {approx = true} : vector<128x1xf32> -> vector<128x1xf32>
    %104 = vector.broadcast %103 : vector<128x1xf32> to vector<128x128xf32>
    %105 = arith.mulf %98, %104 : vector<128x128xf32>
    %106 = arith.truncf %105 : vector<128x128xf32> to vector<128x128xbf16>
    %cst_54 = arith.constant dense<0.000000e+00> : vector<128x128xf32>
    %107 = tpu.matmul %106, %73, %cst_54 {dimension_numbers = #tpu.dot_dimension_numbers<[1], [0], [0], [1], [0, 0, 1, 1], [], []>} : vector<128x128xbf16>, vector<128x128xbf16>, vector<128x128xf32> -> vector<128x128xf32>
    %cst_55 = arith.constant 0.000000e+00 : f32
    %108 = vector.broadcast %cst_55 : f32 to vector<128x128xf32>
    %109 = arith.maximumf %107, %108 : vector<128x128xf32>
    %c1_56 = arith.constant 1 : index
    %c0_57 = arith.constant 0 : index
    %c0_58 = arith.constant 0 : index
    %110 = vector.load %arg3[%c1_56, %c0_57, %c0_58] : memref<2x1x128xf32, #tpu.memory_space<vmem>>, vector<1x1x128xf32>
    %111 = vector.shape_cast %110 : vector<1x1x128xf32> to vector<1x128xf32>
    %c1_59 = arith.constant 1 : index
    %c0_60 = arith.constant 0 : index
    %c0_61 = arith.constant 0 : index
    %112 = vector.load %arg4[%c1_59, %c0_60, %c0_61] : memref<2x1x128xf32, #tpu.memory_space<vmem>>, vector<1x1x128xf32>
    %113 = vector.shape_cast %112 : vector<1x1x128xf32> to vector<1x128xf32>
    %cst_62 = arith.constant dense<0.000000e+00> : vector<128xf32>
    %114 = vector.multi_reduction <add>, %5, %cst_62 [1] : vector<128x128xf32> to vector<128xf32>
    %115 = vector.shape_cast %114 : vector<128xf32> to vector<128x1xf32>
    %cst_63 = arith.constant 1.562500e-02 : f32
    %116 = vector.broadcast %cst_63 : f32 to vector<128x1xf32>
    %117 = arith.mulf %115, %116 : vector<128x1xf32>
    %118 = vector.broadcast %117 : vector<128x1xf32> to vector<128x128xf32>
    %119 = arith.subf %5, %118 : vector<128x128xf32>
    %120 = vector.broadcast %4 : vector<1x128xf32> to vector<128x128xf32>
    %121 = arith.mulf %119, %120 : vector<128x128xf32>
    %122 = arith.mulf %121, %121 : vector<128x128xf32>
    %cst_64 = arith.constant dense<0.000000e+00> : vector<128xf32>
    %123 = vector.multi_reduction <add>, %122, %cst_64 [1] : vector<128x128xf32> to vector<128xf32>
    %124 = vector.shape_cast %123 : vector<128xf32> to vector<128x1xf32>
    %cst_65 = arith.constant 1.562500e-02 : f32
    %125 = vector.broadcast %cst_65 : f32 to vector<128x1xf32>
    %126 = arith.mulf %124, %125 : vector<128x1xf32>
    %cst_66 = arith.constant 9.99999974E-6 : f32
    %127 = vector.broadcast %cst_66 : f32 to vector<128x1xf32>
    %128 = arith.addf %126, %127 : vector<128x1xf32>
    %129 = math.rsqrt %128 : vector<128x1xf32>
    %130 = vector.broadcast %129 : vector<128x1xf32> to vector<128x128xf32>
    %131 = arith.mulf %121, %130 : vector<128x128xf32>
    %132 = vector.broadcast %111 : vector<1x128xf32> to vector<128x128xf32>
    %133 = arith.mulf %131, %132 : vector<128x128xf32>
    %134 = vector.broadcast %113 : vector<1x128xf32> to vector<128x128xf32>
    %135 = arith.addf %133, %134 : vector<128x128xf32>
    %136 = arith.truncf %135 : vector<128x128xf32> to vector<128x128xbf16>
    %cst_67 = arith.constant dense<0.000000e+00> : vector<128x128xf32>
    %137 = tpu.matmul %6, %136, %cst_67 {dimension_numbers = #tpu.dot_dimension_numbers<[0], [0], [1], [1], [0, 1, 1, 1], [], []>} : vector<128x128xbf16>, vector<128x128xbf16>, vector<128x128xf32> -> vector<128x128xf32>
    %138 = arith.truncf %137 : vector<128x128xf32> to vector<128x128xbf16>
    %c1_68 = arith.constant 1 : index
    %c0_69 = arith.constant 0 : index
    %c0_70 = arith.constant 0 : index
    %c0_71 = arith.constant 0 : index
    %139 = vector.load %arg5[%c1_68, %c0_69, %c0_70, %c0_71] : memref<2x2x128x128xf32, #tpu.memory_space<vmem>>, vector<1x1x128x128xf32>
    %140 = vector.shape_cast %139 : vector<1x1x128x128xf32> to vector<128x128xf32>
    %141 = arith.truncf %140 : vector<128x128xf32> to vector<128x128xbf16>
    %cst_72 = arith.constant dense<0.000000e+00> : vector<128x128xf32>
    %142 = tpu.matmul %138, %141, %cst_72 {dimension_numbers = #tpu.dot_dimension_numbers<[1], [0], [0], [1], [0, 0, 1, 1], [], []>} : vector<128x128xbf16>, vector<128x128xbf16>, vector<128x128xf32> -> vector<128x128xf32>
    %c1_73 = arith.constant 1 : index
    %c0_74 = arith.constant 0 : index
    %c0_75 = arith.constant 0 : index
    %c0_76 = arith.constant 0 : index
    %143 = vector.load %arg6[%c1_73, %c0_74, %c0_75, %c0_76] : memref<2x2x1x128xf32, #tpu.memory_space<vmem>>, vector<1x1x1x128xf32>
    %144 = vector.shape_cast %143 : vector<1x1x1x128xf32> to vector<1x128xf32>
    %145 = vector.broadcast %144 : vector<1x128xf32> to vector<128x128xf32>
    %146 = arith.addf %142, %145 : vector<128x128xf32>
    %147 = math.tanh %146 : vector<128x128xf32>
    %148 = arith.truncf %147 : vector<128x128xf32> to vector<128x128xbf16>
    %cst_77 = arith.constant dense<0.000000e+00> : vector<128x128xf32>
    %149 = tpu.matmul %6, %148, %cst_77 {dimension_numbers = #tpu.dot_dimension_numbers<[0], [0], [1], [1], [0, 1, 1, 1], [], []>} : vector<128x128xbf16>, vector<128x128xbf16>, vector<128x128xf32> -> vector<128x128xf32>
    %150 = arith.truncf %149 : vector<128x128xf32> to vector<128x128xbf16>
    %c1_78 = arith.constant 1 : index
    %c1_79 = arith.constant 1 : index
    %c0_80 = arith.constant 0 : index
    %c0_81 = arith.constant 0 : index
    %151 = vector.load %arg5[%c1_78, %c1_79, %c0_80, %c0_81] : memref<2x2x128x128xf32, #tpu.memory_space<vmem>>, vector<1x1x128x128xf32>
    %152 = vector.shape_cast %151 : vector<1x1x128x128xf32> to vector<128x128xf32>
    %153 = arith.truncf %152 : vector<128x128xf32> to vector<128x128xbf16>
    %cst_82 = arith.constant dense<0.000000e+00> : vector<128x128xf32>
    %154 = tpu.matmul %150, %153, %cst_82 {dimension_numbers = #tpu.dot_dimension_numbers<[1], [0], [0], [1], [0, 0, 1, 1], [], []>} : vector<128x128xbf16>, vector<128x128xbf16>, vector<128x128xf32> -> vector<128x128xf32>
    %c1_83 = arith.constant 1 : index
    %c1_84 = arith.constant 1 : index
    %c0_85 = arith.constant 0 : index
    %c0_86 = arith.constant 0 : index
    %155 = vector.load %arg6[%c1_83, %c1_84, %c0_85, %c0_86] : memref<2x2x1x128xf32, #tpu.memory_space<vmem>>, vector<1x1x1x128xf32>
    %156 = vector.shape_cast %155 : vector<1x1x1x128xf32> to vector<1x128xf32>
    %157 = vector.broadcast %156 : vector<1x128xf32> to vector<128x128xf32>
    %158 = arith.addf %154, %157 : vector<128x128xf32>
    %159 = math.tanh %158 : vector<128x128xf32>
    %160 = arith.addf %159, %135 : vector<128x128xf32>
    %161 = arith.truncf %160 : vector<128x128xf32> to vector<128x128xbf16>
    %c1_87 = arith.constant 1 : index
    %c0_88 = arith.constant 0 : index
    %c0_89 = arith.constant 0 : index
    %162 = vector.load %arg7[%c1_87, %c0_88, %c0_89] : memref<2x128x128xf32, #tpu.memory_space<vmem>>, vector<1x128x128xf32>
    %163 = vector.shape_cast %162 : vector<1x128x128xf32> to vector<128x128xf32>
    %164 = arith.truncf %163 : vector<128x128xf32> to vector<128x128xbf16>
    %cst_90 = arith.constant dense<0.000000e+00> : vector<128x128xf32>
    %165 = tpu.matmul %161, %164, %cst_90 {dimension_numbers = #tpu.dot_dimension_numbers<[1], [0], [0], [1], [0, 0, 1, 1], [], []>} : vector<128x128xbf16>, vector<128x128xbf16>, vector<128x128xf32> -> vector<128x128xf32>
    %166 = arith.truncf %165 : vector<128x128xf32> to vector<128x128xbf16>
    %c1_91 = arith.constant 1 : index
    %c0_92 = arith.constant 0 : index
    %c0_93 = arith.constant 0 : index
    %167 = vector.load %arg8[%c1_91, %c0_92, %c0_93] : memref<2x1x128xf32, #tpu.memory_space<vmem>>, vector<1x1x128xf32>
    %168 = vector.shape_cast %167 : vector<1x1x128xf32> to vector<1x128xf32>
    %169 = vector.broadcast %168 : vector<1x128xf32> to vector<128x128xf32>
    %170 = arith.mulf %165, %169 : vector<128x128xf32>
    %cst_94 = arith.constant dense<0.000000e+00> : vector<128xf32>
    %171 = vector.multi_reduction <add>, %170, %cst_94 [1] : vector<128x128xf32> to vector<128xf32>
    %172 = vector.shape_cast %171 : vector<128xf32> to vector<128x1xf32>
    %c1_95 = arith.constant 1 : index
    %c0_96 = arith.constant 0 : index
    %c0_97 = arith.constant 0 : index
    %173 = vector.load %arg9[%c1_95, %c0_96, %c0_97] : memref<2x1x128xf32, #tpu.memory_space<vmem>>, vector<1x1x128xf32>
    %174 = vector.shape_cast %173 : vector<1x1x128xf32> to vector<1x128xf32>
    %175 = arith.truncf %174 : vector<1x128xf32> to vector<1x128xbf16>
    %cst_98 = arith.constant dense<0.000000e+00> : vector<1x128xf32>
    %176 = tpu.matmul %175, %166, %cst_98 {dimension_numbers = #tpu.dot_dimension_numbers<[1], [1], [0], [0], [0, 0, 1, 0], [], []>} : vector<1x128xbf16>, vector<128x128xbf16>, vector<1x128xf32> -> vector<1x128xf32>
    %177 = vector.broadcast %172 : vector<128x1xf32> to vector<128x128xf32>
    %178 = vector.broadcast %176 : vector<1x128xf32> to vector<128x128xf32>
    %179 = arith.addf %177, %178 : vector<128x128xf32>
    %cst_99 = arith.constant 0.000000e+00 : f32
    %180 = vector.broadcast %cst_99 : f32 to vector<128x128xf32>
    %181 = arith.cmpf ogt, %179, %180 : vector<128x128xf32>
    %cst_100 = arith.constant 2.000000e-01 : f32
    %182 = vector.broadcast %cst_100 : f32 to vector<128x128xf32>
    %183 = arith.mulf %182, %179 : vector<128x128xf32>
    %184 = arith.select %181, %179, %183 : vector<128x128xi1>, vector<128x128xf32>
    %185 = arith.addf %184, %16 : vector<128x128xf32>
    %cst_101 = arith.constant dense<0xFF800000> : vector<128xf32>
    %186 = vector.multi_reduction <maximumf>, %185, %cst_101 [1] : vector<128x128xf32> to vector<128xf32>
    %187 = vector.shape_cast %186 : vector<128xf32> to vector<128x1xf32>
    %188 = vector.broadcast %187 : vector<128x1xf32> to vector<128x128xf32>
    %189 = arith.subf %185, %188 : vector<128x128xf32>
    %190 = math.exp %189 : vector<128x128xf32>
    %191 = arith.mulf %190, %12 : vector<128x128xf32>
    %cst_102 = arith.constant dense<0.000000e+00> : vector<128xf32>
    %192 = vector.multi_reduction <add>, %191, %cst_102 [1] : vector<128x128xf32> to vector<128xf32>
    %193 = vector.shape_cast %192 : vector<128xf32> to vector<128x1xf32>
    %cst_103 = arith.constant 9.99999968E-21 : f32
    %194 = vector.broadcast %cst_103 : f32 to vector<128x1xf32>
    %195 = arith.maximumf %193, %194 : vector<128x1xf32>
    %196 = tpu.reciprocal %195 {approx = true} : vector<128x1xf32> -> vector<128x1xf32>
    %197 = vector.broadcast %196 : vector<128x1xf32> to vector<128x128xf32>
    %198 = arith.mulf %191, %197 : vector<128x128xf32>
    %199 = arith.truncf %198 : vector<128x128xf32> to vector<128x128xbf16>
    %cst_104 = arith.constant dense<0.000000e+00> : vector<128x128xf32>
    %200 = tpu.matmul %199, %166, %cst_104 {dimension_numbers = #tpu.dot_dimension_numbers<[1], [0], [0], [1], [0, 0, 1, 1], [], []>} : vector<128x128xbf16>, vector<128x128xbf16>, vector<128x128xf32> -> vector<128x128xf32>
    %cst_105 = arith.constant 0.000000e+00 : f32
    %201 = vector.broadcast %cst_105 : f32 to vector<128x128xf32>
    %202 = arith.maximumf %200, %201 : vector<128x128xf32>
    %203 = tpu.concatenate %109, %202 in 1 : vector<128x128xf32>, vector<128x128xf32> -> vector<128x256xf32>
    %204 = arith.truncf %203 : vector<128x256xf32> to vector<128x256xbf16>
    %c0_106 = arith.constant 0 : index
    %c0_107 = arith.constant 0 : index
    %205 = vector.load %arg10[%c0_106, %c0_107] : memref<256x128xf32, #tpu.memory_space<vmem>>, vector<256x128xf32>
    %206 = arith.truncf %205 : vector<256x128xf32> to vector<256x128xbf16>
    %cst_108 = arith.constant dense<0.000000e+00> : vector<128x128xf32>
    %207 = tpu.matmul %204, %206, %cst_108 {dimension_numbers = #tpu.dot_dimension_numbers<[1], [0], [0], [1], [0, 0, 1, 1], [], []>} : vector<128x256xbf16>, vector<256x128xbf16>, vector<128x128xf32> -> vector<128x128xf32>
    %c0_109 = arith.constant 0 : index
    %c0_110 = arith.constant 0 : index
    %208 = vector.load %arg11[%c0_109, %c0_110] : memref<1x128xf32, #tpu.memory_space<vmem>>, vector<1x128xf32>
    %209 = vector.broadcast %208 : vector<1x128xf32> to vector<128x128xf32>
    %210 = arith.addf %207, %209 : vector<128x128xf32>
    %cst_111 = arith.constant 0.000000e+00 : f32
    %211 = vector.broadcast %cst_111 : f32 to vector<128x128xf32>
    %212 = arith.subf %211, %210 : vector<128x128xf32>
    %213 = math.exp %212 : vector<128x128xf32>
    %cst_112 = arith.constant 1.000000e+00 : f32
    %214 = vector.broadcast %cst_112 : f32 to vector<128x128xf32>
    %215 = arith.addf %214, %213 : vector<128x128xf32>
    %cst_113 = arith.constant 1.000000e+00 : f32
    %216 = vector.broadcast %cst_113 : f32 to vector<128x128xf32>
    %217 = arith.divf %216, %215 : vector<128x128xf32>
    %218 = arith.mulf %217, %109 : vector<128x128xf32>
    %cst_114 = arith.constant 1.000000e+00 : f32
    %219 = vector.broadcast %cst_114 : f32 to vector<128x128xf32>
    %220 = arith.subf %219, %217 : vector<128x128xf32>
    %221 = arith.mulf %220, %202 : vector<128x128xf32>
    %222 = arith.addf %218, %221 : vector<128x128xf32>
    %c0_115 = arith.constant 0 : index
    %c0_116 = arith.constant 0 : index
    %223 = vector.load %arg12[%c0_115, %c0_116] : memref<1x128xf32, #tpu.memory_space<vmem>>, vector<1x128xf32>
    %c0_117 = arith.constant 0 : index
    %c0_118 = arith.constant 0 : index
    %224 = vector.load %arg13[%c0_117, %c0_118] : memref<1x128xf32, #tpu.memory_space<vmem>>, vector<1x128xf32>
    %cst_119 = arith.constant dense<0.000000e+00> : vector<128xf32>
    %225 = vector.multi_reduction <add>, %222, %cst_119 [1] : vector<128x128xf32> to vector<128xf32>
    %226 = vector.shape_cast %225 : vector<128xf32> to vector<128x1xf32>
    %cst_120 = arith.constant 1.562500e-02 : f32
    %227 = vector.broadcast %cst_120 : f32 to vector<128x1xf32>
    %228 = arith.mulf %226, %227 : vector<128x1xf32>
    %229 = vector.broadcast %228 : vector<128x1xf32> to vector<128x128xf32>
    %230 = arith.subf %222, %229 : vector<128x128xf32>
    %231 = vector.broadcast %4 : vector<1x128xf32> to vector<128x128xf32>
    %232 = arith.mulf %230, %231 : vector<128x128xf32>
    %233 = arith.mulf %232, %232 : vector<128x128xf32>
    %cst_121 = arith.constant dense<0.000000e+00> : vector<128xf32>
    %234 = vector.multi_reduction <add>, %233, %cst_121 [1] : vector<128x128xf32> to vector<128xf32>
    %235 = vector.shape_cast %234 : vector<128xf32> to vector<128x1xf32>
    %cst_122 = arith.constant 1.562500e-02 : f32
    %236 = vector.broadcast %cst_122 : f32 to vector<128x1xf32>
    %237 = arith.mulf %235, %236 : vector<128x1xf32>
    %cst_123 = arith.constant 9.99999974E-6 : f32
    %238 = vector.broadcast %cst_123 : f32 to vector<128x1xf32>
    %239 = arith.addf %237, %238 : vector<128x1xf32>
    %240 = math.rsqrt %239 : vector<128x1xf32>
    %241 = vector.broadcast %240 : vector<128x1xf32> to vector<128x128xf32>
    %242 = arith.mulf %232, %241 : vector<128x128xf32>
    %243 = vector.broadcast %223 : vector<1x128xf32> to vector<128x128xf32>
    %244 = arith.mulf %242, %243 : vector<128x128xf32>
    %245 = vector.broadcast %224 : vector<1x128xf32> to vector<128x128xf32>
    %246 = arith.addf %244, %245 : vector<128x128xf32>
    %c0_124 = arith.constant 0 : index
    %c0_125 = arith.constant 0 : index
    %247 = vector.load %arg14[%c0_124, %c0_125] : memref<128x128xf32, #tpu.memory_space<vmem>>, vector<128x128xf32>
    tpu.vector_store %arg14[%c0_124, %c0_125], %246 {strides = array<i32>} : memref<128x128xf32, #tpu.memory_space<vmem>>, vector<128x128xf32>,
    return
  }
}

</mosaic_0001>

<llo_original>
// kernel: graph_encoders_forward.1
$region0: #{graph_encoders_forward.1}
  #allocation0 [shape = 'u32[]', space=smem, size = 0x4, offset = 0x4, fixed_abs, tag = 'smem constant byte address 0x4 - core index']
  #allocation1 [shape = 'u32[144,128]{1,0:T(1,128)}', space=vmem, size = 0x12000, scoped, tag = 'internal scratch']
  %s0 = inlined_call_operand.hbm [shape: bf16[128,128], index: 0, kind: input, shape index: {}]
  %s1 = inlined_call_operand.hbm [shape: bf16[128,128], index: 1, kind: input, shape index: {}]
  %s2 = inlined_call_operand.hbm [shape: f32[128,128], index: 2, kind: input, shape index: {}]
  %s3 = inlined_call_operand.hbm [shape: f32[2,1,128], index: 3, kind: input, shape index: {}]
  %s4 = inlined_call_operand.hbm [shape: f32[2,1,128], index: 4, kind: input, shape index: {}]
  %s5 = inlined_call_operand.hbm [shape: f32[2,2,128,128], index: 5, kind: input, shape index: {}]
  %s6 = inlined_call_operand.hbm [shape: f32[2,2,1,128], index: 6, kind: input, shape index: {}]
  %s7 = inlined_call_operand.hbm [shape: f32[2,128,128], index: 7, kind: input, shape index: {}]
  %s8 = inlined_call_operand.hbm [shape: f32[2,1,128], index: 8, kind: input, shape index: {}]
  %s9 = inlined_call_operand.hbm [shape: f32[2,1,128], index: 9, kind: input, shape index: {}]
  %s10 = inlined_call_operand.hbm [shape: f32[256,128], index: 10, kind: input, shape index: {}]
  %s11 = inlined_call_operand.hbm [shape: f32[1,128], index: 11, kind: input, shape index: {}]
  %s12 = inlined_call_operand.hbm [shape: f32[1,128], index: 12, kind: input, shape index: {}]
  %s13 = inlined_call_operand.hbm [shape: f32[1,128], index: 13, kind: input, shape index: {}]
  %s14 = inlined_call_operand.hbm [shape: f32[128,128], index: 14, kind: output, shape index: {}]
  %s15 = sld [smem:[#allocation0]]
  $region122: #{graph_encoders_forward.1} parent=0
    _
  %s17 = ssub.s32 1, %s15
  %s18 = scalar_select 0, %s17, %s15
  $region1: #{graph_encoders_forward.1} parent=0
    #allocation2 [shape = 'u8[32768]{0}', space=vmem, size = 0x8000, scoped, tag = 'input window, operand 0, single buffered']
    #allocation3 [shape = 's32[1]{0}', space=sflag, size = 0x4, scoped, tag = 'scoped memory for graph_encoders_forward.1']
    #allocation4 [shape = 's32[1]{0}', space=sflag, size = 0x4, scoped, tag = 'scoped memory for graph_encoders_forward.1']
    #allocation5 [shape = 'u8[32768]{0}', space=vmem, size = 0x8000, scoped, tag = 'input window, operand 1, single buffered']
    #allocation6 [shape = 's32[1]{0}', space=sflag, size = 0x4, scoped, tag = 'scoped memory for graph_encoders_forward.1']
    #allocation7 [shape = 'u8[65536]{0}', space=vmem, size = 0x10000, scoped, tag = 'input window, operand 2, single buffered']
    #allocation8 [shape = 'u8[1024]{0}', space=vmem, size = 0x400, scoped, tag = 'input window, operand 3, single buffered']
    #allocation9 [shape = 's32[1]{0}', space=sflag, size = 0x4, scoped, tag = 'scoped memory for graph_encoders_forward.1']
    #allocation10 [shape = 'u8[1024]{0}', space=vmem, size = 0x400, scoped, tag = 'input window, operand 4, single buffered']
    #allocation11 [shape = 'u8[262144]{0}', space=vmem, size = 0x40000, scoped, tag = 'input window, operand 5, single buffered']
    #allocation12 [shape = 's32[1]{0}', space=sflag, size = 0x4, scoped, tag = 'scoped memory for graph_encoders_forward.1']
    #allocation13 [shape = 'u8[2048]{0}', space=vmem, size = 0x800, scoped, tag = 'input window, operand 6, single buffered']
    #allocation14 [shape = 'u8[131072]{0}', space=vmem, size = 0x20000, scoped, tag = 'input window, operand 7, single buffered']
    #allocation15 [shape = 's32[1]{0}', space=sflag, size = 0x4, scoped, tag = 'scoped memory for graph_encoders_forward.1']
    #allocation16 [shape = 'u8[1024]{0}', space=vmem, size = 0x400, scoped, tag = 'input window, operand 8, single buffered']
    #allocation17 [shape = 'u8[1024]{0}', space=vmem, size = 0x400, scoped, tag = 'input window, operand 9, single buffered']
    #allocation18 [shape = 's32[1]{0}', space=sflag, size = 0x4, scoped, tag = 'scoped memory for graph_encoders_forward.1']
    #allocation19 [shape = 'u8[131072]{0}', space=vmem, size = 0x20000, scoped, tag = 'input window, operand 10, single buffered']
    #allocation20 [shape = 'u8[512]{0}', space=vmem, size = 0x400, scoped, tag = 'input window, operand 11, single buffered']
    #allocation21 [shape = 's32[1]{0}', space=sflag, size = 0x4, scoped, tag = 'scoped memory for graph_encoders_forward.1']
    #allocation22 [shape = 'u8[512]{0}', space=vmem, size = 0x400, scoped, tag = 'input window, operand 12, single buffered']
    #allocation23 [shape = 'u8[512]{0}', space=vmem, size = 0x400, scoped, tag = 'input window, operand 13, single buffered']
    #allocation24 [shape = 's32[1]{0}', space=sflag, size = 0x4, scoped, tag = 'scoped memory for graph_encoders_forward.1']
    #allocation25 [shape = 'u8[65536]{0}', space=vmem, size = 0x10000, scoped, tag = 'output window, operand 0, single buffered']
    %19 = vsyncpa [#allocation3], 0
    %20 = vsyncpa [#allocation6], 0
    %21 = vsyncpa [#allocation9], 0
    %22 = vsyncpa [#allocation12], 0
    %23 = vsyncpa [#allocation15], 0
    %24 = vsyncpa [#allocation18], 0
    %25 = vsyncpa [#allocation21], 0
    %26 = vsyncpa [#allocation24], 0
    %27 = vsyncpa [#allocation4], 0
    // Predicated region
    $region2: #{graph_encoders_forward.1} parent=1 // pred_check
      _
    $region3: #{graph_encoders_forward.1} parent=1 // pred_check_branch
      %29 = sbr.rel (0) target = $region5
    $region4: #{graph_encoders_forward.1} parent=1 // pred_region
      %s31 = ssub.s32 1024, 1024
      %32 = vsyncadd [#allocation3], %s31
      %s33 = sshll.u32 [#allocation2], 4
      %s34 = int_to_ptr.vmem [resolvable:$true] %s33
      %39 = dma.hbm_to_vmem [thread:$0]  %s0, 1024, %s34, [#allocation3], 64, 64, 4
    $region5: #{graph_encoders_forward.1} parent=1 // pred_fallthru
      _
    // Predicated region
    $region6: #{graph_encoders_forward.1} parent=1 // pred_check
      _
    $region7: #{graph_encoders_forward.1} parent=1 // pred_check_branch
      %41 = sbr.rel (0) target = $region9
    $region8: #{graph_encoders_forward.1} parent=1 // pred_region
      %s43 = ssub.s32 1024, 1024
      %44 = vsyncadd [#allocation6], %s43
      %s45 = sshll.u32 [#allocation5], 4
      %s46 = int_to_ptr.vmem [resolvable:$true] %s45
      %51 = dma.hbm_to_vmem [thread:$0]  %s1, 1024, %s46, [#allocation6], 64, 64, 4
    $region9: #{graph_encoders_forward.1} parent=1 // pred_fallthru
      _
    // Predicated region
    $region10: #{graph_encoders_forward.1} parent=1 // pred_check
      _
    $region11: #{graph_encoders_forward.1} parent=1 // pred_check_branch
      %53 = sbr.rel (0) target = $region13
    $region12: #{graph_encoders_forward.1} parent=1 // pred_region
      %s55 = ssub.s32 2048, 2048
      %56 = vsyncadd [#allocation6], %s55
      %s57 = sshll.u32 [#allocation7], 4
      %s58 = int_to_ptr.vmem [resolvable:$true] %s57
      %63 = dma.hbm_to_vmem [thread:$0]  %s2, 2048, %s58, [#allocation6], 128, 128, 8
    $region13: #{graph_encoders_forward.1} parent=1 // pred_fallthru
      _
    // Predicated region
    $region14: #{graph_encoders_forward.1} parent=1 // pred_check
      _
    $region15: #{graph_encoders_forward.1} parent=1 // pred_check_branch
      %65 = sbr.rel (0) target = $region17
    $region16: #{graph_encoders_forward.1} parent=1 // pred_region
      %s67 = ssub.s32 32, 32
      %68 = vsyncadd [#allocation9], %s67
      %s69 = sshll.u32 [#allocation8], 4
      %s70 = int_to_ptr.vmem [resolvable:$true] %s69
      %75 = dma.hbm_to_vmem [thread:$0]  %s3, 32, %s70, [#allocation9], 16, 16, 1
    $region17: #{graph_encoders_forward.1} parent=1 // pred_fallthru
      _
    // Predicated region
    $region18: #{graph_encoders_forward.1} parent=1 // pred_check
      _
    $region19: #{graph_encoders_forward.1} parent=1 // pred_check_branch
      %77 = sbr.rel (0) target = $region21
    $region20: #{graph_encoders_forward.1} parent=1 // pred_region
      %s79 = ssub.s32 32, 32
      %80 = vsyncadd [#allocation9], %s79
      %s81 = sshll.u32 [#allocation10], 4
      %s82 = int_to_ptr.vmem [resolvable:$true] %s81
      %87 = dma.hbm_to_vmem [thread:$0]  %s4, 32, %s82, [#allocation9], 16, 16, 1
    $region21: #{graph_encoders_forward.1} parent=1 // pred_fallthru
      _
    // Predicated region
    $region22: #{graph_encoders_forward.1} parent=1 // pred_check
      _
    $region23: #{graph_encoders_forward.1} parent=1 // pred_check_branch
      %89 = sbr.rel (0) target = $region25
    $region24: #{graph_encoders_forward.1} parent=1 // pred_region
      %s91 = ssub.s32 8192, 8192
      %92 = vsyncadd [#allocation12], %s91
      %s93 = sshll.u32 [#allocation11], 4
      %s94 = int_to_ptr.vmem [resolvable:$true] %s93
      %99 = dma.hbm_to_vmem [thread:$0]  %s5, 8192, %s94, [#allocation12], 128, 128, 8
    $region25: #{graph_encoders_forward.1} parent=1 // pred_fallthru
      _
    // Predicated region
    $region26: #{graph_encoders_forward.1} parent=1 // pred_check
      _
    $region27: #{graph_encoders_forward.1} parent=1 // pred_check_branch
      %101 = sbr.rel (0) target = $region29
    $region28: #{graph_encoders_forward.1} parent=1 // pred_region
      %s103 = ssub.s32 64, 64
      %104 = vsyncadd [#allocation12], %s103
      %s105 = sshll.u32 [#allocation13], 4
      %s106 = int_to_ptr.vmem [resolvable:$true] %s105
      %111 = dma.hbm_to_vmem [thread:$0]  %s6, 64, %s106, [#allocation12], 16, 16, 1
    $region29: #{graph_encoders_forward.1} parent=1 // pred_fallthru
      _
    // Predicated region
    $region30: #{graph_encoders_forward.1} parent=1 // pred_check
      _
    $region31: #{graph_encoders_forward.1} parent=1 // pred_check_branch
      %113 = sbr.rel (0) target = $region33
    $region32: #{graph_encoders_forward.1} parent=1 // pred_region
      %s115 = ssub.s32 4096, 4096
      %116 = vsyncadd [#allocation15], %s115
      %s117 = sshll.u32 [#allocation14], 4
      %s118 = int_to_ptr.vmem [resolvable:$true] %s117
      %123 = dma.hbm_to_vmem [thread:$0]  %s7, 4096, %s118, [#allocation15], 128, 128, 8
    $region33: #{graph_encoders_forward.1} parent=1 // pred_fallthru
      _
    // Predicated region
    $region34: #{graph_encoders_forward.1} parent=1 // pred_check
      _
    $region35: #{graph_encoders_forward.1} parent=1 // pred_check_branch
      %125 = sbr.rel (0) target = $region37
    $region36: #{graph_encoders_forward.1} parent=1 // pred_region
      %s127 = ssub.s32 32, 32
      %128 = vsyncadd [#allocation15], %s127
      %s129 = sshll.u32 [#allocation16], 4
      %s130 = int_to_ptr.vmem [resolvable:$true] %s129
      %135 = dma.hbm_to_vmem [thread:$0]  %s8, 32, %s130, [#allocation15], 16, 16, 1
    $region37: #{graph_encoders_forward.1} parent=1 // pred_fallthru
      _
    // Predicated region
    $region38: #{graph_encoders_forward.1} parent=1 // pred_check
      _
    $region39: #{graph_encoders_forward.1} parent=1 // pred_check_branch
      %137 = sbr.rel (0) target = $region41
    $region40: #{graph_encoders_forward.1} parent=1 // pred_region
      %s139 = ssub.s32 32, 32
      %140 = vsyncadd [#allocation18], %s139
      %s141 = sshll.u32 [#allocation17], 4
      %s142 = int_to_ptr.vmem [resolvable:$true] %s141
      %147 = dma.hbm_to_vmem [thread:$0]  %s9, 32, %s142, [#allocation18], 16, 16, 1
    $region41: #{graph_encoders_forward.1} parent=1 // pred_fallthru
      _
    // Predicated region
    $region42: #{graph_encoders_forward.1} parent=1 // pred_check
      _
    $region43: #{graph_encoders_forward.1} parent=1 // pred_check_branch
      %149 = sbr.rel (0) target = $region45
    $region44: #{graph_encoders_forward.1} parent=1 // pred_region
      %s151 = ssub.s32 4096, 4096
      %152 = vsyncadd [#allocation18], %s151
      %s153 = sshll.u32 [#allocation19], 4
      %s154 = int_to_ptr.vmem [resolvable:$true] %s153
      %159 = dma.hbm_to_vmem [thread:$0]  %s10, 4096, %s154, [#allocation18], 128, 128, 8
    $region45: #{graph_encoders_forward.1} parent=1 // pred_fallthru
      _
    // Predicated region
    $region46: #{graph_encoders_forward.1} parent=1 // pred_check
      _
    $region47: #{graph_encoders_forward.1} parent=1 // pred_check_branch
      %161 = sbr.rel (0) target = $region49
    $region48: #{graph_encoders_forward.1} parent=1 // pred_region
      %s163 = ssub.s32 16, 16
      %164 = vsyncadd [#allocation21], %s163
      %s166 = sshll.u32 [#allocation20], 4
      %s167 = int_to_ptr.vmem [resolvable:$true] %s166
      %169 = dma.hbm_to_vmem [thread:$0]  %s11, 16, %s167, [#allocation21]
    $region49: #{graph_encoders_forward.1} parent=1 // pred_fallthru
      _
    // Predicated region
    $region50: #{graph_encoders_forward.1} parent=1 // pred_check
      _
    $region51: #{graph_encoders_forward.1} parent=1 // pred_check_branch
      %171 = sbr.rel (0) target = $region53
    $region52: #{graph_encoders_forward.1} parent=1 // pred_region
      %s173 = ssub.s32 16, 16
      %174 = vsyncadd [#allocation21], %s173
      %s176 = sshll.u32 [#allocation22], 4
      %s177 = int_to_ptr.vmem [resolvable:$true] %s176
      %179 = dma.hbm_to_vmem [thread:$0]  %s12, 16, %s177, [#allocation21]
    $region53: #{graph_encoders_forward.1} parent=1 // pred_fallthru
      _
    // Predicated region
    $region54: #{graph_encoders_forward.1} parent=1 // pred_check
      _
    $region55: #{graph_encoders_forward.1} parent=1 // pred_check_branch
      %181 = sbr.rel (0) target = $region57
    $region56: #{graph_encoders_forward.1} parent=1 // pred_region
      %s183 = ssub.s32 16, 16
      %184 = vsyncadd [#allocation24], %s183
      %s186 = sshll.u32 [#allocation23], 4
      %s187 = int_to_ptr.vmem [resolvable:$true] %s186
      %189 = dma.hbm_to_vmem [thread:$0]  %s13, 16, %s187, [#allocation24]
    $region57: #{graph_encoders_forward.1} parent=1 // pred_fallthru
      _
    // Predicated region
    $region58: #{graph_encoders_forward.1} parent=1 // pred_check
      _
    $region59: #{graph_encoders_forward.1} parent=1 // pred_check_branch
      %191 = sbr.rel (0) target = $region61
    $region60: #{graph_encoders_forward.1} parent=1 // pred_region
      %192 = dma.done [#allocation3], 1024
    $region61: #{graph_encoders_forward.1} parent=1 // pred_fallthru
      _
    // Predicated region
    $region62: #{graph_encoders_forward.1} parent=1 // pred_check
      _
    $region63: #{graph_encoders_forward.1} parent=1 // pred_check_branch
      %194 = sbr.rel (0) target = $region65
    $region64: #{graph_encoders_forward.1} parent=1 // pred_region
      %195 = dma.done [#allocation6], 1024
    $region65: #{graph_encoders_forward.1} parent=1 // pred_fallthru
      _
    // Predicated region
    $region66: #{graph_encoders_forward.1} parent=1 // pred_check
      _
    $region67: #{graph_encoders_forward.1} parent=1 // pred_check_branch
      %197 = sbr.rel (0) target = $region69
    $region68: #{graph_encoders_forward.1} parent=1 // pred_region
      %198 = dma.done [#allocation6], 2048
    $region69: #{graph_encoders_forward.1} parent=1 // pred_fallthru
      _
    // Predicated region
    $region70: #{graph_encoders_forward.1} parent=1 // pred_check
      _
    $region71: #{graph_encoders_forward.1} parent=1 // pred_check_branch
      %200 = sbr.rel (0) target = $region73
    $region72: #{graph_encoders_forward.1} parent=1 // pred_region
      %201 = dma.done [#allocation9], 32
    $region73: #{graph_encoders_forward.1} parent=1 // pred_fallthru
      _
    // Predicated region
    $region74: #{graph_encoders_forward.1} parent=1 // pred_check
      _
    $region75: #{graph_encoders_forward.1} parent=1 // pred_check_branch
      %203 = sbr.rel (0) target = $region77
    $region76: #{graph_encoders_forward.1} parent=1 // pred_region
      %204 = dma.done [#allocation9], 32
    $region77: #{graph_encoders_forward.1} parent=1 // pred_fallthru
      _
    // Predicated region
    $region78: #{graph_encoders_forward.1} parent=1 // pred_check
      _
    $region79: #{graph_encoders_forward.1} parent=1 // pred_check_branch
      %206 = sbr.rel (0) target = $region81
    $region80: #{graph_encoders_forward.1} parent=1 // pred_region
      %207 = dma.done [#allocation12], 8192
    $region81: #{graph_encoders_forward.1} parent=1 // pred_fallthru
      _
    // Predicated region
    $region82: #{graph_encoders_forward.1} parent=1 // pred_check
      _
    $region83: #{graph_encoders_forward.1} parent=1 // pred_check_branch
      %209 = sbr.rel (0) target = $region85
    $region84: #{graph_encoders_forward.1} parent=1 // pred_region
      %210 = dma.done [#allocation12], 64
    $region85: #{graph_encoders_forward.1} parent=1 // pred_fallthru
      _
    // Predicated region
    $region86: #{graph_encoders_forward.1} parent=1 // pred_check
      _
    $region87: #{graph_encoders_forward.1} parent=1 // pred_check_branch
      %212 = sbr.rel (0) target = $region89
    $region88: #{graph_encoders_forward.1} parent=1 // pred_region
      %213 = dma.done [#allocation15], 4096
    $region89: #{graph_encoders_forward.1} parent=1 // pred_fallthru
      _
    // Predicated region
    $region90: #{graph_encoders_forward.1} parent=1 // pred_check
      _
    $region91: #{graph_encoders_forward.1} parent=1 // pred_check_branch
      %215 = sbr.rel (0) target = $region93
    $region92: #{graph_encoders_forward.1} parent=1 // pred_region
      %216 = dma.done [#allocation15], 32
    $region93: #{graph_encoders_forward.1} parent=1 // pred_fallthru
      _
    // Predicated region
    $region94: #{graph_encoders_forward.1} parent=1 // pred_check
      _
    $region95: #{graph_encoders_forward.1} parent=1 // pred_check_branch
      %218 = sbr.rel (0) target = $region97
    $region96: #{graph_encoders_forward.1} parent=1 // pred_region
      %219 = dma.done [#allocation18], 32
    $region97: #{graph_encoders_forward.1} parent=1 // pred_fallthru
      _
    // Predicated region
    $region98: #{graph_encoders_forward.1} parent=1 // pred_check
      _
    $region99: #{graph_encoders_forward.1} parent=1 // pred_check_branch
      %221 = sbr.rel (0) target = $region101
    $region100: #{graph_encoders_forward.1} parent=1 // pred_region
      %222 = dma.done [#allocation18], 4096
    $region101: #{graph_encoders_forward.1} parent=1 // pred_fallthru
      _
    // Predicated region
    $region102: #{graph_encoders_forward.1} parent=1 // pred_check
      _
    $region103: #{graph_encoders_forward.1} parent=1 // pred_check_branch
      %224 = sbr.rel (0) target = $region105
    $region104: #{graph_encoders_forward.1} parent=1 // pred_region
      %225 = dma.done [#allocation21], 16
    $region105: #{graph_encoders_forward.1} parent=1 // pred_fallthru
      _
    // Predicated region
    $region106: #{graph_encoders_forward.1} parent=1 // pred_check
      _
    $region107: #{graph_encoders_forward.1} parent=1 // pred_check_branch
      %227 = sbr.rel (0) target = $region109
    $region108: #{graph_encoders_forward.1} parent=1 // pred_region
      %228 = dma.done [#allocation21], 16
    $region109: #{graph_encoders_forward.1} parent=1 // pred_fallthru
      _
    // Predicated region
    $region110: #{graph_encoders_forward.1} parent=1 // pred_check
      _
    $region111: #{graph_encoders_forward.1} parent=1 // pred_check_branch
      %230 = sbr.rel (0) target = $region113
    $region112: #{graph_encoders_forward.1} parent=1 // pred_region
      %231 = dma.done [#allocation24], 16
    $region113: #{graph_encoders_forward.1} parent=1 // pred_fallthru
      _
    %v233 = vlaneseq
    %v234 = vand.u32 %v233, 127
    %vm235 = vcmp.lt.s32.totalorder %v234, 64
    %v236 = vsel %vm235, 1, 0
    %v237 = vcvt.s32.f32 %v236
    %v238 = vld [vmem:[#allocation7] sm:$0xff]
    %v239 = vld [vmem:[#allocation7 + $0x8] sm:$0xff]
    %v240 = vld [vmem:[#allocation7 + $0x10] sm:$0xff]
    %v241 = vld [vmem:[#allocation7 + $0x18] sm:$0xff]
    %v242 = vld [vmem:[#allocation7 + $0x20] sm:$0xff]
    %v243 = vld [vmem:[#allocation7 + $0x28] sm:$0xff]
    %v244 = vld [vmem:[#allocation7 + $0x30] sm:$0xff]
    %v245 = vld [vmem:[#allocation7 + $0x38] sm:$0xff]
    %v246 = vld [vmem:[#allocation7 + $0x40] sm:$0xff]
    %v247 = vld [vmem:[#allocation7 + $0x48] sm:$0xff]
    %v248 = vld [vmem:[#allocation7 + $0x50] sm:$0xff]
    %v249 = vld [vmem:[#allocation7 + $0x58] sm:$0xff]
    %v250 = vld [vmem:[#allocation7 + $0x60] sm:$0xff]
    %v251 = vld [vmem:[#allocation7 + $0x68] sm:$0xff]
    %v252 = vld [vmem:[#allocation7 + $0x70] sm:$0xff]
    %v253 = vld [vmem:[#allocation7 + $0x78] sm:$0xff]
    %v254 = vld [vmem:[#allocation2] sm:$0xf]
    %v255 = vld [vmem:[#allocation2 + $0x4] sm:$0xf]
    %v256 = vld [vmem:[#allocation2 + $0x8] sm:$0xf]
    %v257 = vld [vmem:[#allocation2 + $0xc] sm:$0xf]
    %v258 = vld [vmem:[#allocation2 + $0x10] sm:$0xf]
    %v259 = vld [vmem:[#allocation2 + $0x14] sm:$0xf]
    %v260 = vld [vmem:[#allocation2 + $0x18] sm:$0xf]
    %v261 = vld [vmem:[#allocation2 + $0x1c] sm:$0xf]
    %v262 = vld [vmem:[#allocation2 + $0x20] sm:$0xf]
    %v263 = vld [vmem:[#allocation2 + $0x24] sm:$0xf]
    %v264 = vld [vmem:[#allocation2 + $0x28] sm:$0xf]
    %v265 = vld [vmem:[#allocation2 + $0x2c] sm:$0xf]
    %v266 = vld [vmem:[#allocation2 + $0x30] sm:$0xf]
    %v267 = vld [vmem:[#allocation2 + $0x34] sm:$0xf]
    %v268 = vld [vmem:[#allocation2 + $0x38] sm:$0xf]
    %v269 = vld [vmem:[#allocation2 + $0x3c] sm:$0xf]
    %v270 = vld [vmem:[#allocation5] sm:$0xf]
    %v271 = vld [vmem:[#allocation5 + $0x4] sm:$0xf]
    %v272 = vld [vmem:[#allocation5 + $0x8] sm:$0xf]
    %v273 = vld [vmem:[#allocation5 + $0xc] sm:$0xf]
    %v274 = vld [vmem:[#allocation5 + $0x10] sm:$0xf]
    %v275 = vld [vmem:[#allocation5 + $0x14] sm:$0xf]
    %v276 = vld [vmem:[#allocation5 + $0x18] sm:$0xf]
    %v277 = vld [vmem:[#allocation5 + $0x1c] sm:$0xf]
    %v278 = vld [vmem:[#allocation5 + $0x20] sm:$0xf]
    %v279 = vld [vmem:[#allocation5 + $0x24] sm:$0xf]
    %v280 = vld [vmem:[#allocation5 + $0x28] sm:$0xf]
    %v281 = vld [vmem:[#allocation5 + $0x2c] sm:$0xf]
    %v282 = vld [vmem:[#allocation5 + $0x30] sm:$0xf]
    %v283 = vld [vmem:[#allocation5 + $0x34] sm:$0xf]
    %v284 = vld [vmem:[#allocation5 + $0x38] sm:$0xf]
    %v285 = vld [vmem:[#allocation5 + $0x3c] sm:$0xf]
    %v286 = vunpack.c.l.bf16 %v270
    %v287 = vunpack.c.l.bf16 %v271
    %v288 = vunpack.c.l.bf16 %v272
    %v289 = vunpack.c.l.bf16 %v273
    %v290 = vunpack.c.l.bf16 %v274
    %v291 = vunpack.c.l.bf16 %v275
    %v292 = vunpack.c.l.bf16 %v276
    %v293 = vunpack.c.l.bf16 %v277
    %v294 = vunpack.c.l.bf16 %v278
    %v295 = vunpack.c.l.bf16 %v279
    %v296 = vunpack.c.l.bf16 %v280
    %v297 = vunpack.c.l.bf16 %v281
    %v298 = vunpack.c.l.bf16 %v282
    %v299 = vunpack.c.l.bf16 %v283
    %v300 = vunpack.c.l.bf16 %v284
    %v301 = vunpack.c.l.bf16 %v285
    %vm302 = vcmp.gt.f32.partialorder %v286, 0.0
    %vm303 = vcmp.gt.f32.partialorder %v287, 0.0
    %vm304 = vcmp.gt.f32.partialorder %v288, 0.0
    %vm305 = vcmp.gt.f32.partialorder %v289, 0.0
    %vm306 = vcmp.gt.f32.partialorder %v290, 0.0
    %vm307 = vcmp.gt.f32.partialorder %v291, 0.0
    %vm308 = vcmp.gt.f32.partialorder %v292, 0.0
    %vm309 = vcmp.gt.f32.partialorder %v293, 0.0
    %vm310 = vcmp.gt.f32.partialorder %v294, 0.0
    %vm311 = vcmp.gt.f32.partialorder %v295, 0.0
    %vm312 = vcmp.gt.f32.partialorder %v296, 0.0
    %vm313 = vcmp.gt.f32.partialorder %v297, 0.0
    %vm314 = vcmp.gt.f32.partialorder %v298, 0.0
    %vm315 = vcmp.gt.f32.partialorder %v299, 0.0
    %vm316 = vcmp.gt.f32.partialorder %v300, 0.0
    %vm317 = vcmp.gt.f32.partialorder %v301, 0.0
    %v318 = vsel %vm302, 1, 0
    %v319 = vsel %vm303, 1, 0
    %v320 = vsel %vm304, 1, 0
    %v321 = vsel %vm305, 1, 0
    %v322 = vsel %vm306, 1, 0
    %v323 = vsel %vm307, 1, 0
    %v324 = vsel %vm308, 1, 0
    %v325 = vsel %vm309, 1, 0
    %v326 = vsel %vm310, 1, 0
    %v327 = vsel %vm311, 1, 0
    %v328 = vsel %vm312, 1, 0
    %v329 = vsel %vm313, 1, 0
    %v330 = vsel %vm314, 1, 0
    %v331 = vsel %vm315, 1, 0
    %v332 = vsel %vm316, 1, 0
    %v333 = vsel %vm317, 1, 0
    %v334 = vcvt.s32.f32 %v318
    %v335 = vcvt.s32.f32 %v319
    %v336 = vcvt.s32.f32 %v320
    %v337 = vcvt.s32.f32 %v321
    %v338 = vcvt.s32.f32 %v322
    %v339 = vcvt.s32.f32 %v323
    %v340 = vcvt.s32.f32 %v324
    %v341 = vcvt.s32.f32 %v325
    %v342 = vcvt.s32.f32 %v326
    %v343 = vcvt.s32.f32 %v327
    %v344 = vcvt.s32.f32 %v328
    %v345 = vcvt.s32.f32 %v329
    %v346 = vcvt.s32.f32 %v330
    %v347 = vcvt.s32.f32 %v331
    %v348 = vcvt.s32.f32 %v332
    %v349 = vcvt.s32.f32 %v333
    %v350 = vsub.f32 %v334, 1.0
    %v351 = vsub.f32 %v335, 1.0
    %v352 = vsub.f32 %v336, 1.0
    %v353 = vsub.f32 %v337, 1.0
    %v354 = vsub.f32 %v338, 1.0
    %v355 = vsub.f32 %v339, 1.0
    %v356 = vsub.f32 %v340, 1.0
    %v357 = vsub.f32 %v341, 1.0
    %v358 = vsub.f32 %v342, 1.0
    %v359 = vsub.f32 %v343, 1.0
    %v360 = vsub.f32 %v344, 1.0
    %v361 = vsub.f32 %v345, 1.0
    %v362 = vsub.f32 %v346, 1.0
    %v363 = vsub.f32 %v347, 1.0
    %v364 = vsub.f32 %v348, 1.0
    %v365 = vsub.f32 %v349, 1.0
    %v366 = vmul.f32 %v350, 1e+09
    %v367 = vmul.f32 %v351, 1e+09
    %v368 = vmul.f32 %v352, 1e+09
    %v369 = vmul.f32 %v353, 1e+09
    %v370 = vmul.f32 %v354, 1e+09
    %v371 = vmul.f32 %v355, 1e+09
    %v372 = vmul.f32 %v356, 1e+09
    %v373 = vmul.f32 %v357, 1e+09
    %v374 = vmul.f32 %v358, 1e+09
    %v375 = vmul.f32 %v359, 1e+09
    %v376 = vmul.f32 %v360, 1e+09
    %v377 = vmul.f32 %v361, 1e+09
    %v378 = vmul.f32 %v362, 1e+09
    %v379 = vmul.f32 %v363, 1e+09
    %v380 = vmul.f32 %v364, 1e+09
    %v381 = vmul.f32 %v365, 1e+09
    %v382 = vld [vmem:[#allocation8] sm:$0x1]
    %v383 = vld [vmem:[#allocation10] sm:$0x1]
    %384 = vadd.xlane.f32.xlu0 %v238
    %v385 = vpop.xlane.xlu0 %384
    %386 = vadd.xlane.f32.xlu0 %v239
    %v387 = vpop.xlane.xlu0 %386
    %388 = vadd.xlane.f32.xlu0 %v240
    %v389 = vpop.xlane.xlu0 %388
    %390 = vadd.xlane.f32.xlu0 %v241
    %v391 = vpop.xlane.xlu0 %390
    %392 = vadd.xlane.f32.xlu0 %v242
    %v393 = vpop.xlane.xlu0 %392
    %394 = vadd.xlane.f32.xlu0 %v243
    %v395 = vpop.xlane.xlu0 %394
    %396 = vadd.xlane.f32.xlu0 %v244
    %v397 = vpop.xlane.xlu0 %396
    %398 = vadd.xlane.f32.xlu0 %v245
    %v399 = vpop.xlane.xlu0 %398
    %400 = vadd.xlane.f32.xlu0 %v246
    %v401 = vpop.xlane.xlu0 %400
    %402 = vadd.xlane.f32.xlu0 %v247
    %v403 = vpop.xlane.xlu0 %402
    %404 = vadd.xlane.f32.xlu0 %v248
    %v405 = vpop.xlane.xlu0 %404
    %406 = vadd.xlane.f32.xlu0 %v249
    %v407 = vpop.xlane.xlu0 %406
    %408 = vadd.xlane.f32.xlu0 %v250
    %v409 = vpop.xlane.xlu0 %408
    %410 = vadd.xlane.f32.xlu0 %v251
    %v411 = vpop.xlane.xlu0 %410
    %412 = vadd.xlane.f32.xlu0 %v252
    %v413 = vpop.xlane.xlu0 %412
    %414 = vadd.xlane.f32.xlu0 %v253
    %v415 = vpop.xlane.xlu0 %414
    %v416 = vmul.f32 %v385, 0.015625
    %v417 = vmul.f32 %v387, 0.015625
    %v418 = vmul.f32 %v389, 0.015625
    %v419 = vmul.f32 %v391, 0.015625
    %v420 = vmul.f32 %v393, 0.015625
    %v421 = vmul.f32 %v395, 0.015625
    %v422 = vmul.f32 %v397, 0.015625
    %v423 = vmul.f32 %v399, 0.015625
    %v424 = vmul.f32 %v401, 0.015625
    %v425 = vmul.f32 %v403, 0.015625
    %v426 = vmul.f32 %v405, 0.015625
    %v427 = vmul.f32 %v407, 0.015625
    %v428 = vmul.f32 %v409, 0.015625
    %v429 = vmul.f32 %v411, 0.015625
    %v430 = vmul.f32 %v413, 0.015625
    %v431 = vmul.f32 %v415, 0.015625
    %v432 = vsub.f32 %v238, %v416
    %v433 = vsub.f32 %v239, %v417
    %v434 = vsub.f32 %v240, %v418
    %v435 = vsub.f32 %v241, %v419
    %v436 = vsub.f32 %v242, %v420
    %v437 = vsub.f32 %v243, %v421
    %v438 = vsub.f32 %v244, %v422
    %v439 = vsub.f32 %v245, %v423
    %v440 = vsub.f32 %v246, %v424
    %v441 = vsub.f32 %v247, %v425
    %v442 = vsub.f32 %v248, %v426
    %v443 = vsub.f32 %v249, %v427
    %v444 = vsub.f32 %v250, %v428
    %v445 = vsub.f32 %v251, %v429
    %v446 = vsub.f32 %v252, %v430
    %v447 = vsub.f32 %v253, %v431
    %v448 = vmul.f32 %v432, %v237
    %v449 = vmul.f32 %v433, %v237
    %v450 = vmul.f32 %v434, %v237
    %v451 = vmul.f32 %v435, %v237
    %v452 = vmul.f32 %v436, %v237
    %v453 = vmul.f32 %v437, %v237
    %v454 = vmul.f32 %v438, %v237
    %v455 = vmul.f32 %v439, %v237
    %v456 = vmul.f32 %v440, %v237
    %v457 = vmul.f32 %v441, %v237
    %v458 = vmul.f32 %v442, %v237
    %v459 = vmul.f32 %v443, %v237
    %v460 = vmul.f32 %v444, %v237
    %v461 = vmul.f32 %v445, %v237
    %v462 = vmul.f32 %v446, %v237
    %v463 = vmul.f32 %v447, %v237
    %v464 = vmul.f32 %v448, %v448
    %v465 = vmul.f32 %v449, %v449
    %v466 = vmul.f32 %v450, %v450
    %v467 = vmul.f32 %v451, %v451
    %v468 = vmul.f32 %v452, %v452
    %v469 = vmul.f32 %v453, %v453
    %v470 = vmul.f32 %v454, %v454
    %v471 = vmul.f32 %v455, %v455
    %v472 = vmul.f32 %v456, %v456
    %v473 = vmul.f32 %v457, %v457
    %v474 = vmul.f32 %v458, %v458
    %v475 = vmul.f32 %v459, %v459
    %v476 = vmul.f32 %v460, %v460
    %v477 = vmul.f32 %v461, %v461
    %v478 = vmul.f32 %v462, %v462
    %v479 = vmul.f32 %v463, %v463
    %480 = vadd.xlane.f32.xlu0 %v464
    %v481 = vpop.xlane.xlu0 %480
    %482 = vadd.xlane.f32.xlu0 %v465
    %v483 = vpop.xlane.xlu0 %482
    %484 = vadd.xlane.f32.xlu0 %v466
    %v485 = vpop.xlane.xlu0 %484
    %486 = vadd.xlane.f32.xlu0 %v467
    %v487 = vpop.xlane.xlu0 %486
    %488 = vadd.xlane.f32.xlu0 %v468
    %v489 = vpop.xlane.xlu0 %488
    %490 = vadd.xlane.f32.xlu0 %v469
    %v491 = vpop.xlane.xlu0 %490
    %492 = vadd.xlane.f32.xlu0 %v470
    %v493 = vpop.xlane.xlu0 %492
    %494 = vadd.xlane.f32.xlu0 %v471
    %v495 = vpop.xlane.xlu0 %494
    %496 = vadd.xlane.f32.xlu0 %v472
    %v497 = vpop.xlane.xlu0 %496
    %498 = vadd.xlane.f32.xlu0 %v473
    %v499 = vpop.xlane.xlu0 %498
    %500 = vadd.xlane.f32.xlu0 %v474
    %v501 = vpop.xlane.xlu0 %500
    %502 = vadd.xlane.f32.xlu0 %v475
    %v503 = vpop.xlane.xlu0 %502
    %504 = vadd.xlane.f32.xlu0 %v476
    %v505 = vpop.xlane.xlu0 %504
    %506 = vadd.xlane.f32.xlu0 %v477
    %v507 = vpop.xlane.xlu0 %506
    %508 = vadd.xlane.f32.xlu0 %v478
    %v509 = vpop.xlane.xlu0 %508
    %510 = vadd.xlane.f32.xlu0 %v479
    %v511 = vpop.xlane.xlu0 %510
    %v512 = vmul.f32 %v481, 0.015625
    %v513 = vmul.f32 %v483, 0.015625
    %v514 = vmul.f32 %v485, 0.015625
    %v515 = vmul.f32 %v487, 0.015625
    %v516 = vmul.f32 %v489, 0.015625
    %v517 = vmul.f32 %v491, 0.015625
    %v518 = vmul.f32 %v493, 0.015625
    %v519 = vmul.f32 %v495, 0.015625
    %v520 = vmul.f32 %v497, 0.015625
    %v521 = vmul.f32 %v499, 0.015625
    %v522 = vmul.f32 %v501, 0.015625
    %v523 = vmul.f32 %v503, 0.015625
    %v524 = vmul.f32 %v505, 0.015625
    %v525 = vmul.f32 %v507, 0.015625
    %v526 = vmul.f32 %v509, 0.015625
    %v527 = vmul.f32 %v511, 0.015625
    %v528 = vadd.f32 %v512, 1e-05
    %v529 = vadd.f32 %v513, 1e-05
    %v530 = vadd.f32 %v514, 1e-05
    %v531 = vadd.f32 %v515, 1e-05
    %v532 = vadd.f32 %v516, 1e-05
    %v533 = vadd.f32 %v517, 1e-05
    %v534 = vadd.f32 %v518, 1e-05
    %v535 = vadd.f32 %v519, 1e-05
    %v536 = vadd.f32 %v520, 1e-05
    %v537 = vadd.f32 %v521, 1e-05
    %v538 = vadd.f32 %v522, 1e-05
    %v539 = vadd.f32 %v523, 1e-05
    %v540 = vadd.f32 %v524, 1e-05
    %v541 = vadd.f32 %v525, 1e-05
    %v542 = vadd.f32 %v526, 1e-05
    %v543 = vadd.f32 %v527, 1e-05
    %v544 = vrsqrt.pop %v528
    %v545 = vrsqrt.pop %v529
    %v546 = vrsqrt.pop %v530
    %v547 = vrsqrt.pop %v531
    %v548 = vrsqrt.pop %v532
    %v549 = vrsqrt.pop %v533
    %v550 = vrsqrt.pop %v534
    %v551 = vrsqrt.pop %v535
    %v552 = vrsqrt.pop %v536
    %v553 = vrsqrt.pop %v537
    %v554 = vrsqrt.pop %v538
    %v555 = vrsqrt.pop %v539
    %v556 = vrsqrt.pop %v540
    %v557 = vrsqrt.pop %v541
    %v558 = vrsqrt.pop %v542
    %v559 = vrsqrt.pop %v543
    %v560 = vmul.f32 %v448, %v544
    %v561 = vmul.f32 %v449, %v545
    %v562 = vmul.f32 %v450, %v546
    %v563 = vmul.f32 %v451, %v547
    %v564 = vmul.f32 %v452, %v548
    %v565 = vmul.f32 %v453, %v549
    %v566 = vmul.f32 %v454, %v550
    %v567 = vmul.f32 %v455, %v551
    %v568 = vmul.f32 %v456, %v552
    %v569 = vmul.f32 %v457, %v553
    %v570 = vmul.f32 %v458, %v554
    %v571 = vmul.f32 %v459, %v555
    %v572 = vmul.f32 %v460, %v556
    %v573 = vmul.f32 %v461, %v557
    %v574 = vmul.f32 %v462, %v558
    %v575 = vmul.f32 %v463, %v559
    %v577 = vlaneseq
    %v578 = vshrl.u32 %v577, 7
    %v579 = vsub.s32 0, %v578
    %v580 = vrot.slane %v382, %v579
    %v582 = vmul.f32 %v560, %v580
    %v583 = vmul.f32 %v561, %v580
    %v584 = vmul.f32 %v562, %v580
    %v585 = vmul.f32 %v563, %v580
    %v586 = vmul.f32 %v564, %v580
    %v587 = vmul.f32 %v565, %v580
    %v588 = vmul.f32 %v566, %v580
    %v589 = vmul.f32 %v567, %v580
    %v590 = vmul.f32 %v568, %v580
    %v591 = vmul.f32 %v569, %v580
    %v592 = vmul.f32 %v570, %v580
    %v593 = vmul.f32 %v571, %v580
    %v594 = vmul.f32 %v572, %v580
    %v595 = vmul.f32 %v573, %v580
    %v596 = vmul.f32 %v574, %v580
    %v597 = vmul.f32 %v575, %v580
    %v599 = vlaneseq
    %v600 = vshrl.u32 %v599, 7
    %v601 = vsub.s32 0, %v600
    %v602 = vrot.slane %v383, %v601
    %v604 = vadd.f32 %v582, %v602
    %v605 = vadd.f32 %v583, %v602
    %v606 = vadd.f32 %v584, %v602
    %v607 = vadd.f32 %v585, %v602
    %v608 = vadd.f32 %v586, %v602
    %v609 = vadd.f32 %v587, %v602
    %v610 = vadd.f32 %v588, %v602
    %v611 = vadd.f32 %v589, %v602
    %v612 = vadd.f32 %v590, %v602
    %v613 = vadd.f32 %v591, %v602
    %v614 = vadd.f32 %v592, %v602
    %v615 = vadd.f32 %v593, %v602
    %v616 = vadd.f32 %v594, %v602
    %v617 = vadd.f32 %v595, %v602
    %v618 = vadd.f32 %v596, %v602
    %v619 = vadd.f32 %v597, %v602
    %v620 = vpack.c.bf16 %v605, %v604
    %v621 = vpack.c.bf16 %v607, %v606
    %v622 = vpack.c.bf16 %v609, %v608
    %v623 = vpack.c.bf16 %v611, %v610
    %v624 = vpack.c.bf16 %v613, %v612
    %v625 = vpack.c.bf16 %v615, %v614
    %v626 = vpack.c.bf16 %v617, %v616
    %v627 = vpack.c.bf16 %v619, %v618
    %v644 = vunpack.c.l.b16 %v254
    %v645 = vunpack.c.l.b16 %v255
    %v646 = vunpack.c.l.b16 %v256
    %v647 = vunpack.c.l.b16 %v257
    %v648 = vunpack.c.l.b16 %v258
    %v649 = vunpack.c.l.b16 %v259
    %v650 = vunpack.c.l.b16 %v260
    %v651 = vunpack.c.l.b16 %v261
    %v652 = vunpack.c.l.b16 %v262
    %v653 = vunpack.c.l.b16 %v263
    %v654 = vunpack.c.l.b16 %v264
    %v655 = vunpack.c.l.b16 %v265
    %v656 = vunpack.c.l.b16 %v266
    %v657 = vunpack.c.l.b16 %v267
    %v658 = vunpack.c.l.b16 %v268
    %v659 = vunpack.c.l.b16 %v269
    %v660 = vpack.c.b16 %v645, %v644
    %v661 = vpack.c.b16 %v647, %v646
    %v662 = vpack.c.b16 %v649, %v648
    %v663 = vpack.c.b16 %v651, %v650
    %v664 = vpack.c.b16 %v653, %v652
    %v665 = vpack.c.b16 %v655, %v654
    %v666 = vpack.c.b16 %v657, %v656
    %v667 = vpack.c.b16 %v659, %v658
    %676 = vmatprep.subr.bf16.mxu0 0
    %677 = vmatpush1.bf16.msra.mxu0 %v620
    %678 = vmatprep.subr.bf16.mxu0 0
    %679 = vmatpush1.bf16.msra.mxu0 %v621
    %680 = vmatprep.subr.bf16.mxu0 0
    %681 = vmatpush1.bf16.msra.mxu0 %v622
    %682 = vmatprep.subr.bf16.mxu0 0
    %683 = vmatpush1.bf16.msra.mxu0 %v623
    %684 = vmatprep.subr.bf16.mxu0 0
    %685 = vmatpush1.bf16.msra.mxu0 %v624
    %686 = vmatprep.subr.bf16.mxu0 0
    %687 = vmatpush1.bf16.msra.mxu0 %v625
    %688 = vmatprep.subr.bf16.mxu0 0
    %689 = vmatpush1.bf16.msra.mxu0 %v626
    %690 = vmatprep.subr.bf16.mxu0 0
    %691 = vmatpush1.bf16.msra.mxu0 %v627
    %692 = vmatprep.subr.bf16.mxu0 0
    %693 = vmatpush1.bf16.msra.mxu0 0
    %694 = vmatprep.subr.bf16.mxu0 0
    %695 = vmatpush1.bf16.msra.mxu0 0
    %696 = vmatprep.subr.bf16.mxu0 0
    %697 = vmatpush1.bf16.msra.mxu0 0
    %698 = vmatprep.subr.bf16.mxu0 0
    %699 = vmatpush1.bf16.msra.mxu0 0
    %700 = vmatprep.subr.bf16.mxu0 0
    %701 = vmatpush1.bf16.msra.mxu0 0
    %702 = vmatprep.subr.bf16.mxu0 0
    %703 = vmatpush1.bf16.msra.mxu0 0
    %704 = vmatprep.subr.bf16.mxu0 0
    %705 = vmatpush1.bf16.msra.mxu0 0
    %706 = vmatprep.subr.bf16.mxu0 0
    %707 = vmatpush1.bf16.msra.mxu0 0
    %708 = vmatprep.mubr.bf16.mxu0 0
    %709 = vmatmul.mubr.bf16.gmra.mrb[0].mxu0 %v660
    %v710 = vpop.f32.mrb[0].mxu0
    %v711 = vadd.f32 0.0, %v710
    %v712 = vpop.f32.mrb[0].mxu0
    %v713 = vpop.f32.mrb[0].mxu0
    %v714 = vadd.f32 0.0, %v713
    %v715 = vpop.f32.mrb[0].mxu0
    %716 = vmatprep.mubr.bf16.mxu0 0
    %717 = vmatmul.mubr.bf16.gmra.mrb[0].mxu0 %v661
    %v718 = vpop.f32.mrb[0].mxu0
    %v719 = vadd.f32 0.0, %v718
    %v720 = vpop.f32.mrb[0].mxu0
    %v721 = vpop.f32.mrb[0].mxu0
    %v722 = vadd.f32 0.0, %v721
    %v723 = vpop.f32.mrb[0].mxu0
    %724 = vmatprep.mubr.bf16.mxu0 0
    %725 = vmatmul.mubr.bf16.gmra.mrb[0].mxu0 %v662
    %v726 = vpop.f32.mrb[0].mxu0
    %v727 = vadd.f32 0.0, %v726
    %v728 = vpop.f32.mrb[0].mxu0
    %v729 = vpop.f32.mrb[0].mxu0
    %v730 = vadd.f32 0.0, %v729
    %v731 = vpop.f32.mrb[0].mxu0
    %732 = vmatprep.mubr.bf16.mxu0 0
    %733 = vmatmul.mubr.bf16.gmra.mrb[0].mxu0 %v663
    %v734 = vpop.f32.mrb[0].mxu0
    %v735 = vadd.f32 0.0, %v734
    %v736 = vpop.f32.mrb[0].mxu0
    %v737 = vpop.f32.mrb[0].mxu0
    %v738 = vadd.f32 0.0, %v737
    %v739 = vpop.f32.mrb[0].mxu0
    %740 = vmatprep.mubr.bf16.mxu0 0
    %741 = vmatmul.mubr.bf16.gmra.mrb[0].mxu0 %v664
    %v742 = vpop.f32.mrb[0].mxu0
    %v743 = vadd.f32 0.0, %v742
    %v744 = vpop.f32.mrb[0].mxu0
    %v745 = vpop.f32.mrb[0].mxu0
    %v746 = vadd.f32 0.0, %v745
    %v747 = vpop.f32.mrb[0].mxu0
    %748 = vmatprep.mubr.bf16.mxu0 0
    %749 = vmatmul.mubr.bf16.gmra.mrb[0].mxu0 %v665
    %v750 = vpop.f32.mrb[0].mxu0
    %v751 = vadd.f32 0.0, %v750
    %v752 = vpop.f32.mrb[0].mxu0
    %v753 = vpop.f32.mrb[0].mxu0
    %v754 = vadd.f32 0.0, %v753
    %v755 = vpop.f32.mrb[0].mxu0
    %756 = vmatprep.mubr.bf16.mxu0 0
    %757 = vmatmul.mubr.bf16.gmra.mrb[0].mxu0 %v666
    %v758 = vpop.f32.mrb[0].mxu0
    %v759 = vadd.f32 0.0, %v758
    %v760 = vpop.f32.mrb[0].mxu0
    %v761 = vpop.f32.mrb[0].mxu0
    %v762 = vadd.f32 0.0, %v761
    %v763 = vpop.f32.mrb[0].mxu0
    %764 = vmatprep.mubr.bf16.mxu0 0
    %765 = vmatmul.mubr.bf16.gmra.mrb[0].mxu0 %v667
    %v766 = vpop.f32.mrb[0].mxu0
    %v767 = vadd.f32 0.0, %v766
    %v768 = vpop.f32.mrb[0].mxu0
    %v769 = vpop.f32.mrb[0].mxu0
    %v770 = vadd.f32 0.0, %v769
    %v771 = vpop.f32.mrb[0].mxu0
    %772 = vdwg.mxu0
    %v773 = vpack.c.bf16 %v714, %v711
    %v774 = vpack.c.bf16 %v722, %v719
    %v775 = vpack.c.bf16 %v730, %v727
    %v776 = vpack.c.bf16 %v738, %v735
    %v777 = vpack.c.bf16 %v746, %v743
    %v778 = vpack.c.bf16 %v754, %v751
    %v779 = vpack.c.bf16 %v762, %v759
    %v780 = vpack.c.bf16 %v770, %v767
    %v781 = vld [vmem:[#allocation11] sm:$0xff]
    %v782 = vld [vmem:[#allocation11 + $0x8] sm:$0xff]
    %v783 = vld [vmem:[#allocation11 + $0x10] sm:$0xff]
    %v784 = vld [vmem:[#allocation11 + $0x18] sm:$0xff]
    %v785 = vld [vmem:[#allocation11 + $0x20] sm:$0xff]
    %v786 = vld [vmem:[#allocation11 + $0x28] sm:$0xff]
    %v787 = vld [vmem:[#allocation11 + $0x30] sm:$0xff]
    %v788 = vld [vmem:[#allocation11 + $0x38] sm:$0xff]
    %v789 = vld [vmem:[#allocation11 + $0x40] sm:$0xff]
    %v790 = vld [vmem:[#allocation11 + $0x48] sm:$0xff]
    %v791 = vld [vmem:[#allocation11 + $0x50] sm:$0xff]
    %v792 = vld [vmem:[#allocation11 + $0x58] sm:$0xff]
    %v793 = vld [vmem:[#allocation11 + $0x60] sm:$0xff]
    %v794 = vld [vmem:[#allocation11 + $0x68] sm:$0xff]
    %v795 = vld [vmem:[#allocation11 + $0x70] sm:$0xff]
    %v796 = vld [vmem:[#allocation11 + $0x78] sm:$0xff]
    %v797 = vpack.c.bf16 %v782, %v781
    %v798 = vpack.c.bf16 %v784, %v783
    %v799 = vpack.c.bf16 %v786, %v785
    %v800 = vpack.c.bf16 %v788, %v787
    %v801 = vpack.c.bf16 %v790, %v789
    %v802 = vpack.c.bf16 %v792, %v791
    %v803 = vpack.c.bf16 %v794, %v793
    %v804 = vpack.c.bf16 %v796, %v795
    %v805 = vld [vmem:[#allocation13] sm:$0x1]
    %v807 = vlaneseq
    %v808 = vshrl.u32 %v807, 7
    %v809 = vsub.s32 0, %v808
    %v810 = vrot.slane %v805, %v809
    %812 = vmatprep.subr.bf16.mxu0 0
    %813 = vmatpush1.bf16.msra.mxu0 %v797
    %814 = vmatprep.subr.bf16.mxu0 0
    %815 = vmatpush1.bf16.msra.mxu0 %v798
    %816 = vmatprep.subr.bf16.mxu0 0
    %817 = vmatpush1.bf16.msra.mxu0 %v799
    %818 = vmatprep.subr.bf16.mxu0 0
    %819 = vmatpush1.bf16.msra.mxu0 %v800
    %820 = vmatprep.subr.bf16.mxu0 0
    %821 = vmatpush1.bf16.msra.mxu0 %v801
    %822 = vmatprep.subr.bf16.mxu0 0
    %823 = vmatpush1.bf16.msra.mxu0 %v802
    %824 = vmatprep.subr.bf16.mxu0 0
    %825 = vmatpush1.bf16.msra.mxu0 %v803
    %826 = vmatprep.subr.bf16.mxu0 0
    %827 = vmatpush1.bf16.msra.mxu0 %v804
    %828 = vmatprep.subr.bf16.mxu0 0
    %829 = vmatpush1.bf16.msra.mxu0 0
    %830 = vmatprep.subr.bf16.mxu0 0
    %831 = vmatpush1.bf16.msra.mxu0 0
    %832 = vmatprep.subr.bf16.mxu0 0
    %833 = vmatpush1.bf16.msra.mxu0 0
    %834 = vmatprep.subr.bf16.mxu0 0
    %835 = vmatpush1.bf16.msra.mxu0 0
    %836 = vmatprep.subr.bf16.mxu0 0
    %837 = vmatpush1.bf16.msra.mxu0 0
    %838 = vmatprep.subr.bf16.mxu0 0
    %839 = vmatpush1.bf16.msra.mxu0 0
    %840 = vmatprep.subr.bf16.mxu0 0
    %841 = vmatpush1.bf16.msra.mxu0 0
    %842 = vmatprep.subr.bf16.mxu0 0
    %843 = vmatpush1.bf16.msra.mxu0 0
    %844 = vmatprep.mubr.bf16.mxu0 0
    %845 = vmatmul.mubr.bf16.gmra.mrb[0].mxu0 %v773
    %v846 = vpop.f32.mrb[0].mxu0
    %v847 = vadd.f32 %v810, %v846
    %v848 = vpop.f32.mrb[0].mxu0
    %v849 = vpop.f32.mrb[0].mxu0
    %v850 = vadd.f32 %v810, %v849
    %v851 = vpop.f32.mrb[0].mxu0
    %852 = vmatprep.mubr.bf16.mxu0 0
    %853 = vmatmul.mubr.bf16.gmra.mrb[0].mxu0 %v774
    %v854 = vpop.f32.mrb[0].mxu0
    %v855 = vadd.f32 %v810, %v854
    %v856 = vpop.f32.mrb[0].mxu0
    %v857 = vpop.f32.mrb[0].mxu0
    %v858 = vadd.f32 %v810, %v857
    %v859 = vpop.f32.mrb[0].mxu0
    %860 = vmatprep.mubr.bf16.mxu0 0
    %861 = vmatmul.mubr.bf16.gmra.mrb[0].mxu0 %v775
    %v862 = vpop.f32.mrb[0].mxu0
    %v863 = vadd.f32 %v810, %v862
    %v864 = vpop.f32.mrb[0].mxu0
    %v865 = vpop.f32.mrb[0].mxu0
    %v866 = vadd.f32 %v810, %v865
    %v867 = vpop.f32.mrb[0].mxu0
    %868 = vmatprep.mubr.bf16.mxu0 0
    %869 = vmatmul.mubr.bf16.gmra.mrb[0].mxu0 %v776
    %v870 = vpop.f32.mrb[0].mxu0
    %v871 = vadd.f32 %v810, %v870
    %v872 = vpop.f32.mrb[0].mxu0
    %v873 = vpop.f32.mrb[0].mxu0
    %v874 = vadd.f32 %v810, %v873
    %v875 = vpop.f32.mrb[0].mxu0
    %876 = vmatprep.mubr.bf16.mxu0 0
    %877 = vmatmul.mubr.bf16.gmra.mrb[0].mxu0 %v777
    %v878 = vpop.f32.mrb[0].mxu0
    %v879 = vadd.f32 %v810, %v878
    %v880 = vpop.f32.mrb[0].mxu0
    %v881 = vpop.f32.mrb[0].mxu0
    %v882 = vadd.f32 %v810, %v881
    %v883 = vpop.f32.mrb[0].mxu0
    %884 = vmatprep.mubr.bf16.mxu0 0
    %885 = vmatmul.mubr.bf16.gmra.mrb[0].mxu0 %v778
    %v886 = vpop.f32.mrb[0].mxu0
    %v887 = vadd.f32 %v810, %v886
    %v888 = vpop.f32.mrb[0].mxu0
    %v889 = vpop.f32.mrb[0].mxu0
    %v890 = vadd.f32 %v810, %v889
    %v891 = vpop.f32.mrb[0].mxu0
    %892 = vmatprep.mubr.bf16.mxu0 0
    %893 = vmatmul.mubr.bf16.gmra.mrb[0].mxu0 %v779
    %v894 = vpop.f32.mrb[0].mxu0
    %v895 = vadd.f32 %v810, %v894
    %v896 = vpop.f32.mrb[0].mxu0
    %v897 = vpop.f32.mrb[0].mxu0
    %v898 = vadd.f32 %v810, %v897
    %v899 = vpop.f32.mrb[0].mxu0
    %900 = vmatprep.mubr.bf16.mxu0 0
    %901 = vmatmul.mubr.bf16.gmra.mrb[0].mxu0 %v780
    %v902 = vpop.f32.mrb[0].mxu0
    %v903 = vadd.f32 %v810, %v902
    %v904 = vpop.f32.mrb[0].mxu0
    %v905 = vpop.f32.mrb[0].mxu0
    %v906 = vadd.f32 %v810, %v905
    %v907 = vpop.f32.mrb[0].mxu0
    %908 = vdwg.mxu0
    %v909 = vtanh.pop %v847
    %v910 = vtanh.pop %v850
    %v911 = vtanh.pop %v855
    %v912 = vtanh.pop %v858
    %v913 = vtanh.pop %v863
    %v914 = vtanh.pop %v866
    %v915 = vtanh.pop %v871
    %v916 = vtanh.pop %v874
    %v917 = vtanh.pop %v879
    %v918 = vtanh.pop %v882
    %v919 = vtanh.pop %v887
    %v920 = vtanh.pop %v890
    %v921 = vtanh.pop %v895
    %v922 = vtanh.pop %v898
    %v923 = vtanh.pop %v903
    %v924 = vtanh.pop %v906
    %v925 = vpack.c.bf16 %v910, %v909
    %v926 = vpack.c.bf16 %v912, %v911
    %v927 = vpack.c.bf16 %v914, %v913
    %v928 = vpack.c.bf16 %v916, %v915
    %v929 = vpack.c.bf16 %v918, %v917
    %v930 = vpack.c.bf16 %v920, %v919
    %v931 = vpack.c.bf16 %v922, %v921
    %v932 = vpack.c.bf16 %v924, %v923
    %933 = vmatprep.subr.bf16.mxu0 0
    %934 = vmatpush1.bf16.msra.mxu0 %v925
    %935 = vmatprep.subr.bf16.mxu0 0
    %936 = vmatpush1.bf16.msra.mxu0 %v926
    %937 = vmatprep.subr.bf16.mxu0 0
    %938 = vmatpush1.bf16.msra.mxu0 %v927
    %939 = vmatprep.subr.bf16.mxu0 0
    %940 = vmatpush1.bf16.msra.mxu0 %v928
    %941 = vmatprep.subr.bf16.mxu0 0
    %942 = vmatpush1.bf16.msra.mxu0 %v929
    %943 = vmatprep.subr.bf16.mxu0 0
    %944 = vmatpush1.bf16.msra.mxu0 %v930
    %945 = vmatprep.subr.bf16.mxu0 0
    %946 = vmatpush1.bf16.msra.mxu0 %v931
    %947 = vmatprep.subr.bf16.mxu0 0
    %948 = vmatpush1.bf16.msra.mxu0 %v932
    %949 = vmatprep.subr.bf16.mxu0 0
    %950 = vmatpush1.bf16.msra.mxu0 0
    %951 = vmatprep.subr.bf16.mxu0 0
    %952 = vmatpush1.bf16.msra.mxu0 0
    %953 = vmatprep.subr.bf16.mxu0 0
    %954 = vmatpush1.bf16.msra.mxu0 0
    %955 = vmatprep.subr.bf16.mxu0 0
    %956 = vmatpush1.bf16.msra.mxu0 0
    %957 = vmatprep.subr.bf16.mxu0 0
    %958 = vmatpush1.bf16.msra.mxu0 0
    %959 = vmatprep.subr.bf16.mxu0 0
    %960 = vmatpush1.bf16.msra.mxu0 0
    %961 = vmatprep.subr.bf16.mxu0 0
    %962 = vmatpush1.bf16.msra.mxu0 0
    %963 = vmatprep.subr.bf16.mxu0 0
    %964 = vmatpush1.bf16.msra.mxu0 0
    %965 = vmatprep.mubr.bf16.mxu0 0
    %966 = vmatmul.mubr.bf16.gmra.mrb[0].mxu0 %v660
    %v967 = vpop.f32.mrb[0].mxu0
    %v968 = vadd.f32 0.0, %v967
    %v969 = vpop.f32.mrb[0].mxu0
    %v970 = vpop.f32.mrb[0].mxu0
    %v971 = vadd.f32 0.0, %v970
    %v972 = vpop.f32.mrb[0].mxu0
    %973 = vmatprep.mubr.bf16.mxu0 0
    %974 = vmatmul.mubr.bf16.gmra.mrb[0].mxu0 %v661
    %v975 = vpop.f32.mrb[0].mxu0
    %v976 = vadd.f32 0.0, %v975
    %v977 = vpop.f32.mrb[0].mxu0
    %v978 = vpop.f32.mrb[0].mxu0
    %v979 = vadd.f32 0.0, %v978
    %v980 = vpop.f32.mrb[0].mxu0
    %981 = vmatprep.mubr.bf16.mxu0 0
    %982 = vmatmul.mubr.bf16.gmra.mrb[0].mxu0 %v662
    %v983 = vpop.f32.mrb[0].mxu0
    %v984 = vadd.f32 0.0, %v983
    %v985 = vpop.f32.mrb[0].mxu0
    %v986 = vpop.f32.mrb[0].mxu0
    %v987 = vadd.f32 0.0, %v986
    %v988 = vpop.f32.mrb[0].mxu0
    %989 = vmatprep.mubr.bf16.mxu0 0
    %990 = vmatmul.mubr.bf16.gmra.mrb[0].mxu0 %v663
    %v991 = vpop.f32.mrb[0].mxu0
    %v992 = vadd.f32 0.0, %v991
    %v993 = vpop.f32.mrb[0].mxu0
    %v994 = vpop.f32.mrb[0].mxu0
    %v995 = vadd.f32 0.0, %v994
    %v996 = vpop.f32.mrb[0].mxu0
    %997 = vmatprep.mubr.bf16.mxu0 0
    %998 = vmatmul.mubr.bf16.gmra.mrb[0].mxu0 %v664
    %v999 = vpop.f32.mrb[0].mxu0
    %v1000 = vadd.f32 0.0, %v999
    %v1001 = vpop.f32.mrb[0].mxu0
    %v1002 = vpop.f32.mrb[0].mxu0
    %v1003 = vadd.f32 0.0, %v1002
    %v1004 = vpop.f32.mrb[0].mxu0
    %1005 = vmatprep.mubr.bf16.mxu0 0
    %1006 = vmatmul.mubr.bf16.gmra.mrb[0].mxu0 %v665
    %v1007 = vpop.f32.mrb[0].mxu0
    %v1008 = vadd.f32 0.0, %v1007
    %v1009 = vpop.f32.mrb[0].mxu0
    %v1010 = vpop.f32.mrb[0].mxu0
    %v1011 = vadd.f32 0.0, %v1010
    %v1012 = vpop.f32.mrb[0].mxu0
    %1013 = vmatprep.mubr.bf16.mxu0 0
    %1014 = vmatmul.mubr.bf16.gmra.mrb[0].mxu0 %v666
    %v1015 = vpop.f32.mrb[0].mxu0
    %v1016 = vadd.f32 0.0, %v1015
    %v1017 = vpop.f32.mrb[0].mxu0
    %v1018 = vpop.f32.mrb[0].mxu0
    %v1019 = vadd.f32 0.0, %v1018
    %v1020 = vpop.f32.mrb[0].mxu0
    %1021 = vmatprep.mubr.bf16.mxu0 0
    %1022 = vmatmul.mubr.bf16.gmra.mrb[0].mxu0 %v667
    %v1023 = vpop.f32.mrb[0].mxu0
    %v1024 = vadd.f32 0.0, %v1023
    %v1025 = vpop.f32.mrb[0].mxu0
    %v1026 = vpop.f32.mrb[0].mxu0
    %v1027 = vadd.f32 0.0, %v1026
    %v1028 = vpop.f32.mrb[0].mxu0
    %1029 = vdwg.mxu0
    %v1030 = vpack.c.bf16 %v971, %v968
    %v1031 = vpack.c.bf16 %v979, %v976
    %v1032 = vpack.c.bf16 %v987, %v984
    %v1033 = vpack.c.bf16 %v995, %v992
    %v1034 = vpack.c.bf16 %v1003, %v1000
    %v1035 = vpack.c.bf16 %v1011, %v1008
    %v1036 = vpack.c.bf16 %v1019, %v1016
    %v1037 = vpack.c.bf16 %v1027, %v1024
    %s1038 = scalar_lea.vmem [#allocation11], 128
    %v1039 = vld [vmem:[%s1038] sm:$0xff]
    %v1040 = vld [vmem:[%s1038 + $0x8] sm:$0xff]
    %v1041 = vld [vmem:[%s1038 + $0x10] sm:$0xff]
    %v1042 = vld [vmem:[%s1038 + $0x18] sm:$0xff]
    %v1043 = vld [vmem:[%s1038 + $0x20] sm:$0xff]
    %v1044 = vld [vmem:[%s1038 + $0x28] sm:$0xff]
    %v1045 = vld [vmem:[%s1038 + $0x30] sm:$0xff]
    %v1046 = vld [vmem:[%s1038 + $0x38] sm:$0xff]
    %v1047 = vld [vmem:[%s1038 + $0x40] sm:$0xff]
    %v1048 = vld [vmem:[%s1038 + $0x48] sm:$0xff]
    %v1049 = vld [vmem:[%s1038 + $0x50] sm:$0xff]
    %v1050 = vld [vmem:[%s1038 + $0x58] sm:$0xff]
    %v1051 = vld [vmem:[%s1038 + $0x60] sm:$0xff]
    %v1052 = vld [vmem:[%s1038 + $0x68] sm:$0xff]
    %v1053 = vld [vmem:[%s1038 + $0x70] sm:$0xff]
    %v1054 = vld [vmem:[%s1038 + $0x78] sm:$0xff]
    %v1055 = vpack.c.bf16 %v1040, %v1039
    %v1056 = vpack.c.bf16 %v1042, %v1041
    %v1057 = vpack.c.bf16 %v1044, %v1043
    %v1058 = vpack.c.bf16 %v1046, %v1045
    %v1059 = vpack.c.bf16 %v1048, %v1047
    %v1060 = vpack.c.bf16 %v1050, %v1049
    %v1061 = vpack.c.bf16 %v1052, %v1051
    %v1062 = vpack.c.bf16 %v1054, %v1053
    %s1063 = scalar_lea.vmem [#allocation13], 1
    %v1064 = vld [vmem:[%s1063] sm:$0x1]
    %v1066 = vlaneseq
    %v1067 = vshrl.u32 %v1066, 7
    %v1068 = vsub.s32 0, %v1067
    %v1069 = vrot.slane %v1064, %v1068
    %1071 = vmatprep.subr.bf16.mxu0 0
    %1072 = vmatpush1.bf16.msra.mxu0 %v1055
    %1073 = vmatprep.subr.bf16.mxu0 0
    %1074 = vmatpush1.bf16.msra.mxu0 %v1056
    %1075 = vmatprep.subr.bf16.mxu0 0
    %1076 = vmatpush1.bf16.msra.mxu0 %v1057
    %1077 = vmatprep.subr.bf16.mxu0 0
    %1078 = vmatpush1.bf16.msra.mxu0 %v1058
    %1079 = vmatprep.subr.bf16.mxu0 0
    %1080 = vmatpush1.bf16.msra.mxu0 %v1059
    %1081 = vmatprep.subr.bf16.mxu0 0
    %1082 = vmatpush1.bf16.msra.mxu0 %v1060
    %1083 = vmatprep.subr.bf16.mxu0 0
    %1084 = vmatpush1.bf16.msra.mxu0 %v1061
    %1085 = vmatprep.subr.bf16.mxu0 0
    %1086 = vmatpush1.bf16.msra.mxu0 %v1062
    %1087 = vmatprep.subr.bf16.mxu0 0
    %1088 = vmatpush1.bf16.msra.mxu0 0
    %1089 = vmatprep.subr.bf16.mxu0 0
    %1090 = vmatpush1.bf16.msra.mxu0 0
    %1091 = vmatprep.subr.bf16.mxu0 0
    %1092 = vmatpush1.bf16.msra.mxu0 0
    %1093 = vmatprep.subr.bf16.mxu0 0
    %1094 = vmatpush1.bf16.msra.mxu0 0
    %1095 = vmatprep.subr.bf16.mxu0 0
    %1096 = vmatpush1.bf16.msra.mxu0 0
    %1097 = vmatprep.subr.bf16.mxu0 0
    %1098 = vmatpush1.bf16.msra.mxu0 0
    %1099 = vmatprep.subr.bf16.mxu0 0
    %1100 = vmatpush1.bf16.msra.mxu0 0
    %1101 = vmatprep.subr.bf16.mxu0 0
    %1102 = vmatpush1.bf16.msra.mxu0 0
    %1103 = vmatprep.mubr.bf16.mxu0 0
    %1104 = vmatmul.mubr.bf16.gmra.mrb[0].mxu0 %v1030
    %v1105 = vpop.f32.mrb[0].mxu0
    %v1106 = vadd.f32 %v1069, %v1105
    %v1107 = vpop.f32.mrb[0].mxu0
    %v1108 = vpop.f32.mrb[0].mxu0
    %v1109 = vadd.f32 %v1069, %v1108
    %v1110 = vpop.f32.mrb[0].mxu0
    %1111 = vmatprep.mubr.bf16.mxu0 0
    %1112 = vmatmul.mubr.bf16.gmra.mrb[0].mxu0 %v1031
    %v1113 = vpop.f32.mrb[0].mxu0
    %v1114 = vadd.f32 %v1069, %v1113
    %v1115 = vpop.f32.mrb[0].mxu0
    %v1116 = vpop.f32.mrb[0].mxu0
    %v1117 = vadd.f32 %v1069, %v1116
    %v1118 = vpop.f32.mrb[0].mxu0
    %1119 = vmatprep.mubr.bf16.mxu0 0
    %1120 = vmatmul.mubr.bf16.gmra.mrb[0].mxu0 %v1032
    %v1121 = vpop.f32.mrb[0].mxu0
    %v1122 = vadd.f32 %v1069, %v1121
    %v1123 = vpop.f32.mrb[0].mxu0
    %v1124 = vpop.f32.mrb[0].mxu0
    %v1125 = vadd.f32 %v1069, %v1124
    %v1126 = vpop.f32.mrb[0].mxu0
    %1127 = vmatprep.mubr.bf16.mxu0 0
    %1128 = vmatmul.mubr.bf16.gmra.mrb[0].mxu0 %v1033
    %v1129 = vpop.f32.mrb[0].mxu0
    %v1130 = vadd.f32 %v1069, %v1129
    %v1131 = vpop.f32.mrb[0].mxu0
    %v1132 = vpop.f32.mrb[0].mxu0
    %v1133 = vadd.f32 %v1069, %v1132
    %v1134 = vpop.f32.mrb[0].mxu0
    %1135 = vmatprep.mubr.bf16.mxu0 0
    %1136 = vmatmul.mubr.bf16.gmra.mrb[0].mxu0 %v1034
    %v1137 = vpop.f32.mrb[0].mxu0
    %v1138 = vadd.f32 %v1069, %v1137
    %v1139 = vpop.f32.mrb[0].mxu0
    %v1140 = vpop.f32.mrb[0].mxu0
    %v1141 = vadd.f32 %v1069, %v1140
    %v1142 = vpop.f32.mrb[0].mxu0
    %1143 = vmatprep.mubr.bf16.mxu0 0
    %1144 = vmatmul.mubr.bf16.gmra.mrb[0].mxu0 %v1035
    %v1145 = vpop.f32.mrb[0].mxu0
    %v1146 = vadd.f32 %v1069, %v1145
    %v1147 = vpop.f32.mrb[0].mxu0
    %v1148 = vpop.f32.mrb[0].mxu0
    %v1149 = vadd.f32 %v1069, %v1148
    %v1150 = vpop.f32.mrb[0].mxu0
    %1151 = vmatprep.mubr.bf16.mxu0 0
    %1152 = vmatmul.mubr.bf16.gmra.mrb[0].mxu0 %v1036
    %v1153 = vpop.f32.mrb[0].mxu0
    %v1154 = vadd.f32 %v1069, %v1153
    %v1155 = vpop.f32.mrb[0].mxu0
    %v1156 = vpop.f32.mrb[0].mxu0
    %v1157 = vadd.f32 %v1069, %v1156
    %v1158 = vpop.f32.mrb[0].mxu0
    %1159 = vmatprep.mubr.bf16.mxu0 0
    %1160 = vmatmul.mubr.bf16.gmra.mrb[0].mxu0 %v1037
    %v1161 = vpop.f32.mrb[0].mxu0
    %v1162 = vadd.f32 %v1069, %v1161
    %v1163 = vpop.f32.mrb[0].mxu0
    %v1164 = vpop.f32.mrb[0].mxu0
    %v1165 = vadd.f32 %v1069, %v1164
    %v1166 = vpop.f32.mrb[0].mxu0
    %1167 = vdwg.mxu0
    %v1168 = vtanh.pop %v1106
    %v1169 = vtanh.pop %v1109
    %v1170 = vtanh.pop %v1114
    %v1171 = vtanh.pop %v1117
    %v1172 = vtanh.pop %v1122
    %v1173 = vtanh.pop %v1125
    %v1174 = vtanh.pop %v1130
    %v1175 = vtanh.pop %v1133
    %v1176 = vtanh.pop %v1138
    %v1177 = vtanh.pop %v1141
    %v1178 = vtanh.pop %v1146
    %v1179 = vtanh.pop %v1149
    %v1180 = vtanh.pop %v1154
    %v1181 = vtanh.pop %v1157
    %v1182 = vtanh.pop %v1162
    %v1183 = vtanh.pop %v1165
    %v1184 = vadd.f32 %v1168, %v604
    %v1185 = vadd.f32 %v1169, %v605
    %v1186 = vadd.f32 %v1170, %v606
    %v1187 = vadd.f32 %v1171, %v607
    %v1188 = vadd.f32 %v1172, %v608
    %v1189 = vadd.f32 %v1173, %v609
    %v1190 = vadd.f32 %v1174, %v610
    %v1191 = vadd.f32 %v1175, %v611
    %v1192 = vadd.f32 %v1176, %v612
    %v1193 = vadd.f32 %v1177, %v613
    %v1194 = vadd.f32 %v1178, %v614
    %v1195 = vadd.f32 %v1179, %v615
    %v1196 = vadd.f32 %v1180, %v616
    %v1197 = vadd.f32 %v1181, %v617
    %v1198 = vadd.f32 %v1182, %v618
    %v1199 = vadd.f32 %v1183, %v619
    %v1200 = vpack.c.bf16 %v1185, %v1184
    %v1201 = vpack.c.bf16 %v1187, %v1186
    %v1202 = vpack.c.bf16 %v1189, %v1188
    %v1203 = vpack.c.bf16 %v1191, %v1190
    %v1204 = vpack.c.bf16 %v1193, %v1192
    %v1205 = vpack.c.bf16 %v1195, %v1194
    %v1206 = vpack.c.bf16 %v1197, %v1196
    %v1207 = vpack.c.bf16 %v1199, %v1198
    %v1208 = vld [vmem:[#allocation14] sm:$0xff]
    %v1209 = vld [vmem:[#allocation14 + $0x8] sm:$0xff]
    %v1210 = vld [vmem:[#allocation14 + $0x10] sm:$0xff]
    %v1211 = vld [vmem:[#allocation14 + $0x18] sm:$0xff]
    %v1212 = vld [vmem:[#allocation14 + $0x20] sm:$0xff]
    %v1213 = vld [vmem:[#allocation14 + $0x28] sm:$0xff]
    %v1214 = vld [vmem:[#allocation14 + $0x30] sm:$0xff]
    %v1215 = vld [vmem:[#allocation14 + $0x38] sm:$0xff]
    %v1216 = vld [vmem:[#allocation14 + $0x40] sm:$0xff]
    %v1217 = vld [vmem:[#allocation14 + $0x48] sm:$0xff]
    %v1218 = vld [vmem:[#allocation14 + $0x50] sm:$0xff]
    %v1219 = vld [vmem:[#allocation14 + $0x58] sm:$0xff]
    %v1220 = vld [vmem:[#allocation14 + $0x60] sm:$0xff]
    %v1221 = vld [vmem:[#allocation14 + $0x68] sm:$0xff]
    %v1222 = vld [vmem:[#allocation14 + $0x70] sm:$0xff]
    %v1223 = vld [vmem:[#allocation14 + $0x78] sm:$0xff]
    %v1224 = vpack.c.bf16 %v1209, %v1208
    %v1225 = vpack.c.bf16 %v1211, %v1210
    %v1226 = vpack.c.bf16 %v1213, %v1212
    %v1227 = vpack.c.bf16 %v1215, %v1214
    %v1228 = vpack.c.bf16 %v1217, %v1216
    %v1229 = vpack.c.bf16 %v1219, %v1218
    %v1230 = vpack.c.bf16 %v1221, %v1220
    %v1231 = vpack.c.bf16 %v1223, %v1222
    %1232 = vmatprep.subr.bf16.mxu0 0
    %1233 = vmatpush1.bf16.msra.mxu0 %v1224
    %1234 = vmatprep.subr.bf16.mxu0 0
    %1235 = vmatpush1.bf16.msra.mxu0 %v1225
    %1236 = vmatprep.subr.bf16.mxu0 0
    %1237 = vmatpush1.bf16.msra.mxu0 %v1226
    %1238 = vmatprep.subr.bf16.mxu0 0
    %1239 = vmatpush1.bf16.msra.mxu0 %v1227
    %1240 = vmatprep.subr.bf16.mxu0 0
    %1241 = vmatpush1.bf16.msra.mxu0 %v1228
    %1242 = vmatprep.subr.bf16.mxu0 0
    %1243 = vmatpush1.bf16.msra.mxu0 %v1229
    %1244 = vmatprep.subr.bf16.mxu0 0
    %1245 = vmatpush1.bf16.msra.mxu0 %v1230
    %1246 = vmatprep.subr.bf16.mxu0 0
    %1247 = vmatpush1.bf16.msra.mxu0 %v1231
    %1248 = vmatprep.subr.bf16.mxu0 0
    %1249 = vmatpush1.bf16.msra.mxu0 0
    %1250 = vmatprep.subr.bf16.mxu0 0
    %1251 = vmatpush1.bf16.msra.mxu0 0
    %1252 = vmatprep.subr.bf16.mxu0 0
    %1253 = vmatpush1.bf16.msra.mxu0 0
    %1254 = vmatprep.subr.bf16.mxu0 0
    %1255 = vmatpush1.bf16.msra.mxu0 0
    %1256 = vmatprep.subr.bf16.mxu0 0
    %1257 = vmatpush1.bf16.msra.mxu0 0
    %1258 = vmatprep.subr.bf16.mxu0 0
    %1259 = vmatpush1.bf16.msra.mxu0 0
    %1260 = vmatprep.subr.bf16.mxu0 0
    %1261 = vmatpush1.bf16.msra.mxu0 0
    %1262 = vmatprep.subr.bf16.mxu0 0
    %1263 = vmatpush1.bf16.msra.mxu0 0
    %1264 = vmatprep.mubr.bf16.mxu0 0
    %1265 = vmatmul.mubr.bf16.gmra.mrb[0].mxu0 %v1200
    %v1266 = vpop.f32.mrb[0].mxu0
    %v1267 = vadd.f32 0.0, %v1266
    %v1268 = vpop.f32.mrb[0].mxu0
    %v1269 = vpop.f32.mrb[0].mxu0
    %v1270 = vadd.f32 0.0, %v1269
    %v1271 = vpop.f32.mrb[0].mxu0
    %1272 = vmatprep.mubr.bf16.mxu0 0
    %1273 = vmatmul.mubr.bf16.gmra.mrb[0].mxu0 %v1201
    %v1274 = vpop.f32.mrb[0].mxu0
    %v1275 = vadd.f32 0.0, %v1274
    %v1276 = vpop.f32.mrb[0].mxu0
    %v1277 = vpop.f32.mrb[0].mxu0
    %v1278 = vadd.f32 0.0, %v1277
    %v1279 = vpop.f32.mrb[0].mxu0
    %1280 = vmatprep.mubr.bf16.mxu0 0
    %1281 = vmatmul.mubr.bf16.gmra.mrb[0].mxu0 %v1202
    %v1282 = vpop.f32.mrb[0].mxu0
    %v1283 = vadd.f32 0.0, %v1282
    %v1284 = vpop.f32.mrb[0].mxu0
    %v1285 = vpop.f32.mrb[0].mxu0
    %v1286 = vadd.f32 0.0, %v1285
    %v1287 = vpop.f32.mrb[0].mxu0
    %1288 = vmatprep.mubr.bf16.mxu0 0
    %1289 = vmatmul.mubr.bf16.gmra.mrb[0].mxu0 %v1203
    %v1290 = vpop.f32.mrb[0].mxu0
    %v1291 = vadd.f32 0.0, %v1290
    %v1292 = vpop.f32.mrb[0].mxu0
    %v1293 = vpop.f32.mrb[0].mxu0
    %v1294 = vadd.f32 0.0, %v1293
    %v1295 = vpop.f32.mrb[0].mxu0
    %1296 = vmatprep.mubr.bf16.mxu0 0
    %1297 = vmatmul.mubr.bf16.gmra.mrb[0].mxu0 %v1204
    %v1298 = vpop.f32.mrb[0].mxu0
    %v1299 = vadd.f32 0.0, %v1298
    %v1300 = vpop.f32.mrb[0].mxu0
    %v1301 = vpop.f32.mrb[0].mxu0
    %v1302 = vadd.f32 0.0, %v1301
    %v1303 = vpop.f32.mrb[0].mxu0
    %1304 = vmatprep.mubr.bf16.mxu0 0
    %1305 = vmatmul.mubr.bf16.gmra.mrb[0].mxu0 %v1205
    %v1306 = vpop.f32.mrb[0].mxu0
    %v1307 = vadd.f32 0.0, %v1306
    %v1308 = vpop.f32.mrb[0].mxu0
    %v1309 = vpop.f32.mrb[0].mxu0
    %v1310 = vadd.f32 0.0, %v1309
    %v1311 = vpop.f32.mrb[0].mxu0
    %1312 = vmatprep.mubr.bf16.mxu0 0
    %1313 = vmatmul.mubr.bf16.gmra.mrb[0].mxu0 %v1206
    %v1314 = vpop.f32.mrb[0].mxu0
    %v1315 = vadd.f32 0.0, %v1314
    %v1316 = vpop.f32.mrb[0].mxu0
    %v1317 = vpop.f32.mrb[0].mxu0
    %v1318 = vadd.f32 0.0, %v1317
    %v1319 = vpop.f32.mrb[0].mxu0
    %1320 = vmatprep.mubr.bf16.mxu0 0
    %1321 = vmatmul.mubr.bf16.gmra.mrb[0].mxu0 %v1207
    %v1322 = vpop.f32.mrb[0].mxu0
    %v1323 = vadd.f32 0.0, %v1322
    %v1324 = vpop.f32.mrb[0].mxu0
    %v1325 = vpop.f32.mrb[0].mxu0
    %v1326 = vadd.f32 0.0, %v1325
    %v1327 = vpop.f32.mrb[0].mxu0
    %1328 = vdwg.mxu0
    %v1329 = vpack.c.bf16 %v1270, %v1267
    %v1330 = vpack.c.bf16 %v1278, %v1275
    %v1331 = vpack.c.bf16 %v1286, %v1283
    %v1332 = vpack.c.bf16 %v1294, %v1291
    %v1333 = vpack.c.bf16 %v1302, %v1299
    %v1334 = vpack.c.bf16 %v1310, %v1307
    %v1335 = vpack.c.bf16 %v1318, %v1315
    %v1336 = vpack.c.bf16 %v1326, %v1323
    %v1337 = vld [vmem:[#allocation16] sm:$0x1]
    %v1339 = vlaneseq
    %v1340 = vshrl.u32 %v1339, 7
    %v1341 = vsub.s32 0, %v1340
    %v1342 = vrot.slane %v1337, %v1341
    %v1344 = vmul.f32 %v1267, %v1342
    %v1345 = vmul.f32 %v1270, %v1342
    %v1346 = vmul.f32 %v1275, %v1342
    %v1347 = vmul.f32 %v1278, %v1342
    %v1348 = vmul.f32 %v1283, %v1342
    %v1349 = vmul.f32 %v1286, %v1342
    %v1350 = vmul.f32 %v1291, %v1342
    %v1351 = vmul.f32 %v1294, %v1342
    %v1352 = vmul.f32 %v1299, %v1342
    %v1353 = vmul.f32 %v1302, %v1342
    %v1354 = vmul.f32 %v1307, %v1342
    %v1355 = vmul.f32 %v1310, %v1342
    %v1356 = vmul.f32 %v1315, %v1342
    %v1357 = vmul.f32 %v1318, %v1342
    %v1358 = vmul.f32 %v1323, %v1342
    %v1359 = vmul.f32 %v1326, %v1342
    %1360 = vadd.xlane.f32.xlu0 %v1344
    %v1361 = vpop.xlane.xlu0 %1360
    %1362 = vadd.xlane.f32.xlu0 %v1345
    %v1363 = vpop.xlane.xlu0 %1362
    %1364 = vadd.xlane.f32.xlu0 %v1346
    %v1365 = vpop.xlane.xlu0 %1364
    %1366 = vadd.xlane.f32.xlu0 %v1347
    %v1367 = vpop.xlane.xlu0 %1366
    %1368 = vadd.xlane.f32.xlu0 %v1348
    %v1369 = vpop.xlane.xlu0 %1368
    %1370 = vadd.xlane.f32.xlu0 %v1349
    %v1371 = vpop.xlane.xlu0 %1370
    %1372 = vadd.xlane.f32.xlu0 %v1350
    %v1373 = vpop.xlane.xlu0 %1372
    %1374 = vadd.xlane.f32.xlu0 %v1351
    %v1375 = vpop.xlane.xlu0 %1374
    %1376 = vadd.xlane.f32.xlu0 %v1352
    %v1377 = vpop.xlane.xlu0 %1376
    %1378 = vadd.xlane.f32.xlu0 %v1353
    %v1379 = vpop.xlane.xlu0 %1378
    %1380 = vadd.xlane.f32.xlu0 %v1354
    %v1381 = vpop.xlane.xlu0 %1380
    %1382 = vadd.xlane.f32.xlu0 %v1355
    %v1383 = vpop.xlane.xlu0 %1382
    %1384 = vadd.xlane.f32.xlu0 %v1356
    %v1385 = vpop.xlane.xlu0 %1384
    %1386 = vadd.xlane.f32.xlu0 %v1357
    %v1387 = vpop.xlane.xlu0 %1386
    %1388 = vadd.xlane.f32.xlu0 %v1358
    %v1389 = vpop.xlane.xlu0 %1388
    %1390 = vadd.xlane.f32.xlu0 %v1359
    %v1391 = vpop.xlane.xlu0 %1390
    %v1392 = vld [vmem:[#allocation17] sm:$0x1]
    %v1393 = vpack.c.bf16 %v1392, %v1392
    %1394 = vmatprep.subr.bf16.mxu0 0
    %1395 = vmatpush1.bf16.xpose.msra.mxu0 %v1329
    %1396 = vmatprep.subr.bf16.mxu0 0
    %1397 = vmatpush1.bf16.xpose.msra.mxu0 %v1330
    %1398 = vmatprep.subr.bf16.mxu0 0
    %1399 = vmatpush1.bf16.xpose.msra.mxu0 %v1331
    %1400 = vmatprep.subr.bf16.mxu0 0
    %1401 = vmatpush1.bf16.xpose.msra.mxu0 %v1332
    %1402 = vmatprep.subr.bf16.mxu0 0
    %1403 = vmatpush1.bf16.xpose.msra.mxu0 %v1333
    %1404 = vmatprep.subr.bf16.mxu0 0
    %1405 = vmatpush1.bf16.xpose.msra.mxu0 %v1334
    %1406 = vmatprep.subr.bf16.mxu0 0
    %1407 = vmatpush1.bf16.xpose.msra.mxu0 %v1335
    %1408 = vmatprep.subr.bf16.mxu0 0
    %1409 = vmatpush1.bf16.xpose.msra.mxu0 %v1336
    %1410 = vmatprep.subr.bf16.mxu0 0
    %1411 = vmatpush1.bf16.xpose.msra.mxu0 0
    %1412 = vmatprep.subr.bf16.mxu0 0
    %1413 = vmatpush1.bf16.xpose.msra.mxu0 0
    %1414 = vmatprep.subr.bf16.mxu0 0
    %1415 = vmatpush1.bf16.xpose.msra.mxu0 0
    %1416 = vmatprep.subr.bf16.mxu0 0
    %1417 = vmatpush1.bf16.xpose.msra.mxu0 0
    %1418 = vmatprep.subr.bf16.mxu0 0
    %1419 = vmatpush1.bf16.xpose.msra.mxu0 0
    %1420 = vmatprep.subr.bf16.mxu0 0
    %1421 = vmatpush1.bf16.xpose.msra.mxu0 0
    %1422 = vmatprep.subr.bf16.mxu0 0
    %1423 = vmatpush1.bf16.xpose.msra.mxu0 0
    %1424 = vmatprep.subr.bf16.mxu0 0
    %1425 = vmatpush1.bf16.xpose.msra.mxu0 0
    %1426 = vmatprep.mubr.bf16.mxu0 0
    %1427 = vmatmul.mubr.bf16.gmra.mrb[0].mxu0 %v1393
    %v1428 = vpop.f32.mrb[0].mxu0
    %v1429 = vadd.f32 0.0, %v1428
    %v1430 = vpop.f32.mrb[0].mxu0
    %v1431 = vpop.f32.mrb[0].mxu0
    %v1432 = vpop.f32.mrb[0].mxu0
    %1433 = vdwg.mxu0
    %v1434 = vlaneseq
    %v1435 = vshrl.u32 %v1434, 7
    %v1436 = vsub.s32 0, %v1435
    %v1437 = vrot.slane %v1429, %v1436
    %v1438 = vadd.f32 %v1361, %v1437
    %v1439 = vadd.f32 %v1363, %v1437
    %v1440 = vadd.f32 %v1365, %v1437
    %v1441 = vadd.f32 %v1367, %v1437
    %v1442 = vadd.f32 %v1369, %v1437
    %v1443 = vadd.f32 %v1371, %v1437
    %v1444 = vadd.f32 %v1373, %v1437
    %v1445 = vadd.f32 %v1375, %v1437
    %v1446 = vadd.f32 %v1377, %v1437
    %v1447 = vadd.f32 %v1379, %v1437
    %v1448 = vadd.f32 %v1381, %v1437
    %v1449 = vadd.f32 %v1383, %v1437
    %v1450 = vadd.f32 %v1385, %v1437
    %v1451 = vadd.f32 %v1387, %v1437
    %v1452 = vadd.f32 %v1389, %v1437
    %v1453 = vadd.f32 %v1391, %v1437
    %vm1454 = vcmp.gt.f32.partialorder %v1438, 0.0
    %vm1455 = vcmp.gt.f32.partialorder %v1439, 0.0
    %vm1456 = vcmp.gt.f32.partialorder %v1440, 0.0
    %vm1457 = vcmp.gt.f32.partialorder %v1441, 0.0
    %vm1458 = vcmp.gt.f32.partialorder %v1442, 0.0
    %vm1459 = vcmp.gt.f32.partialorder %v1443, 0.0
    %vm1460 = vcmp.gt.f32.partialorder %v1444, 0.0
    %vm1461 = vcmp.gt.f32.partialorder %v1445, 0.0
    %vm1462 = vcmp.gt.f32.partialorder %v1446, 0.0
    %vm1463 = vcmp.gt.f32.partialorder %v1447, 0.0
    %vm1464 = vcmp.gt.f32.partialorder %v1448, 0.0
    %vm1465 = vcmp.gt.f32.partialorder %v1449, 0.0
    %vm1466 = vcmp.gt.f32.partialorder %v1450, 0.0
    %vm1467 = vcmp.gt.f32.partialorder %v1451, 0.0
    %vm1468 = vcmp.gt.f32.partialorder %v1452, 0.0
    %vm1469 = vcmp.gt.f32.partialorder %v1453, 0.0
    %v1470 = vmul.f32 %v1438, 0.2
    %v1471 = vmul.f32 %v1439, 0.2
    %v1472 = vmul.f32 %v1440, 0.2
    %v1473 = vmul.f32 %v1441, 0.2
    %v1474 = vmul.f32 %v1442, 0.2
    %v1475 = vmul.f32 %v1443, 0.2
    %v1476 = vmul.f32 %v1444, 0.2
    %v1477 = vmul.f32 %v1445, 0.2
    %v1478 = vmul.f32 %v1446, 0.2
    %v1479 = vmul.f32 %v1447, 0.2
    %v1480 = vmul.f32 %v1448, 0.2
    %v1481 = vmul.f32 %v1449, 0.2
    %v1482 = vmul.f32 %v1450, 0.2
    %v1483 = vmul.f32 %v1451, 0.2
    %v1484 = vmul.f32 %v1452, 0.2
    %v1485 = vmul.f32 %v1453, 0.2
    %v1486 = vsel %vm1454, %v1438, %v1470
    %v1487 = vsel %vm1455, %v1439, %v1471
    %v1488 = vsel %vm1456, %v1440, %v1472
    %v1489 = vsel %vm1457, %v1441, %v1473
    %v1490 = vsel %vm1458, %v1442, %v1474
    %v1491 = vsel %vm1459, %v1443, %v1475
    %v1492 = vsel %vm1460, %v1444, %v1476
    %v1493 = vsel %vm1461, %v1445, %v1477
    %v1494 = vsel %vm1462, %v1446, %v1478
    %v1495 = vsel %vm1463, %v1447, %v1479
    %v1496 = vsel %vm1464, %v1448, %v1480
    %v1497 = vsel %vm1465, %v1449, %v1481
    %v1498 = vsel %vm1466, %v1450, %v1482
    %v1499 = vsel %vm1467, %v1451, %v1483
    %v1500 = vsel %vm1468, %v1452, %v1484
    %v1501 = vsel %vm1469, %v1453, %v1485
    %v1502 = vadd.f32 %v1486, %v366
    %v1503 = vadd.f32 %v1487, %v367
    %v1504 = vadd.f32 %v1488, %v368
    %v1505 = vadd.f32 %v1489, %v369
    %v1506 = vadd.f32 %v1490, %v370
    %v1507 = vadd.f32 %v1491, %v371
    %v1508 = vadd.f32 %v1492, %v372
    %v1509 = vadd.f32 %v1493, %v373
    %v1510 = vadd.f32 %v1494, %v374
    %v1511 = vadd.f32 %v1495, %v375
    %v1512 = vadd.f32 %v1496, %v376
    %v1513 = vadd.f32 %v1497, %v377
    %v1514 = vadd.f32 %v1498, %v378
    %v1515 = vadd.f32 %v1499, %v379
    %v1516 = vadd.f32 %v1500, %v380
    %v1517 = vadd.f32 %v1501, %v381
    %1518 = vmax.xlane.f32.xlu0 %v1502
    %v1519 = vpop.xlane.xlu0 %1518
    %1520 = vmax.xlane.f32.xlu0 %v1503
    %v1521 = vpop.xlane.xlu0 %1520
    %1522 = vmax.xlane.f32.xlu0 %v1504
    %v1523 = vpop.xlane.xlu0 %1522
    %1524 = vmax.xlane.f32.xlu0 %v1505
    %v1525 = vpop.xlane.xlu0 %1524
    %1526 = vmax.xlane.f32.xlu0 %v1506
    %v1527 = vpop.xlane.xlu0 %1526
    %1528 = vmax.xlane.f32.xlu0 %v1507
    %v1529 = vpop.xlane.xlu0 %1528
    %1530 = vmax.xlane.f32.xlu0 %v1508
    %v1531 = vpop.xlane.xlu0 %1530
    %1532 = vmax.xlane.f32.xlu0 %v1509
    %v1533 = vpop.xlane.xlu0 %1532
    %1534 = vmax.xlane.f32.xlu0 %v1510
    %v1535 = vpop.xlane.xlu0 %1534
    %1536 = vmax.xlane.f32.xlu0 %v1511
    %v1537 = vpop.xlane.xlu0 %1536
    %1538 = vmax.xlane.f32.xlu0 %v1512
    %v1539 = vpop.xlane.xlu0 %1538
    %1540 = vmax.xlane.f32.xlu0 %v1513
    %v1541 = vpop.xlane.xlu0 %1540
    %1542 = vmax.xlane.f32.xlu0 %v1514
    %v1543 = vpop.xlane.xlu0 %1542
    %1544 = vmax.xlane.f32.xlu0 %v1515
    %v1545 = vpop.xlane.xlu0 %1544
    %1546 = vmax.xlane.f32.xlu0 %v1516
    %v1547 = vpop.xlane.xlu0 %1546
    %1548 = vmax.xlane.f32.xlu0 %v1517
    %v1549 = vpop.xlane.xlu0 %1548
    %v1550 = vsub.f32 %v1502, %v1519
    %v1551 = vsub.f32 %v1503, %v1521
    %v1552 = vsub.f32 %v1504, %v1523
    %v1553 = vsub.f32 %v1505, %v1525
    %v1554 = vsub.f32 %v1506, %v1527
    %v1555 = vsub.f32 %v1507, %v1529
    %v1556 = vsub.f32 %v1508, %v1531
    %v1557 = vsub.f32 %v1509, %v1533
    %v1558 = vsub.f32 %v1510, %v1535
    %v1559 = vsub.f32 %v1511, %v1537
    %v1560 = vsub.f32 %v1512, %v1539
    %v1561 = vsub.f32 %v1513, %v1541
    %v1562 = vsub.f32 %v1514, %v1543
    %v1563 = vsub.f32 %v1515, %v1545
    %v1564 = vsub.f32 %v1516, %v1547
    %v1565 = vsub.f32 %v1517, %v1549
    %v1566 = vmul.f32 %v1550, 1.442695
    %v1567 = vpow.pop %v1566
    %v1568 = vmul.f32 %v1551, 1.442695
    %v1569 = vpow.pop %v1568
    %v1570 = vmul.f32 %v1552, 1.442695
    %v1571 = vpow.pop %v1570
    %v1572 = vmul.f32 %v1553, 1.442695
    %v1573 = vpow.pop %v1572
    %v1574 = vmul.f32 %v1554, 1.442695
    %v1575 = vpow.pop %v1574
    %v1576 = vmul.f32 %v1555, 1.442695
    %v1577 = vpow.pop %v1576
    %v1578 = vmul.f32 %v1556, 1.442695
    %v1579 = vpow.pop %v1578
    %v1580 = vmul.f32 %v1557, 1.442695
    %v1581 = vpow.pop %v1580
    %v1582 = vmul.f32 %v1558, 1.442695
    %v1583 = vpow.pop %v1582
    %v1584 = vmul.f32 %v1559, 1.442695
    %v1585 = vpow.pop %v1584
    %v1586 = vmul.f32 %v1560, 1.442695
    %v1587 = vpow.pop %v1586
    %v1588 = vmul.f32 %v1561, 1.442695
    %v1589 = vpow.pop %v1588
    %v1590 = vmul.f32 %v1562, 1.442695
    %v1591 = vpow.pop %v1590
    %v1592 = vmul.f32 %v1563, 1.442695
    %v1593 = vpow.pop %v1592
    %v1594 = vmul.f32 %v1564, 1.442695
    %v1595 = vpow.pop %v1594
    %v1596 = vmul.f32 %v1565, 1.442695
    %v1597 = vpow.pop %v1596
    %v1598 = vmul.f32 %v1567, %v334
    %v1599 = vmul.f32 %v1569, %v335
    %v1600 = vmul.f32 %v1571, %v336
    %v1601 = vmul.f32 %v1573, %v337
    %v1602 = vmul.f32 %v1575, %v338
    %v1603 = vmul.f32 %v1577, %v339
    %v1604 = vmul.f32 %v1579, %v340
    %v1605 = vmul.f32 %v1581, %v341
    %v1606 = vmul.f32 %v1583, %v342
    %v1607 = vmul.f32 %v1585, %v343
    %v1608 = vmul.f32 %v1587, %v344
    %v1609 = vmul.f32 %v1589, %v345
    %v1610 = vmul.f32 %v1591, %v346
    %v1611 = vmul.f32 %v1593, %v347
    %v1612 = vmul.f32 %v1595, %v348
    %v1613 = vmul.f32 %v1597, %v349
    %1614 = vadd.xlane.f32.xlu0 %v1598
    %v1615 = vpop.xlane.xlu0 %1614
    %1616 = vadd.xlane.f32.xlu0 %v1599
    %v1617 = vpop.xlane.xlu0 %1616
    %1618 = vadd.xlane.f32.xlu0 %v1600
    %v1619 = vpop.xlane.xlu0 %1618
    %1620 = vadd.xlane.f32.xlu0 %v1601
    %v1621 = vpop.xlane.xlu0 %1620
    %1622 = vadd.xlane.f32.xlu0 %v1602
    %v1623 = vpop.xlane.xlu0 %1622
    %1624 = vadd.xlane.f32.xlu0 %v1603
    %v1625 = vpop.xlane.xlu0 %1624
    %1626 = vadd.xlane.f32.xlu0 %v1604
    %v1627 = vpop.xlane.xlu0 %1626
    %1628 = vadd.xlane.f32.xlu0 %v1605
    %v1629 = vpop.xlane.xlu0 %1628
    %1630 = vadd.xlane.f32.xlu0 %v1606
    %v1631 = vpop.xlane.xlu0 %1630
    %1632 = vadd.xlane.f32.xlu0 %v1607
    %v1633 = vpop.xlane.xlu0 %1632
    %1634 = vadd.xlane.f32.xlu0 %v1608
    %v1635 = vpop.xlane.xlu0 %1634
    %1636 = vadd.xlane.f32.xlu0 %v1609
    %v1637 = vpop.xlane.xlu0 %1636
    %1638 = vadd.xlane.f32.xlu0 %v1610
    %v1639 = vpop.xlane.xlu0 %1638
    %1640 = vadd.xlane.f32.xlu0 %v1611
    %v1641 = vpop.xlane.xlu0 %1640
    %1642 = vadd.xlane.f32.xlu0 %v1612
    %v1643 = vpop.xlane.xlu0 %1642
    %1644 = vadd.xlane.f32.xlu0 %v1613
    %v1645 = vpop.xlane.xlu0 %1644
    %v1646 = vmax.f32 %v1615, 1e-20
    %v1647 = vmax.f32 %v1617, 1e-20
    %v1648 = vmax.f32 %v1619, 1e-20
    %v1649 = vmax.f32 %v1621, 1e-20
    %v1650 = vmax.f32 %v1623, 1e-20
    %v1651 = vmax.f32 %v1625, 1e-20
    %v1652 = vmax.f32 %v1627, 1e-20
    %v1653 = vmax.f32 %v1629, 1e-20
    %v1654 = vmax.f32 %v1631, 1e-20
    %v1655 = vmax.f32 %v1633, 1e-20
    %v1656 = vmax.f32 %v1635, 1e-20
    %v1657 = vmax.f32 %v1637, 1e-20
    %v1658 = vmax.f32 %v1639, 1e-20
    %v1659 = vmax.f32 %v1641, 1e-20
    %v1660 = vmax.f32 %v1643, 1e-20
    %v1661 = vmax.f32 %v1645, 1e-20
    %v1662 = vrcp.pop %v1646
    %v1663 = vrcp.pop %v1647
    %v1664 = vrcp.pop %v1648
    %v1665 = vrcp.pop %v1649
    %v1666 = vrcp.pop %v1650
    %v1667 = vrcp.pop %v1651
    %v1668 = vrcp.pop %v1652
    %v1669 = vrcp.pop %v1653
    %v1670 = vrcp.pop %v1654
    %v1671 = vrcp.pop %v1655
    %v1672 = vrcp.pop %v1656
    %v1673 = vrcp.pop %v1657
    %v1674 = vrcp.pop %v1658
    %v1675 = vrcp.pop %v1659
    %v1676 = vrcp.pop %v1660
    %v1677 = vrcp.pop %v1661
    %v1678 = vmul.f32 %v1598, %v1662
    %v1679 = vmul.f32 %v1599, %v1663
    %v1680 = vmul.f32 %v1600, %v1664
    %v1681 = vmul.f32 %v1601, %v1665
    %v1682 = vmul.f32 %v1602, %v1666
    %v1683 = vmul.f32 %v1603, %v1667
    %v1684 = vmul.f32 %v1604, %v1668
    %v1685 = vmul.f32 %v1605, %v1669
    %v1686 = vmul.f32 %v1606, %v1670
    %v1687 = vmul.f32 %v1607, %v1671
    %v1688 = vmul.f32 %v1608, %v1672
    %v1689 = vmul.f32 %v1609, %v1673
    %v1690 = vmul.f32 %v1610, %v1674
    %v1691 = vmul.f32 %v1611, %v1675
    %v1692 = vmul.f32 %v1612, %v1676
    %v1693 = vmul.f32 %v1613, %v1677
    %v1694 = vpack.c.bf16 %v1679, %v1678
    %v1695 = vpack.c.bf16 %v1681, %v1680
    %v1696 = vpack.c.bf16 %v1683, %v1682
    %v1697 = vpack.c.bf16 %v1685, %v1684
    %v1698 = vpack.c.bf16 %v1687, %v1686
    %v1699 = vpack.c.bf16 %v1689, %v1688
    %v1700 = vpack.c.bf16 %v1691, %v1690
    %v1701 = vpack.c.bf16 %v1693, %v1692
    %1702 = vmatprep.subr.bf16.mxu0 0
    %1703 = vmatpush1.bf16.msra.mxu0 %v1329
    %1704 = vmatprep.subr.bf16.mxu0 0
    %1705 = vmatpush1.bf16.msra.mxu0 %v1330
    %1706 = vmatprep.subr.bf16.mxu0 0
    %1707 = vmatpush1.bf16.msra.mxu0 %v1331
    %1708 = vmatprep.subr.bf16.mxu0 0
    %1709 = vmatpush1.bf16.msra.mxu0 %v1332
    %1710 = vmatprep.subr.bf16.mxu0 0
    %1711 = vmatpush1.bf16.msra.mxu0 %v1333
    %1712 = vmatprep.subr.bf16.mxu0 0
    %1713 = vmatpush1.bf16.msra.mxu0 %v1334
    %1714 = vmatprep.subr.bf16.mxu0 0
    %1715 = vmatpush1.bf16.msra.mxu0 %v1335
    %1716 = vmatprep.subr.bf16.mxu0 0
    %1717 = vmatpush1.bf16.msra.mxu0 %v1336
    %1718 = vmatprep.subr.bf16.mxu0 0
    %1719 = vmatpush1.bf16.msra.mxu0 0
    %1720 = vmatprep.subr.bf16.mxu0 0
    %1721 = vmatpush1.bf16.msra.mxu0 0
    %1722 = vmatprep.subr.bf16.mxu0 0
    %1723 = vmatpush1.bf16.msra.mxu0 0
    %1724 = vmatprep.subr.bf16.mxu0 0
    %1725 = vmatpush1.bf16.msra.mxu0 0
    %1726 = vmatprep.subr.bf16.mxu0 0
    %1727 = vmatpush1.bf16.msra.mxu0 0
    %1728 = vmatprep.subr.bf16.mxu0 0
    %1729 = vmatpush1.bf16.msra.mxu0 0
    %1730 = vmatprep.subr.bf16.mxu0 0
    %1731 = vmatpush1.bf16.msra.mxu0 0
    %1732 = vmatprep.subr.bf16.mxu0 0
    %1733 = vmatpush1.bf16.msra.mxu0 0
    %1734 = vmatprep.mubr.bf16.mxu0 0
    %1735 = vmatmul.mubr.bf16.gmra.mrb[0].mxu0 %v1694
    %v1736 = vpop.f32.mrb[0].mxu0
    %v1737 = vadd.f32 0.0, %v1736
    %v1738 = vpop.f32.mrb[0].mxu0
    %v1739 = vpop.f32.mrb[0].mxu0
    %v1740 = vadd.f32 0.0, %v1739
    %v1741 = vpop.f32.mrb[0].mxu0
    %1742 = vmatprep.mubr.bf16.mxu0 0
    %1743 = vmatmul.mubr.bf16.gmra.mrb[0].mxu0 %v1695
    %v1744 = vpop.f32.mrb[0].mxu0
    %v1745 = vadd.f32 0.0, %v1744
    %v1746 = vpop.f32.mrb[0].mxu0
    %v1747 = vpop.f32.mrb[0].mxu0
    %v1748 = vadd.f32 0.0, %v1747
    %v1749 = vpop.f32.mrb[0].mxu0
    %1750 = vmatprep.mubr.bf16.mxu0 0
    %1751 = vmatmul.mubr.bf16.gmra.mrb[0].mxu0 %v1696
    %v1752 = vpop.f32.mrb[0].mxu0
    %v1753 = vadd.f32 0.0, %v1752
    %v1754 = vpop.f32.mrb[0].mxu0
    %v1755 = vpop.f32.mrb[0].mxu0
    %v1756 = vadd.f32 0.0, %v1755
    %v1757 = vpop.f32.mrb[0].mxu0
    %1758 = vmatprep.mubr.bf16.mxu0 0
    %1759 = vmatmul.mubr.bf16.gmra.mrb[0].mxu0 %v1697
    %v1760 = vpop.f32.mrb[0].mxu0
    %v1761 = vadd.f32 0.0, %v1760
    %v1762 = vpop.f32.mrb[0].mxu0
    %v1763 = vpop.f32.mrb[0].mxu0
    %v1764 = vadd.f32 0.0, %v1763
    %v1765 = vpop.f32.mrb[0].mxu0
    %1766 = vmatprep.mubr.bf16.mxu0 0
    %1767 = vmatmul.mubr.bf16.gmra.mrb[0].mxu0 %v1698
    %v1768 = vpop.f32.mrb[0].mxu0
    %v1769 = vadd.f32 0.0, %v1768
    %v1770 = vpop.f32.mrb[0].mxu0
    %v1771 = vpop.f32.mrb[0].mxu0
    %v1772 = vadd.f32 0.0, %v1771
    %v1773 = vpop.f32.mrb[0].mxu0
    %1774 = vmatprep.mubr.bf16.mxu0 0
    %1775 = vmatmul.mubr.bf16.gmra.mrb[0].mxu0 %v1699
    %v1776 = vpop.f32.mrb[0].mxu0
    %v1777 = vadd.f32 0.0, %v1776
    %v1778 = vpop.f32.mrb[0].mxu0
    %v1779 = vpop.f32.mrb[0].mxu0
    %v1780 = vadd.f32 0.0, %v1779
    %v1781 = vpop.f32.mrb[0].mxu0
    %1782 = vmatprep.mubr.bf16.mxu0 0
    %1783 = vmatmul.mubr.bf16.gmra.mrb[0].mxu0 %v1700
    %v1784 = vpop.f32.mrb[0].mxu0
    %v1785 = vadd.f32 0.0, %v1784
    %v1786 = vpop.f32.mrb[0].mxu0
    %v1787 = vpop.f32.mrb[0].mxu0
    %v1788 = vadd.f32 0.0, %v1787
    %v1789 = vpop.f32.mrb[0].mxu0
    %1790 = vmatprep.mubr.bf16.mxu0 0
    %1791 = vmatmul.mubr.bf16.gmra.mrb[0].mxu0 %v1701
    %v1792 = vpop.f32.mrb[0].mxu0
    %v1793 = vadd.f32 0.0, %v1792
    %v1794 = vpop.f32.mrb[0].mxu0
    %v1795 = vpop.f32.mrb[0].mxu0
    %v1796 = vadd.f32 0.0, %v1795
    %v1797 = vpop.f32.mrb[0].mxu0
    %1798 = vdwg.mxu0
    %v1799 = vmax.f32 %v1737, 0.0
    %v1800 = vmax.f32 %v1740, 0.0
    %v1801 = vmax.f32 %v1745, 0.0
    %v1802 = vmax.f32 %v1748, 0.0
    %v1803 = vmax.f32 %v1753, 0.0
    %v1804 = vmax.f32 %v1756, 0.0
    %v1805 = vmax.f32 %v1761, 0.0
    %v1806 = vmax.f32 %v1764, 0.0
    %v1807 = vmax.f32 %v1769, 0.0
    %v1808 = vmax.f32 %v1772, 0.0
    %v1809 = vmax.f32 %v1777, 0.0
    %v1810 = vmax.f32 %v1780, 0.0
    %v1811 = vmax.f32 %v1785, 0.0
    %v1812 = vmax.f32 %v1788, 0.0
    %v1813 = vmax.f32 %v1793, 0.0
    %v1814 = vmax.f32 %v1796, 0.0
    %s1815 = scalar_lea.vmem [#allocation8], 1
    %v1816 = vld [vmem:[%s1815] sm:$0x1]
    %s1817 = scalar_lea.vmem [#allocation10], 1
    %v1818 = vld [vmem:[%s1817] sm:$0x1]
    %v1820 = vlaneseq
    %v1821 = vshrl.u32 %v1820, 7
    %v1822 = vsub.s32 0, %v1821
    %v1823 = vrot.slane %v1816, %v1822
    %v1825 = vmul.f32 %v560, %v1823
    %v1826 = vmul.f32 %v561, %v1823
    %v1827 = vmul.f32 %v562, %v1823
    %v1828 = vmul.f32 %v563, %v1823
    %v1829 = vmul.f32 %v564, %v1823
    %v1830 = vmul.f32 %v565, %v1823
    %v1831 = vmul.f32 %v566, %v1823
    %v1832 = vmul.f32 %v567, %v1823
    %v1833 = vmul.f32 %v568, %v1823
    %v1834 = vmul.f32 %v569, %v1823
    %v1835 = vmul.f32 %v570, %v1823
    %v1836 = vmul.f32 %v571, %v1823
    %v1837 = vmul.f32 %v572, %v1823
    %v1838 = vmul.f32 %v573, %v1823
    %v1839 = vmul.f32 %v574, %v1823
    %v1840 = vmul.f32 %v575, %v1823
    %v1842 = vlaneseq
    %v1843 = vshrl.u32 %v1842, 7
    %v1844 = vsub.s32 0, %v1843
    %v1845 = vrot.slane %v1818, %v1844
    %v1847 = vadd.f32 %v1825, %v1845
    %v1848 = vadd.f32 %v1826, %v1845
    %v1849 = vadd.f32 %v1827, %v1845
    %v1850 = vadd.f32 %v1828, %v1845
    %v1851 = vadd.f32 %v1829, %v1845
    %v1852 = vadd.f32 %v1830, %v1845
    %v1853 = vadd.f32 %v1831, %v1845
    %v1854 = vadd.f32 %v1832, %v1845
    %v1855 = vadd.f32 %v1833, %v1845
    %v1856 = vadd.f32 %v1834, %v1845
    %v1857 = vadd.f32 %v1835, %v1845
    %v1858 = vadd.f32 %v1836, %v1845
    %v1859 = vadd.f32 %v1837, %v1845
    %v1860 = vadd.f32 %v1838, %v1845
    %v1861 = vadd.f32 %v1839, %v1845
    %v1862 = vadd.f32 %v1840, %v1845
    %v1863 = vpack.c.bf16 %v1848, %v1847
    %v1864 = vpack.c.bf16 %v1850, %v1849
    %v1865 = vpack.c.bf16 %v1852, %v1851
    %v1866 = vpack.c.bf16 %v1854, %v1853
    %v1867 = vpack.c.bf16 %v1856, %v1855
    %v1868 = vpack.c.bf16 %v1858, %v1857
    %v1869 = vpack.c.bf16 %v1860, %v1859
    %v1870 = vpack.c.bf16 %v1862, %v1861
    %1871 = vxpose.xlu0.c.b16.start [1/8] %v660, 128
    %1872 = vxpose.xlu0.c.b16.cont [2/8] %v661, 128
    %1873 = vxpose.xlu0.c.b16.cont [3/8] %v662, 128
    %1874 = vxpose.xlu0.c.b16.cont [4/8] %v663, 128
    %1875 = vxpose.xlu0.c.b16.cont [5/8] %v664, 128
    %1876 = vxpose.xlu0.c.b16.cont [6/8] %v665, 128
    %1877 = vxpose.xlu0.c.b16.cont [7/8] %v666, 128
    %1878 = vxpose.xlu0.c.b16.end [8/8] %v667, 128
    %v1879 = vpop.trf.xlu0
    %v1880 = vpop.trf.xlu0
    %v1881 = vpop.trf.xlu0
    %v1882 = vpop.trf.xlu0
    %v1883 = vpop.trf.xlu0
    %v1884 = vpop.trf.xlu0
    %v1885 = vpop.trf.xlu0
    %v1886 = vpop.trf.xlu0
    %1887 = vmatprep.subr.bf16.mxu0 0
    %1888 = vmatpush1.bf16.msra.mxu0 %v1863
    %1889 = vmatprep.subr.bf16.mxu0 0
    %1890 = vmatpush1.bf16.msra.mxu0 %v1864
    %1891 = vmatprep.subr.bf16.mxu0 0
    %1892 = vmatpush1.bf16.msra.mxu0 %v1865
    %1893 = vmatprep.subr.bf16.mxu0 0
    %1894 = vmatpush1.bf16.msra.mxu0 %v1866
    %1895 = vmatprep.subr.bf16.mxu0 0
    %1896 = vmatpush1.bf16.msra.mxu0 %v1867
    %1897 = vmatprep.subr.bf16.mxu0 0
    %1898 = vmatpush1.bf16.msra.mxu0 %v1868
    %1899 = vmatprep.subr.bf16.mxu0 0
    %1900 = vmatpush1.bf16.msra.mxu0 %v1869
    %1901 = vmatprep.subr.bf16.mxu0 0
    %1902 = vmatpush1.bf16.msra.mxu0 %v1870
    %1903 = vmatprep.subr.bf16.mxu0 0
    %1904 = vmatpush1.bf16.msra.mxu0 0
    %1905 = vmatprep.subr.bf16.mxu0 0
    %1906 = vmatpush1.bf16.msra.mxu0 0
    %1907 = vmatprep.subr.bf16.mxu0 0
    %1908 = vmatpush1.bf16.msra.mxu0 0
    %1909 = vmatprep.subr.bf16.mxu0 0
    %1910 = vmatpush1.bf16.msra.mxu0 0
    %1911 = vmatprep.subr.bf16.mxu0 0
    %1912 = vmatpush1.bf16.msra.mxu0 0
    %1913 = vmatprep.subr.bf16.mxu0 0
    %1914 = vmatpush1.bf16.msra.mxu0 0
    %1915 = vmatprep.subr.bf16.mxu0 0
    %1916 = vmatpush1.bf16.msra.mxu0 0
    %1917 = vmatprep.subr.bf16.mxu0 0
    %1918 = vmatpush1.bf16.msra.mxu0 0
    %1919 = vmatprep.mubr.bf16.mxu0 0
    %1920 = vmatmul.mubr.bf16.gmra.mrb[0].mxu0 %v1879
    %v1921 = vpop.f32.mrb[0].mxu0
    %v1922 = vadd.f32 0.0, %v1921
    %v1923 = vpop.f32.mrb[0].mxu0
    %v1924 = vpop.f32.mrb[0].mxu0
    %v1925 = vadd.f32 0.0, %v1924
    %v1926 = vpop.f32.mrb[0].mxu0
    %1927 = vmatprep.mubr.bf16.mxu0 0
    %1928 = vmatmul.mubr.bf16.gmra.mrb[0].mxu0 %v1880
    %v1929 = vpop.f32.mrb[0].mxu0
    %v1930 = vadd.f32 0.0, %v1929
    %v1931 = vpop.f32.mrb[0].mxu0
    %v1932 = vpop.f32.mrb[0].mxu0
    %v1933 = vadd.f32 0.0, %v1932
    %v1934 = vpop.f32.mrb[0].mxu0
    %1935 = vmatprep.mubr.bf16.mxu0 0
    %1936 = vmatmul.mubr.bf16.gmra.mrb[0].mxu0 %v1881
    %v1937 = vpop.f32.mrb[0].mxu0
    %v1938 = vadd.f32 0.0, %v1937
    %v1939 = vpop.f32.mrb[0].mxu0
    %v1940 = vpop.f32.mrb[0].mxu0
    %v1941 = vadd.f32 0.0, %v1940
    %v1942 = vpop.f32.mrb[0].mxu0
    %1943 = vmatprep.mubr.bf16.mxu0 0
    %1944 = vmatmul.mubr.bf16.gmra.mrb[0].mxu0 %v1882
    %v1945 = vpop.f32.mrb[0].mxu0
    %v1946 = vadd.f32 0.0, %v1945
    %v1947 = vpop.f32.mrb[0].mxu0
    %v1948 = vpop.f32.mrb[0].mxu0
    %v1949 = vadd.f32 0.0, %v1948
    %v1950 = vpop.f32.mrb[0].mxu0
    %1951 = vmatprep.mubr.bf16.mxu0 0
    %1952 = vmatmul.mubr.bf16.gmra.mrb[0].mxu0 %v1883
    %v1953 = vpop.f32.mrb[0].mxu0
    %v1954 = vadd.f32 0.0, %v1953
    %v1955 = vpop.f32.mrb[0].mxu0
    %v1956 = vpop.f32.mrb[0].mxu0
    %v1957 = vadd.f32 0.0, %v1956
    %v1958 = vpop.f32.mrb[0].mxu0
    %1959 = vmatprep.mubr.bf16.mxu0 0
    %1960 = vmatmul.mubr.bf16.gmra.mrb[0].mxu0 %v1884
    %v1961 = vpop.f32.mrb[0].mxu0
    %v1962 = vadd.f32 0.0, %v1961
    %v1963 = vpop.f32.mrb[0].mxu0
    %v1964 = vpop.f32.mrb[0].mxu0
    %v1965 = vadd.f32 0.0, %v1964
    %v1966 = vpop.f32.mrb[0].mxu0
    %1967 = vmatprep.mubr.bf16.mxu0 0
    %1968 = vmatmul.mubr.bf16.gmra.mrb[0].mxu0 %v1885
    %v1969 = vpop.f32.mrb[0].mxu0
    %v1970 = vadd.f32 0.0, %v1969
    %v1971 = vpop.f32.mrb[0].mxu0
    %v1972 = vpop.f32.mrb[0].mxu0
    %v1973 = vadd.f32 0.0, %v1972
    %v1974 = vpop.f32.mrb[0].mxu0
    %1975 = vmatprep.mubr.bf16.mxu0 0
    %1976 = vmatmul.mubr.bf16.gmra.mrb[0].mxu0 %v1886
    %v1977 = vpop.f32.mrb[0].mxu0
    %v1978 = vadd.f32 0.0, %v1977
    %v1979 = vpop.f32.mrb[0].mxu0
    %v1980 = vpop.f32.mrb[0].mxu0
    %v1981 = vadd.f32 0.0, %v1980
    %v1982 = vpop.f32.mrb[0].mxu0
    %1983 = vdwg.mxu0
    %v1984 = vpack.c.bf16 %v1925, %v1922
    %v1985 = vpack.c.bf16 %v1933, %v1930
    %v1986 = vpack.c.bf16 %v1941, %v1938
    %v1987 = vpack.c.bf16 %v1949, %v1946
    %v1988 = vpack.c.bf16 %v1957, %v1954
    %v1989 = vpack.c.bf16 %v1965, %v1962
    %v1990 = vpack.c.bf16 %v1973, %v1970
    %v1991 = vpack.c.bf16 %v1981, %v1978
    %s1992 = scalar_lea.vmem [#allocation11], 256
    %v1993 = vld [vmem:[%s1992] sm:$0xff]
    %v1994 = vld [vmem:[%s1992 + $0x8] sm:$0xff]
    %v1995 = vld [vmem:[%s1992 + $0x10] sm:$0xff]
    %v1996 = vld [vmem:[%s1992 + $0x18] sm:$0xff]
    %v1997 = vld [vmem:[%s1992 + $0x20] sm:$0xff]
    %v1998 = vld [vmem:[%s1992 + $0x28] sm:$0xff]
    %v1999 = vld [vmem:[%s1992 + $0x30] sm:$0xff]
    %v2000 = vld [vmem:[%s1992 + $0x38] sm:$0xff]
    %v2001 = vld [vmem:[%s1992 + $0x40] sm:$0xff]
    %v2002 = vld [vmem:[%s1992 + $0x48] sm:$0xff]
    %v2003 = vld [vmem:[%s1992 + $0x50] sm:$0xff]
    %v2004 = vld [vmem:[%s1992 + $0x58] sm:$0xff]
    %v2005 = vld [vmem:[%s1992 + $0x60] sm:$0xff]
    %v2006 = vld [vmem:[%s1992 + $0x68] sm:$0xff]
    %v2007 = vld [vmem:[%s1992 + $0x70] sm:$0xff]
    %v2008 = vld [vmem:[%s1992 + $0x78] sm:$0xff]
    %v2009 = vpack.c.bf16 %v1994, %v1993
    %v2010 = vpack.c.bf16 %v1996, %v1995
    %v2011 = vpack.c.bf16 %v1998, %v1997
    %v2012 = vpack.c.bf16 %v2000, %v1999
    %v2013 = vpack.c.bf16 %v2002, %v2001
    %v2014 = vpack.c.bf16 %v2004, %v2003
    %v2015 = vpack.c.bf16 %v2006, %v2005
    %v2016 = vpack.c.bf16 %v2008, %v2007
    %s2017 = scalar_lea.vmem [#allocation13], 2
    %v2018 = vld [vmem:[%s2017] sm:$0x1]
    %v2020 = vlaneseq
    %v2021 = vshrl.u32 %v2020, 7
    %v2022 = vsub.s32 0, %v2021
    %v2023 = vrot.slane %v2018, %v2022
    %2025 = vmatprep.subr.bf16.mxu0 0
    %2026 = vmatpush1.bf16.msra.mxu0 %v2009
    %2027 = vmatprep.subr.bf16.mxu0 0
    %2028 = vmatpush1.bf16.msra.mxu0 %v2010
    %2029 = vmatprep.subr.bf16.mxu0 0
    %2030 = vmatpush1.bf16.msra.mxu0 %v2011
    %2031 = vmatprep.subr.bf16.mxu0 0
    %2032 = vmatpush1.bf16.msra.mxu0 %v2012
    %2033 = vmatprep.subr.bf16.mxu0 0
    %2034 = vmatpush1.bf16.msra.mxu0 %v2013
    %2035 = vmatprep.subr.bf16.mxu0 0
    %2036 = vmatpush1.bf16.msra.mxu0 %v2014
    %2037 = vmatprep.subr.bf16.mxu0 0
    %2038 = vmatpush1.bf16.msra.mxu0 %v2015
    %2039 = vmatprep.subr.bf16.mxu0 0
    %2040 = vmatpush1.bf16.msra.mxu0 %v2016
    %2041 = vmatprep.subr.bf16.mxu0 0
    %2042 = vmatpush1.bf16.msra.mxu0 0
    %2043 = vmatprep.subr.bf16.mxu0 0
    %2044 = vmatpush1.bf16.msra.mxu0 0
    %2045 = vmatprep.subr.bf16.mxu0 0
    %2046 = vmatpush1.bf16.msra.mxu0 0
    %2047 = vmatprep.subr.bf16.mxu0 0
    %2048 = vmatpush1.bf16.msra.mxu0 0
    %2049 = vmatprep.subr.bf16.mxu0 0
    %2050 = vmatpush1.bf16.msra.mxu0 0
    %2051 = vmatprep.subr.bf16.mxu0 0
    %2052 = vmatpush1.bf16.msra.mxu0 0
    %2053 = vmatprep.subr.bf16.mxu0 0
    %2054 = vmatpush1.bf16.msra.mxu0 0
    %2055 = vmatprep.subr.bf16.mxu0 0
    %2056 = vmatpush1.bf16.msra.mxu0 0
    %2057 = vmatprep.mubr.bf16.mxu0 0
    %2058 = vmatmul.mubr.bf16.gmra.mrb[0].mxu0 %v1984
    %v2059 = vpop.f32.mrb[0].mxu0
    %v2060 = vadd.f32 %v2023, %v2059
    %v2061 = vpop.f32.mrb[0].mxu0
    %v2062 = vpop.f32.mrb[0].mxu0
    %v2063 = vadd.f32 %v2023, %v2062
    %v2064 = vpop.f32.mrb[0].mxu0
    %2065 = vmatprep.mubr.bf16.mxu0 0
    %2066 = vmatmul.mubr.bf16.gmra.mrb[0].mxu0 %v1985
    %v2067 = vpop.f32.mrb[0].mxu0
    %v2068 = vadd.f32 %v2023, %v2067
    %v2069 = vpop.f32.mrb[0].mxu0
    %v2070 = vpop.f32.mrb[0].mxu0
    %v2071 = vadd.f32 %v2023, %v2070
    %v2072 = vpop.f32.mrb[0].mxu0
    %2073 = vmatprep.mubr.bf16.mxu0 0
    %2074 = vmatmul.mubr.bf16.gmra.mrb[0].mxu0 %v1986
    %v2075 = vpop.f32.mrb[0].mxu0
    %v2076 = vadd.f32 %v2023, %v2075
    %v2077 = vpop.f32.mrb[0].mxu0
    %v2078 = vpop.f32.mrb[0].mxu0
    %v2079 = vadd.f32 %v2023, %v2078
    %v2080 = vpop.f32.mrb[0].mxu0
    %2081 = vmatprep.mubr.bf16.mxu0 0
    %2082 = vmatmul.mubr.bf16.gmra.mrb[0].mxu0 %v1987
    %v2083 = vpop.f32.mrb[0].mxu0
    %v2084 = vadd.f32 %v2023, %v2083
    %v2085 = vpop.f32.mrb[0].mxu0
    %v2086 = vpop.f32.mrb[0].mxu0
    %v2087 = vadd.f32 %v2023, %v2086
    %v2088 = vpop.f32.mrb[0].mxu0
    %2089 = vmatprep.mubr.bf16.mxu0 0
    %2090 = vmatmul.mubr.bf16.gmra.mrb[0].mxu0 %v1988
    %v2091 = vpop.f32.mrb[0].mxu0
    %v2092 = vadd.f32 %v2023, %v2091
    %v2093 = vpop.f32.mrb[0].mxu0
    %v2094 = vpop.f32.mrb[0].mxu0
    %v2095 = vadd.f32 %v2023, %v2094
    %v2096 = vpop.f32.mrb[0].mxu0
    %2097 = vmatprep.mubr.bf16.mxu0 0
    %2098 = vmatmul.mubr.bf16.gmra.mrb[0].mxu0 %v1989
    %v2099 = vpop.f32.mrb[0].mxu0
    %v2100 = vadd.f32 %v2023, %v2099
    %v2101 = vpop.f32.mrb[0].mxu0
    %v2102 = vpop.f32.mrb[0].mxu0
    %v2103 = vadd.f32 %v2023, %v2102
    %v2104 = vpop.f32.mrb[0].mxu0
    %2105 = vmatprep.mubr.bf16.mxu0 0
    %2106 = vmatmul.mubr.bf16.gmra.mrb[0].mxu0 %v1990
    %v2107 = vpop.f32.mrb[0].mxu0
    %v2108 = vadd.f32 %v2023, %v2107
    %v2109 = vpop.f32.mrb[0].mxu0
    %v2110 = vpop.f32.mrb[0].mxu0
    %v2111 = vadd.f32 %v2023, %v2110
    %v2112 = vpop.f32.mrb[0].mxu0
    %2113 = vmatprep.mubr.bf16.mxu0 0
    %2114 = vmatmul.mubr.bf16.gmra.mrb[0].mxu0 %v1991
    %v2115 = vpop.f32.mrb[0].mxu0
    %v2116 = vadd.f32 %v2023, %v2115
    %v2117 = vpop.f32.mrb[0].mxu0
    %v2118 = vpop.f32.mrb[0].mxu0
    %v2119 = vadd.f32 %v2023, %v2118
    %v2120 = vpop.f32.mrb[0].mxu0
    %2121 = vdwg.mxu0
    %v2122 = vtanh.pop %v2060
    %v2123 = vtanh.pop %v2063
    %v2124 = vtanh.pop %v2068
    %v2125 = vtanh.pop %v2071
    %v2126 = vtanh.pop %v2076
    %v2127 = vtanh.pop %v2079
    %v2128 = vtanh.pop %v2084
    %v2129 = vtanh.pop %v2087
    %v2130 = vtanh.pop %v2092
    %v2131 = vtanh.pop %v2095
    %v2132 = vtanh.pop %v2100
    %v2133 = vtanh.pop %v2103
    %v2134 = vtanh.pop %v2108
    %v2135 = vtanh.pop %v2111
    %v2136 = vtanh.pop %v2116
    %v2137 = vtanh.pop %v2119
    %v2138 = vpack.c.bf16 %v2123, %v2122
    %v2139 = vpack.c.bf16 %v2125, %v2124
    %v2140 = vpack.c.bf16 %v2127, %v2126
    %v2141 = vpack.c.bf16 %v2129, %v2128
    %v2142 = vpack.c.bf16 %v2131, %v2130
    %v2143 = vpack.c.bf16 %v2133, %v2132
    %v2144 = vpack.c.bf16 %v2135, %v2134
    %v2145 = vpack.c.bf16 %v2137, %v2136
    %2146 = vmatprep.subr.bf16.mxu0 0
    %2147 = vmatpush1.bf16.msra.mxu0 %v2138
    %2148 = vmatprep.subr.bf16.mxu0 0
    %2149 = vmatpush1.bf16.msra.mxu0 %v2139
    %2150 = vmatprep.subr.bf16.mxu0 0
    %2151 = vmatpush1.bf16.msra.mxu0 %v2140
    %2152 = vmatprep.subr.bf16.mxu0 0
    %2153 = vmatpush1.bf16.msra.mxu0 %v2141
    %2154 = vmatprep.subr.bf16.mxu0 0
    %2155 = vmatpush1.bf16.msra.mxu0 %v2142
    %2156 = vmatprep.subr.bf16.mxu0 0
    %2157 = vmatpush1.bf16.msra.mxu0 %v2143
    %2158 = vmatprep.subr.bf16.mxu0 0
    %2159 = vmatpush1.bf16.msra.mxu0 %v2144
    %2160 = vmatprep.subr.bf16.mxu0 0
    %2161 = vmatpush1.bf16.msra.mxu0 %v2145
    %2162 = vmatprep.subr.bf16.mxu0 0
    %2163 = vmatpush1.bf16.msra.mxu0 0
    %2164 = vmatprep.subr.bf16.mxu0 0
    %2165 = vmatpush1.bf16.msra.mxu0 0
    %2166 = vmatprep.subr.bf16.mxu0 0
    %2167 = vmatpush1.bf16.msra.mxu0 0
    %2168 = vmatprep.subr.bf16.mxu0 0
    %2169 = vmatpush1.bf16.msra.mxu0 0
    %2170 = vmatprep.subr.bf16.mxu0 0
    %2171 = vmatpush1.bf16.msra.mxu0 0
    %2172 = vmatprep.subr.bf16.mxu0 0
    %2173 = vmatpush1.bf16.msra.mxu0 0
    %2174 = vmatprep.subr.bf16.mxu0 0
    %2175 = vmatpush1.bf16.msra.mxu0 0
    %2176 = vmatprep.subr.bf16.mxu0 0
    %2177 = vmatpush1.bf16.msra.mxu0 0
    %2178 = vmatprep.mubr.bf16.mxu0 0
    %2179 = vmatmul.mubr.bf16.gmra.mrb[0].mxu0 %v1879
    %v2180 = vpop.f32.mrb[0].mxu0
    %v2181 = vadd.f32 0.0, %v2180
    %v2182 = vpop.f32.mrb[0].mxu0
    %v2183 = vpop.f32.mrb[0].mxu0
    %v2184 = vadd.f32 0.0, %v2183
    %v2185 = vpop.f32.mrb[0].mxu0
    %2186 = vmatprep.mubr.bf16.mxu0 0
    %2187 = vmatmul.mubr.bf16.gmra.mrb[0].mxu0 %v1880
    %v2188 = vpop.f32.mrb[0].mxu0
    %v2189 = vadd.f32 0.0, %v2188
    %v2190 = vpop.f32.mrb[0].mxu0
    %v2191 = vpop.f32.mrb[0].mxu0
    %v2192 = vadd.f32 0.0, %v2191
    %v2193 = vpop.f32.mrb[0].mxu0
    %2194 = vmatprep.mubr.bf16.mxu0 0
    %2195 = vmatmul.mubr.bf16.gmra.mrb[0].mxu0 %v1881
    %v2196 = vpop.f32.mrb[0].mxu0
    %v2197 = vadd.f32 0.0, %v2196
    %v2198 = vpop.f32.mrb[0].mxu0
    %v2199 = vpop.f32.mrb[0].mxu0
    %v2200 = vadd.f32 0.0, %v2199
    %v2201 = vpop.f32.mrb[0].mxu0
    %2202 = vmatprep.mubr.bf16.mxu0 0
    %2203 = vmatmul.mubr.bf16.gmra.mrb[0].mxu0 %v1882
    %v2204 = vpop.f32.mrb[0].mxu0
    %v2205 = vadd.f32 0.0, %v2204
    %v2206 = vpop.f32.mrb[0].mxu0
    %v2207 = vpop.f32.mrb[0].mxu0
    %v2208 = vadd.f32 0.0, %v2207
    %v2209 = vpop.f32.mrb[0].mxu0
    %2210 = vmatprep.mubr.bf16.mxu0 0
    %2211 = vmatmul.mubr.bf16.gmra.mrb[0].mxu0 %v1883
    %v2212 = vpop.f32.mrb[0].mxu0
    %v2213 = vadd.f32 0.0, %v2212
    %v2214 = vpop.f32.mrb[0].mxu0
    %v2215 = vpop.f32.mrb[0].mxu0
    %v2216 = vadd.f32 0.0, %v2215
    %v2217 = vpop.f32.mrb[0].mxu0
    %2218 = vmatprep.mubr.bf16.mxu0 0
    %2219 = vmatmul.mubr.bf16.gmra.mrb[0].mxu0 %v1884
    %v2220 = vpop.f32.mrb[0].mxu0
    %v2221 = vadd.f32 0.0, %v2220
    %v2222 = vpop.f32.mrb[0].mxu0
    %v2223 = vpop.f32.mrb[0].mxu0
    %v2224 = vadd.f32 0.0, %v2223
    %v2225 = vpop.f32.mrb[0].mxu0
    %2226 = vmatprep.mubr.bf16.mxu0 0
    %2227 = vmatmul.mubr.bf16.gmra.mrb[0].mxu0 %v1885
    %v2228 = vpop.f32.mrb[0].mxu0
    %v2229 = vadd.f32 0.0, %v2228
    %v2230 = vpop.f32.mrb[0].mxu0
    %v2231 = vpop.f32.mrb[0].mxu0
    %v2232 = vadd.f32 0.0, %v2231
    %v2233 = vpop.f32.mrb[0].mxu0
    %2234 = vmatprep.mubr.bf16.mxu0 0
    %2235 = vmatmul.mubr.bf16.gmra.mrb[0].mxu0 %v1886
    %v2236 = vpop.f32.mrb[0].mxu0
    %v2237 = vadd.f32 0.0, %v2236
    %v2238 = vpop.f32.mrb[0].mxu0
    %v2239 = vpop.f32.mrb[0].mxu0
    %v2240 = vadd.f32 0.0, %v2239
    %v2241 = vpop.f32.mrb[0].mxu0
    %2242 = vdwg.mxu0
    %v2243 = vpack.c.bf16 %v2184, %v2181
    %v2244 = vpack.c.bf16 %v2192, %v2189
    %v2245 = vpack.c.bf16 %v2200, %v2197
    %v2246 = vpack.c.bf16 %v2208, %v2205
    %v2247 = vpack.c.bf16 %v2216, %v2213
    %v2248 = vpack.c.bf16 %v2224, %v2221
    %v2249 = vpack.c.bf16 %v2232, %v2229
    %v2250 = vpack.c.bf16 %v2240, %v2237
    %s2251 = scalar_lea.vmem [#allocation11], 384
    %v2252 = vld [vmem:[%s2251] sm:$0xff]
    %v2253 = vld [vmem:[%s2251 + $0x8] sm:$0xff]
    %v2254 = vld [vmem:[%s2251 + $0x10] sm:$0xff]
    %v2255 = vld [vmem:[%s2251 + $0x18] sm:$0xff]
    %v2256 = vld [vmem:[%s2251 + $0x20] sm:$0xff]
    %v2257 = vld [vmem:[%s2251 + $0x28] sm:$0xff]
    %v2258 = vld [vmem:[%s2251 + $0x30] sm:$0xff]
    %v2259 = vld [vmem:[%s2251 + $0x38] sm:$0xff]
    %v2260 = vld [vmem:[%s2251 + $0x40] sm:$0xff]
    %v2261 = vld [vmem:[%s2251 + $0x48] sm:$0xff]
    %v2262 = vld [vmem:[%s2251 + $0x50] sm:$0xff]
    %v2263 = vld [vmem:[%s2251 + $0x58] sm:$0xff]
    %v2264 = vld [vmem:[%s2251 + $0x60] sm:$0xff]
    %v2265 = vld [vmem:[%s2251 + $0x68] sm:$0xff]
    %v2266 = vld [vmem:[%s2251 + $0x70] sm:$0xff]
    %v2267 = vld [vmem:[%s2251 + $0x78] sm:$0xff]
    %v2268 = vpack.c.bf16 %v2253, %v2252
    %v2269 = vpack.c.bf16 %v2255, %v2254
    %v2270 = vpack.c.bf16 %v2257, %v2256
    %v2271 = vpack.c.bf16 %v2259, %v2258
    %v2272 = vpack.c.bf16 %v2261, %v2260
    %v2273 = vpack.c.bf16 %v2263, %v2262
    %v2274 = vpack.c.bf16 %v2265, %v2264
    %v2275 = vpack.c.bf16 %v2267, %v2266
    %s2276 = scalar_lea.vmem [#allocation13], 3
    %v2277 = vld [vmem:[%s2276] sm:$0x1]
    %v2279 = vlaneseq
    %v2280 = vshrl.u32 %v2279, 7
    %v2281 = vsub.s32 0, %v2280
    %v2282 = vrot.slane %v2277, %v2281
    %2284 = vmatprep.subr.bf16.mxu0 0
    %2285 = vmatpush1.bf16.msra.mxu0 %v2268
    %2286 = vmatprep.subr.bf16.mxu0 0
    %2287 = vmatpush1.bf16.msra.mxu0 %v2269
    %2288 = vmatprep.subr.bf16.mxu0 0
    %2289 = vmatpush1.bf16.msra.mxu0 %v2270
    %2290 = vmatprep.subr.bf16.mxu0 0
    %2291 = vmatpush1.bf16.msra.mxu0 %v2271
    %2292 = vmatprep.subr.bf16.mxu0 0
    %2293 = vmatpush1.bf16.msra.mxu0 %v2272
    %2294 = vmatprep.subr.bf16.mxu0 0
    %2295 = vmatpush1.bf16.msra.mxu0 %v2273
    %2296 = vmatprep.subr.bf16.mxu0 0
    %2297 = vmatpush1.bf16.msra.mxu0 %v2274
    %2298 = vmatprep.subr.bf16.mxu0 0
    %2299 = vmatpush1.bf16.msra.mxu0 %v2275
    %2300 = vmatprep.subr.bf16.mxu0 0
    %2301 = vmatpush1.bf16.msra.mxu0 0
    %2302 = vmatprep.subr.bf16.mxu0 0
    %2303 = vmatpush1.bf16.msra.mxu0 0
    %2304 = vmatprep.subr.bf16.mxu0 0
    %2305 = vmatpush1.bf16.msra.mxu0 0
    %2306 = vmatprep.subr.bf16.mxu0 0
    %2307 = vmatpush1.bf16.msra.mxu0 0
    %2308 = vmatprep.subr.bf16.mxu0 0
    %2309 = vmatpush1.bf16.msra.mxu0 0
    %2310 = vmatprep.subr.bf16.mxu0 0
    %2311 = vmatpush1.bf16.msra.mxu0 0
    %2312 = vmatprep.subr.bf16.mxu0 0
    %2313 = vmatpush1.bf16.msra.mxu0 0
    %2314 = vmatprep.subr.bf16.mxu0 0
    %2315 = vmatpush1.bf16.msra.mxu0 0
    %2316 = vmatprep.mubr.bf16.mxu0 0
    %2317 = vmatmul.mubr.bf16.gmra.mrb[0].mxu0 %v2243
    %v2318 = vpop.f32.mrb[0].mxu0
    %v2319 = vadd.f32 %v2282, %v2318
    %v2320 = vpop.f32.mrb[0].mxu0
    %v2321 = vpop.f32.mrb[0].mxu0
    %v2322 = vadd.f32 %v2282, %v2321
    %v2323 = vpop.f32.mrb[0].mxu0
    %2324 = vmatprep.mubr.bf16.mxu0 0
    %2325 = vmatmul.mubr.bf16.gmra.mrb[0].mxu0 %v2244
    %v2326 = vpop.f32.mrb[0].mxu0
    %v2327 = vadd.f32 %v2282, %v2326
    %v2328 = vpop.f32.mrb[0].mxu0
    %v2329 = vpop.f32.mrb[0].mxu0
    %v2330 = vadd.f32 %v2282, %v2329
    %v2331 = vpop.f32.mrb[0].mxu0
    %2332 = vmatprep.mubr.bf16.mxu0 0
    %2333 = vmatmul.mubr.bf16.gmra.mrb[0].mxu0 %v2245
    %v2334 = vpop.f32.mrb[0].mxu0
    %v2335 = vadd.f32 %v2282, %v2334
    %v2336 = vpop.f32.mrb[0].mxu0
    %v2337 = vpop.f32.mrb[0].mxu0
    %v2338 = vadd.f32 %v2282, %v2337
    %v2339 = vpop.f32.mrb[0].mxu0
    %2340 = vmatprep.mubr.bf16.mxu0 0
    %2341 = vmatmul.mubr.bf16.gmra.mrb[0].mxu0 %v2246
    %v2342 = vpop.f32.mrb[0].mxu0
    %v2343 = vadd.f32 %v2282, %v2342
    %v2344 = vpop.f32.mrb[0].mxu0
    %v2345 = vpop.f32.mrb[0].mxu0
    %v2346 = vadd.f32 %v2282, %v2345
    %v2347 = vpop.f32.mrb[0].mxu0
    %2348 = vmatprep.mubr.bf16.mxu0 0
    %2349 = vmatmul.mubr.bf16.gmra.mrb[0].mxu0 %v2247
    %v2350 = vpop.f32.mrb[0].mxu0
    %v2351 = vadd.f32 %v2282, %v2350
    %v2352 = vpop.f32.mrb[0].mxu0
    %v2353 = vpop.f32.mrb[0].mxu0
    %v2354 = vadd.f32 %v2282, %v2353
    %v2355 = vpop.f32.mrb[0].mxu0
    %2356 = vmatprep.mubr.bf16.mxu0 0
    %2357 = vmatmul.mubr.bf16.gmra.mrb[0].mxu0 %v2248
    %v2358 = vpop.f32.mrb[0].mxu0
    %v2359 = vadd.f32 %v2282, %v2358
    %v2360 = vpop.f32.mrb[0].mxu0
    %v2361 = vpop.f32.mrb[0].mxu0
    %v2362 = vadd.f32 %v2282, %v2361
    %v2363 = vpop.f32.mrb[0].mxu0
    %2364 = vmatprep.mubr.bf16.mxu0 0
    %2365 = vmatmul.mubr.bf16.gmra.mrb[0].mxu0 %v2249
    %v2366 = vpop.f32.mrb[0].mxu0
    %v2367 = vadd.f32 %v2282, %v2366
    %v2368 = vpop.f32.mrb[0].mxu0
    %v2369 = vpop.f32.mrb[0].mxu0
    %v2370 = vadd.f32 %v2282, %v2369
    %v2371 = vpop.f32.mrb[0].mxu0
    %2372 = vmatprep.mubr.bf16.mxu0 0
    %2373 = vmatmul.mubr.bf16.gmra.mrb[0].mxu0 %v2250
    %v2374 = vpop.f32.mrb[0].mxu0
    %v2375 = vadd.f32 %v2282, %v2374
    %v2376 = vpop.f32.mrb[0].mxu0
    %v2377 = vpop.f32.mrb[0].mxu0
    %v2378 = vadd.f32 %v2282, %v2377
    %v2379 = vpop.f32.mrb[0].mxu0
    %2380 = vdwg.mxu0
    %v2381 = vtanh.pop %v2319
    %v2382 = vtanh.pop %v2322
    %v2383 = vtanh.pop %v2327
    %v2384 = vtanh.pop %v2330
    %v2385 = vtanh.pop %v2335
    %v2386 = vtanh.pop %v2338
    %v2387 = vtanh.pop %v2343
    %v2388 = vtanh.pop %v2346
    %v2389 = vtanh.pop %v2351
    %v2390 = vtanh.pop %v2354
    %v2391 = vtanh.pop %v2359
    %v2392 = vtanh.pop %v2362
    %v2393 = vtanh.pop %v2367
    %v2394 = vtanh.pop %v2370
    %v2395 = vtanh.pop %v2375
    %v2396 = vtanh.pop %v2378
    %v2397 = vadd.f32 %v2381, %v1847
    %v2398 = vadd.f32 %v2382, %v1848
    %v2399 = vadd.f32 %v2383, %v1849
    %v2400 = vadd.f32 %v2384, %v1850
    %v2401 = vadd.f32 %v2385, %v1851
    %v2402 = vadd.f32 %v2386, %v1852
    %v2403 = vadd.f32 %v2387, %v1853
    %v2404 = vadd.f32 %v2388, %v1854
    %v2405 = vadd.f32 %v2389, %v1855
    %v2406 = vadd.f32 %v2390, %v1856
    %v2407 = vadd.f32 %v2391, %v1857
    %v2408 = vadd.f32 %v2392, %v1858
    %v2409 = vadd.f32 %v2393, %v1859
    %v2410 = vadd.f32 %v2394, %v1860
    %v2411 = vadd.f32 %v2395, %v1861
    %v2412 = vadd.f32 %v2396, %v1862
    %v2413 = vpack.c.bf16 %v2398, %v2397
    %v2414 = vpack.c.bf16 %v2400, %v2399
    %v2415 = vpack.c.bf16 %v2402, %v2401
    %v2416 = vpack.c.bf16 %v2404, %v2403
    %v2417 = vpack.c.bf16 %v2406, %v2405
    %v2418 = vpack.c.bf16 %v2408, %v2407
    %v2419 = vpack.c.bf16 %v2410, %v2409
    %v2420 = vpack.c.bf16 %v2412, %v2411
    %s2421 = scalar_lea.vmem [#allocation14], 128
    %v2422 = vld [vmem:[%s2421] sm:$0xff]
    %v2423 = vld [vmem:[%s2421 + $0x8] sm:$0xff]
    %v2424 = vld [vmem:[%s2421 + $0x10] sm:$0xff]
    %v2425 = vld [vmem:[%s2421 + $0x18] sm:$0xff]
    %v2426 = vld [vmem:[%s2421 + $0x20] sm:$0xff]
    %v2427 = vld [vmem:[%s2421 + $0x28] sm:$0xff]
    %v2428 = vld [vmem:[%s2421 + $0x30] sm:$0xff]
    %v2429 = vld [vmem:[%s2421 + $0x38] sm:$0xff]
    %v2430 = vld [vmem:[%s2421 + $0x40] sm:$0xff]
    %v2431 = vld [vmem:[%s2421 + $0x48] sm:$0xff]
    %v2432 = vld [vmem:[%s2421 + $0x50] sm:$0xff]
    %v2433 = vld [vmem:[%s2421 + $0x58] sm:$0xff]
    %v2434 = vld [vmem:[%s2421 + $0x60] sm:$0xff]
    %v2435 = vld [vmem:[%s2421 + $0x68] sm:$0xff]
    %v2436 = vld [vmem:[%s2421 + $0x70] sm:$0xff]
    %v2437 = vld [vmem:[%s2421 + $0x78] sm:$0xff]
    %v2438 = vpack.c.bf16 %v2423, %v2422
    %v2439 = vpack.c.bf16 %v2425, %v2424
    %v2440 = vpack.c.bf16 %v2427, %v2426
    %v2441 = vpack.c.bf16 %v2429, %v2428
    %v2442 = vpack.c.bf16 %v2431, %v2430
    %v2443 = vpack.c.bf16 %v2433, %v2432
    %v2444 = vpack.c.bf16 %v2435, %v2434
    %v2445 = vpack.c.bf16 %v2437, %v2436
    %2446 = vmatprep.subr.bf16.mxu0 0
    %2447 = vmatpush1.bf16.msra.mxu0 %v2438
    %2448 = vmatprep.subr.bf16.mxu0 0
    %2449 = vmatpush1.bf16.msra.mxu0 %v2439
    %2450 = vmatprep.subr.bf16.mxu0 0
    %2451 = vmatpush1.bf16.msra.mxu0 %v2440
    %2452 = vmatprep.subr.bf16.mxu0 0
    %2453 = vmatpush1.bf16.msra.mxu0 %v2441
    %2454 = vmatprep.subr.bf16.mxu0 0
    %2455 = vmatpush1.bf16.msra.mxu0 %v2442
    %2456 = vmatprep.subr.bf16.mxu0 0
    %2457 = vmatpush1.bf16.msra.mxu0 %v2443
    %2458 = vmatprep.subr.bf16.mxu0 0
    %2459 = vmatpush1.bf16.msra.mxu0 %v2444
    %2460 = vmatprep.subr.bf16.mxu0 0
    %2461 = vmatpush1.bf16.msra.mxu0 %v2445
    %2462 = vmatprep.subr.bf16.mxu0 0
    %2463 = vmatpush1.bf16.msra.mxu0 0
    %2464 = vmatprep.subr.bf16.mxu0 0
    %2465 = vmatpush1.bf16.msra.mxu0 0
    %2466 = vmatprep.subr.bf16.mxu0 0
    %2467 = vmatpush1.bf16.msra.mxu0 0
    %2468 = vmatprep.subr.bf16.mxu0 0
    %2469 = vmatpush1.bf16.msra.mxu0 0
    %2470 = vmatprep.subr.bf16.mxu0 0
    %2471 = vmatpush1.bf16.msra.mxu0 0
    %2472 = vmatprep.subr.bf16.mxu0 0
    %2473 = vmatpush1.bf16.msra.mxu0 0
    %2474 = vmatprep.subr.bf16.mxu0 0
    %2475 = vmatpush1.bf16.msra.mxu0 0
    %2476 = vmatprep.subr.bf16.mxu0 0
    %2477 = vmatpush1.bf16.msra.mxu0 0
    %2478 = vmatprep.mubr.bf16.mxu0 0
    %2479 = vmatmul.mubr.bf16.gmra.mrb[0].mxu0 %v2413
    %v2480 = vpop.f32.mrb[0].mxu0
    %v2481 = vadd.f32 0.0, %v2480
    %v2482 = vpop.f32.mrb[0].mxu0
    %v2483 = vpop.f32.mrb[0].mxu0
    %v2484 = vadd.f32 0.0, %v2483
    %v2485 = vpop.f32.mrb[0].mxu0
    %2486 = vmatprep.mubr.bf16.mxu0 0
    %2487 = vmatmul.mubr.bf16.gmra.mrb[0].mxu0 %v2414
    %v2488 = vpop.f32.mrb[0].mxu0
    %v2489 = vadd.f32 0.0, %v2488
    %v2490 = vpop.f32.mrb[0].mxu0
    %v2491 = vpop.f32.mrb[0].mxu0
    %v2492 = vadd.f32 0.0, %v2491
    %v2493 = vpop.f32.mrb[0].mxu0
    %2494 = vmatprep.mubr.bf16.mxu0 0
    %2495 = vmatmul.mubr.bf16.gmra.mrb[0].mxu0 %v2415
    %v2496 = vpop.f32.mrb[0].mxu0
    %v2497 = vadd.f32 0.0, %v2496
    %v2498 = vpop.f32.mrb[0].mxu0
    %v2499 = vpop.f32.mrb[0].mxu0
    %v2500 = vadd.f32 0.0, %v2499
    %v2501 = vpop.f32.mrb[0].mxu0
    %2502 = vmatprep.mubr.bf16.mxu0 0
    %2503 = vmatmul.mubr.bf16.gmra.mrb[0].mxu0 %v2416
    %v2504 = vpop.f32.mrb[0].mxu0
    %v2505 = vadd.f32 0.0, %v2504
    %v2506 = vpop.f32.mrb[0].mxu0
    %v2507 = vpop.f32.mrb[0].mxu0
    %v2508 = vadd.f32 0.0, %v2507
    %v2509 = vpop.f32.mrb[0].mxu0
    %2510 = vmatprep.mubr.bf16.mxu0 0
    %2511 = vmatmul.mubr.bf16.gmra.mrb[0].mxu0 %v2417
    %v2512 = vpop.f32.mrb[0].mxu0
    %v2513 = vadd.f32 0.0, %v2512
    %v2514 = vpop.f32.mrb[0].mxu0
    %v2515 = vpop.f32.mrb[0].mxu0
    %v2516 = vadd.f32 0.0, %v2515
    %v2517 = vpop.f32.mrb[0].mxu0
    %2518 = vmatprep.mubr.bf16.mxu0 0
    %2519 = vmatmul.mubr.bf16.gmra.mrb[0].mxu0 %v2418
    %v2520 = vpop.f32.mrb[0].mxu0
    %v2521 = vadd.f32 0.0, %v2520
    %v2522 = vpop.f32.mrb[0].mxu0
    %v2523 = vpop.f32.mrb[0].mxu0
    %v2524 = vadd.f32 0.0, %v2523
    %v2525 = vpop.f32.mrb[0].mxu0
    %2526 = vmatprep.mubr.bf16.mxu0 0
    %2527 = vmatmul.mubr.bf16.gmra.mrb[0].mxu0 %v2419
    %v2528 = vpop.f32.mrb[0].mxu0
    %v2529 = vadd.f32 0.0, %v2528
    %v2530 = vpop.f32.mrb[0].mxu0
    %v2531 = vpop.f32.mrb[0].mxu0
    %v2532 = vadd.f32 0.0, %v2531
    %v2533 = vpop.f32.mrb[0].mxu0
    %2534 = vmatprep.mubr.bf16.mxu0 0
    %2535 = vmatmul.mubr.bf16.gmra.mrb[0].mxu0 %v2420
    %v2536 = vpop.f32.mrb[0].mxu0
    %v2537 = vadd.f32 0.0, %v2536
    %v2538 = vpop.f32.mrb[0].mxu0
    %v2539 = vpop.f32.mrb[0].mxu0
    %v2540 = vadd.f32 0.0, %v2539
    %v2541 = vpop.f32.mrb[0].mxu0
    %2542 = vdwg.mxu0
    %v2543 = vpack.c.bf16 %v2484, %v2481
    %v2544 = vpack.c.bf16 %v2492, %v2489
    %v2545 = vpack.c.bf16 %v2500, %v2497
    %v2546 = vpack.c.bf16 %v2508, %v2505
    %v2547 = vpack.c.bf16 %v2516, %v2513
    %v2548 = vpack.c.bf16 %v2524, %v2521
    %v2549 = vpack.c.bf16 %v2532, %v2529
    %v2550 = vpack.c.bf16 %v2540, %v2537
    %s2551 = scalar_lea.vmem [#allocation16], 1
    %v2552 = vld [vmem:[%s2551] sm:$0x1]
    %v2554 = vlaneseq
    %v2555 = vshrl.u32 %v2554, 7
    %v2556 = vsub.s32 0, %v2555
    %v2557 = vrot.slane %v2552, %v2556
    %v2559 = vmul.f32 %v2481, %v2557
    %v2560 = vmul.f32 %v2484, %v2557
    %v2561 = vmul.f32 %v2489, %v2557
    %v2562 = vmul.f32 %v2492, %v2557
    %v2563 = vmul.f32 %v2497, %v2557
    %v2564 = vmul.f32 %v2500, %v2557
    %v2565 = vmul.f32 %v2505, %v2557
    %v2566 = vmul.f32 %v2508, %v2557
    %v2567 = vmul.f32 %v2513, %v2557
    %v2568 = vmul.f32 %v2516, %v2557
    %v2569 = vmul.f32 %v2521, %v2557
    %v2570 = vmul.f32 %v2524, %v2557
    %v2571 = vmul.f32 %v2529, %v2557
    %v2572 = vmul.f32 %v2532, %v2557
    %v2573 = vmul.f32 %v2537, %v2557
    %v2574 = vmul.f32 %v2540, %v2557
    %2575 = vadd.xlane.f32.xlu0 %v2559
    %v2576 = vpop.xlane.xlu0 %2575
    %2577 = vadd.xlane.f32.xlu0 %v2560
    %v2578 = vpop.xlane.xlu0 %2577
    %2579 = vadd.xlane.f32.xlu0 %v2561
    %v2580 = vpop.xlane.xlu0 %2579
    %2581 = vadd.xlane.f32.xlu0 %v2562
    %v2582 = vpop.xlane.xlu0 %2581
    %2583 = vadd.xlane.f32.xlu0 %v2563
    %v2584 = vpop.xlane.xlu0 %2583
    %2585 = vadd.xlane.f32.xlu0 %v2564
    %v2586 = vpop.xlane.xlu0 %2585
    %2587 = vadd.xlane.f32.xlu0 %v2565
    %v2588 = vpop.xlane.xlu0 %2587
    %2589 = vadd.xlane.f32.xlu0 %v2566
    %v2590 = vpop.xlane.xlu0 %2589
    %2591 = vadd.xlane.f32.xlu0 %v2567
    %v2592 = vpop.xlane.xlu0 %2591
    %2593 = vadd.xlane.f32.xlu0 %v2568
    %v2594 = vpop.xlane.xlu0 %2593
    %2595 = vadd.xlane.f32.xlu0 %v2569
    %v2596 = vpop.xlane.xlu0 %2595
    %2597 = vadd.xlane.f32.xlu0 %v2570
    %v2598 = vpop.xlane.xlu0 %2597
    %2599 = vadd.xlane.f32.xlu0 %v2571
    %v2600 = vpop.xlane.xlu0 %2599
    %2601 = vadd.xlane.f32.xlu0 %v2572
    %v2602 = vpop.xlane.xlu0 %2601
    %2603 = vadd.xlane.f32.xlu0 %v2573
    %v2604 = vpop.xlane.xlu0 %2603
    %2605 = vadd.xlane.f32.xlu0 %v2574
    %v2606 = vpop.xlane.xlu0 %2605
    %s2607 = scalar_lea.vmem [#allocation17], 1
    %v2608 = vld [vmem:[%s2607] sm:$0x1]
    %v2609 = vpack.c.bf16 %v2608, %v2608
    %2610 = vmatprep.subr.bf16.mxu0 0
    %2611 = vmatpush1.bf16.xpose.msra.mxu0 %v2543
    %2612 = vmatprep.subr.bf16.mxu0 0
    %2613 = vmatpush1.bf16.xpose.msra.mxu0 %v2544
    %2614 = vmatprep.subr.bf16.mxu0 0
    %2615 = vmatpush1.bf16.xpose.msra.mxu0 %v2545
    %2616 = vmatprep.subr.bf16.mxu0 0
    %2617 = vmatpush1.bf16.xpose.msra.mxu0 %v2546
    %2618 = vmatprep.subr.bf16.mxu0 0
    %2619 = vmatpush1.bf16.xpose.msra.mxu0 %v2547
    %2620 = vmatprep.subr.bf16.mxu0 0
    %2621 = vmatpush1.bf16.xpose.msra.mxu0 %v2548
    %2622 = vmatprep.subr.bf16.mxu0 0
    %2623 = vmatpush1.bf16.xpose.msra.mxu0 %v2549
    %2624 = vmatprep.subr.bf16.mxu0 0
    %2625 = vmatpush1.bf16.xpose.msra.mxu0 %v2550
    %2626 = vmatprep.subr.bf16.mxu0 0
    %2627 = vmatpush1.bf16.xpose.msra.mxu0 0
    %2628 = vmatprep.subr.bf16.mxu0 0
    %2629 = vmatpush1.bf16.xpose.msra.mxu0 0
    %2630 = vmatprep.subr.bf16.mxu0 0
    %2631 = vmatpush1.bf16.xpose.msra.mxu0 0
    %2632 = vmatprep.subr.bf16.mxu0 0
    %2633 = vmatpush1.bf16.xpose.msra.mxu0 0
    %2634 = vmatprep.subr.bf16.mxu0 0
    %2635 = vmatpush1.bf16.xpose.msra.mxu0 0
    %2636 = vmatprep.subr.bf16.mxu0 0
    %2637 = vmatpush1.bf16.xpose.msra.mxu0 0
    %2638 = vmatprep.subr.bf16.mxu0 0
    %2639 = vmatpush1.bf16.xpose.msra.mxu0 0
    %2640 = vmatprep.subr.bf16.mxu0 0
    %2641 = vmatpush1.bf16.xpose.msra.mxu0 0
    %2642 = vmatprep.mubr.bf16.mxu0 0
    %2643 = vmatmul.mubr.bf16.gmra.mrb[0].mxu0 %v2609
    %v2644 = vpop.f32.mrb[0].mxu0
    %v2645 = vadd.f32 0.0, %v2644
    %v2646 = vpop.f32.mrb[0].mxu0
    %v2647 = vpop.f32.mrb[0].mxu0
    %v2648 = vpop.f32.mrb[0].mxu0
    %2649 = vdwg.mxu0
    %v2650 = vlaneseq
    %v2651 = vshrl.u32 %v2650, 7
    %v2652 = vsub.s32 0, %v2651
    %v2653 = vrot.slane %v2645, %v2652
    %v2654 = vadd.f32 %v2576, %v2653
    %v2655 = vadd.f32 %v2578, %v2653
    %v2656 = vadd.f32 %v2580, %v2653
    %v2657 = vadd.f32 %v2582, %v2653
    %v2658 = vadd.f32 %v2584, %v2653
    %v2659 = vadd.f32 %v2586, %v2653
    %v2660 = vadd.f32 %v2588, %v2653
    %v2661 = vadd.f32 %v2590, %v2653
    %v2662 = vadd.f32 %v2592, %v2653
    %v2663 = vadd.f32 %v2594, %v2653
    %v2664 = vadd.f32 %v2596, %v2653
    %v2665 = vadd.f32 %v2598, %v2653
    %v2666 = vadd.f32 %v2600, %v2653
    %v2667 = vadd.f32 %v2602, %v2653
    %v2668 = vadd.f32 %v2604, %v2653
    %v2669 = vadd.f32 %v2606, %v2653
    %vm2670 = vcmp.gt.f32.partialorder %v2654, 0.0
    %vm2671 = vcmp.gt.f32.partialorder %v2655, 0.0
    %vm2672 = vcmp.gt.f32.partialorder %v2656, 0.0
    %vm2673 = vcmp.gt.f32.partialorder %v2657, 0.0
    %vm2674 = vcmp.gt.f32.partialorder %v2658, 0.0
    %vm2675 = vcmp.gt.f32.partialorder %v2659, 0.0
    %vm2676 = vcmp.gt.f32.partialorder %v2660, 0.0
    %vm2677 = vcmp.gt.f32.partialorder %v2661, 0.0
    %vm2678 = vcmp.gt.f32.partialorder %v2662, 0.0
    %vm2679 = vcmp.gt.f32.partialorder %v2663, 0.0
    %vm2680 = vcmp.gt.f32.partialorder %v2664, 0.0
    %vm2681 = vcmp.gt.f32.partialorder %v2665, 0.0
    %vm2682 = vcmp.gt.f32.partialorder %v2666, 0.0
    %vm2683 = vcmp.gt.f32.partialorder %v2667, 0.0
    %vm2684 = vcmp.gt.f32.partialorder %v2668, 0.0
    %vm2685 = vcmp.gt.f32.partialorder %v2669, 0.0
    %v2686 = vmul.f32 %v2654, 0.2
    %v2687 = vmul.f32 %v2655, 0.2
    %v2688 = vmul.f32 %v2656, 0.2
    %v2689 = vmul.f32 %v2657, 0.2
    %v2690 = vmul.f32 %v2658, 0.2
    %v2691 = vmul.f32 %v2659, 0.2
    %v2692 = vmul.f32 %v2660, 0.2
    %v2693 = vmul.f32 %v2661, 0.2
    %v2694 = vmul.f32 %v2662, 0.2
    %v2695 = vmul.f32 %v2663, 0.2
    %v2696 = vmul.f32 %v2664, 0.2
    %v2697 = vmul.f32 %v2665, 0.2
    %v2698 = vmul.f32 %v2666, 0.2
    %v2699 = vmul.f32 %v2667, 0.2
    %v2700 = vmul.f32 %v2668, 0.2
    %v2701 = vmul.f32 %v2669, 0.2
    %v2702 = vsel %vm2670, %v2654, %v2686
    %v2703 = vsel %vm2671, %v2655, %v2687
    %v2704 = vsel %vm2672, %v2656, %v2688
    %v2705 = vsel %vm2673, %v2657, %v2689
    %v2706 = vsel %vm2674, %v2658, %v2690
    %v2707 = vsel %vm2675, %v2659, %v2691
    %v2708 = vsel %vm2676, %v2660, %v2692
    %v2709 = vsel %vm2677, %v2661, %v2693
    %v2710 = vsel %vm2678, %v2662, %v2694
    %v2711 = vsel %vm2679, %v2663, %v2695
    %v2712 = vsel %vm2680, %v2664, %v2696
    %v2713 = vsel %vm2681, %v2665, %v2697
    %v2714 = vsel %vm2682, %v2666, %v2698
    %v2715 = vsel %vm2683, %v2667, %v2699
    %v2716 = vsel %vm2684, %v2668, %v2700
    %v2717 = vsel %vm2685, %v2669, %v2701
    %v2718 = vadd.f32 %v2702, %v366
    %v2719 = vadd.f32 %v2703, %v367
    %v2720 = vadd.f32 %v2704, %v368
    %v2721 = vadd.f32 %v2705, %v369
    %v2722 = vadd.f32 %v2706, %v370
    %v2723 = vadd.f32 %v2707, %v371
    %v2724 = vadd.f32 %v2708, %v372
    %v2725 = vadd.f32 %v2709, %v373
    %v2726 = vadd.f32 %v2710, %v374
    %v2727 = vadd.f32 %v2711, %v375
    %v2728 = vadd.f32 %v2712, %v376
    %v2729 = vadd.f32 %v2713, %v377
    %v2730 = vadd.f32 %v2714, %v378
    %v2731 = vadd.f32 %v2715, %v379
    %v2732 = vadd.f32 %v2716, %v380
    %v2733 = vadd.f32 %v2717, %v381
    %2734 = vmax.xlane.f32.xlu0 %v2718
    %v2735 = vpop.xlane.xlu0 %2734
    %2736 = vmax.xlane.f32.xlu0 %v2719
    %v2737 = vpop.xlane.xlu0 %2736
    %2738 = vmax.xlane.f32.xlu0 %v2720
    %v2739 = vpop.xlane.xlu0 %2738
    %2740 = vmax.xlane.f32.xlu0 %v2721
    %v2741 = vpop.xlane.xlu0 %2740
    %2742 = vmax.xlane.f32.xlu0 %v2722
    %v2743 = vpop.xlane.xlu0 %2742
    %2744 = vmax.xlane.f32.xlu0 %v2723
    %v2745 = vpop.xlane.xlu0 %2744
    %2746 = vmax.xlane.f32.xlu0 %v2724
    %v2747 = vpop.xlane.xlu0 %2746
    %2748 = vmax.xlane.f32.xlu0 %v2725
    %v2749 = vpop.xlane.xlu0 %2748
    %2750 = vmax.xlane.f32.xlu0 %v2726
    %v2751 = vpop.xlane.xlu0 %2750
    %2752 = vmax.xlane.f32.xlu0 %v2727
    %v2753 = vpop.xlane.xlu0 %2752
    %2754 = vmax.xlane.f32.xlu0 %v2728
    %v2755 = vpop.xlane.xlu0 %2754
    %2756 = vmax.xlane.f32.xlu0 %v2729
    %v2757 = vpop.xlane.xlu0 %2756
    %2758 = vmax.xlane.f32.xlu0 %v2730
    %v2759 = vpop.xlane.xlu0 %2758
    %2760 = vmax.xlane.f32.xlu0 %v2731
    %v2761 = vpop.xlane.xlu0 %2760
    %2762 = vmax.xlane.f32.xlu0 %v2732
    %v2763 = vpop.xlane.xlu0 %2762
    %2764 = vmax.xlane.f32.xlu0 %v2733
    %v2765 = vpop.xlane.xlu0 %2764
    %v2766 = vsub.f32 %v2718, %v2735
    %v2767 = vsub.f32 %v2719, %v2737
    %v2768 = vsub.f32 %v2720, %v2739
    %v2769 = vsub.f32 %v2721, %v2741
    %v2770 = vsub.f32 %v2722, %v2743
    %v2771 = vsub.f32 %v2723, %v2745
    %v2772 = vsub.f32 %v2724, %v2747
    %v2773 = vsub.f32 %v2725, %v2749
    %v2774 = vsub.f32 %v2726, %v2751
    %v2775 = vsub.f32 %v2727, %v2753
    %v2776 = vsub.f32 %v2728, %v2755
    %v2777 = vsub.f32 %v2729, %v2757
    %v2778 = vsub.f32 %v2730, %v2759
    %v2779 = vsub.f32 %v2731, %v2761
    %v2780 = vsub.f32 %v2732, %v2763
    %v2781 = vsub.f32 %v2733, %v2765
    %v2782 = vmul.f32 %v2766, 1.442695
    %v2783 = vpow.pop %v2782
    %v2784 = vmul.f32 %v2767, 1.442695
    %v2785 = vpow.pop %v2784
    %v2786 = vmul.f32 %v2768, 1.442695
    %v2787 = vpow.pop %v2786
    %v2788 = vmul.f32 %v2769, 1.442695
    %v2789 = vpow.pop %v2788
    %v2790 = vmul.f32 %v2770, 1.442695
    %v2791 = vpow.pop %v2790
    %v2792 = vmul.f32 %v2771, 1.442695
    %v2793 = vpow.pop %v2792
    %v2794 = vmul.f32 %v2772, 1.442695
    %v2795 = vpow.pop %v2794
    %v2796 = vmul.f32 %v2773, 1.442695
    %v2797 = vpow.pop %v2796
    %v2798 = vmul.f32 %v2774, 1.442695
    %v2799 = vpow.pop %v2798
    %v2800 = vmul.f32 %v2775, 1.442695
    %v2801 = vpow.pop %v2800
    %v2802 = vmul.f32 %v2776, 1.442695
    %v2803 = vpow.pop %v2802
    %v2804 = vmul.f32 %v2777, 1.442695
    %v2805 = vpow.pop %v2804
    %v2806 = vmul.f32 %v2778, 1.442695
    %v2807 = vpow.pop %v2806
    %v2808 = vmul.f32 %v2779, 1.442695
    %v2809 = vpow.pop %v2808
    %v2810 = vmul.f32 %v2780, 1.442695
    %v2811 = vpow.pop %v2810
    %v2812 = vmul.f32 %v2781, 1.442695
    %v2813 = vpow.pop %v2812
    %v2814 = vmul.f32 %v2783, %v334
    %v2815 = vmul.f32 %v2785, %v335
    %v2816 = vmul.f32 %v2787, %v336
    %v2817 = vmul.f32 %v2789, %v337
    %v2818 = vmul.f32 %v2791, %v338
    %v2819 = vmul.f32 %v2793, %v339
    %v2820 = vmul.f32 %v2795, %v340
    %v2821 = vmul.f32 %v2797, %v341
    %v2822 = vmul.f32 %v2799, %v342
    %v2823 = vmul.f32 %v2801, %v343
    %v2824 = vmul.f32 %v2803, %v344
    %v2825 = vmul.f32 %v2805, %v345
    %v2826 = vmul.f32 %v2807, %v346
    %v2827 = vmul.f32 %v2809, %v347
    %v2828 = vmul.f32 %v2811, %v348
    %v2829 = vmul.f32 %v2813, %v349
    %2830 = vadd.xlane.f32.xlu0 %v2814
    %v2831 = vpop.xlane.xlu0 %2830
    %2832 = vadd.xlane.f32.xlu0 %v2815
    %v2833 = vpop.xlane.xlu0 %2832
    %2834 = vadd.xlane.f32.xlu0 %v2816
    %v2835 = vpop.xlane.xlu0 %2834
    %2836 = vadd.xlane.f32.xlu0 %v2817
    %v2837 = vpop.xlane.xlu0 %2836
    %2838 = vadd.xlane.f32.xlu0 %v2818
    %v2839 = vpop.xlane.xlu0 %2838
    %2840 = vadd.xlane.f32.xlu0 %v2819
    %v2841 = vpop.xlane.xlu0 %2840
    %2842 = vadd.xlane.f32.xlu0 %v2820
    %v2843 = vpop.xlane.xlu0 %2842
    %2844 = vadd.xlane.f32.xlu0 %v2821
    %v2845 = vpop.xlane.xlu0 %2844
    %2846 = vadd.xlane.f32.xlu0 %v2822
    %v2847 = vpop.xlane.xlu0 %2846
    %2848 = vadd.xlane.f32.xlu0 %v2823
    %v2849 = vpop.xlane.xlu0 %2848
    %2850 = vadd.xlane.f32.xlu0 %v2824
    %v2851 = vpop.xlane.xlu0 %2850
    %2852 = vadd.xlane.f32.xlu0 %v2825
    %v2853 = vpop.xlane.xlu0 %2852
    %2854 = vadd.xlane.f32.xlu0 %v2826
    %v2855 = vpop.xlane.xlu0 %2854
    %2856 = vadd.xlane.f32.xlu0 %v2827
    %v2857 = vpop.xlane.xlu0 %2856
    %2858 = vadd.xlane.f32.xlu0 %v2828
    %v2859 = vpop.xlane.xlu0 %2858
    %2860 = vadd.xlane.f32.xlu0 %v2829
    %v2861 = vpop.xlane.xlu0 %2860
    %v2862 = vmax.f32 %v2831, 1e-20
    %v2863 = vmax.f32 %v2833, 1e-20
    %v2864 = vmax.f32 %v2835, 1e-20
    %v2865 = vmax.f32 %v2837, 1e-20
    %v2866 = vmax.f32 %v2839, 1e-20
    %v2867 = vmax.f32 %v2841, 1e-20
    %v2868 = vmax.f32 %v2843, 1e-20
    %v2869 = vmax.f32 %v2845, 1e-20
    %v2870 = vmax.f32 %v2847, 1e-20
    %v2871 = vmax.f32 %v2849, 1e-20
    %v2872 = vmax.f32 %v2851, 1e-20
    %v2873 = vmax.f32 %v2853, 1e-20
    %v2874 = vmax.f32 %v2855, 1e-20
    %v2875 = vmax.f32 %v2857, 1e-20
    %v2876 = vmax.f32 %v2859, 1e-20
    %v2877 = vmax.f32 %v2861, 1e-20
    %v2878 = vrcp.pop %v2862
    %v2879 = vrcp.pop %v2863
    %v2880 = vrcp.pop %v2864
    %v2881 = vrcp.pop %v2865
    %v2882 = vrcp.pop %v2866
    %v2883 = vrcp.pop %v2867
    %v2884 = vrcp.pop %v2868
    %v2885 = vrcp.pop %v2869
    %v2886 = vrcp.pop %v2870
    %v2887 = vrcp.pop %v2871
    %v2888 = vrcp.pop %v2872
    %v2889 = vrcp.pop %v2873
    %v2890 = vrcp.pop %v2874
    %v2891 = vrcp.pop %v2875
    %v2892 = vrcp.pop %v2876
    %v2893 = vrcp.pop %v2877
    %v2894 = vmul.f32 %v2814, %v2878
    %v2895 = vmul.f32 %v2815, %v2879
    %v2896 = vmul.f32 %v2816, %v2880
    %v2897 = vmul.f32 %v2817, %v2881
    %v2898 = vmul.f32 %v2818, %v2882
    %v2899 = vmul.f32 %v2819, %v2883
    %v2900 = vmul.f32 %v2820, %v2884
    %v2901 = vmul.f32 %v2821, %v2885
    %v2902 = vmul.f32 %v2822, %v2886
    %v2903 = vmul.f32 %v2823, %v2887
    %v2904 = vmul.f32 %v2824, %v2888
    %v2905 = vmul.f32 %v2825, %v2889
    %v2906 = vmul.f32 %v2826, %v2890
    %v2907 = vmul.f32 %v2827, %v2891
    %v2908 = vmul.f32 %v2828, %v2892
    %v2909 = vmul.f32 %v2829, %v2893
    %v2910 = vpack.c.bf16 %v2895, %v2894
    %v2911 = vpack.c.bf16 %v2897, %v2896
    %v2912 = vpack.c.bf16 %v2899, %v2898
    %v2913 = vpack.c.bf16 %v2901, %v2900
    %v2914 = vpack.c.bf16 %v2903, %v2902
    %v2915 = vpack.c.bf16 %v2905, %v2904
    %v2916 = vpack.c.bf16 %v2907, %v2906
    %v2917 = vpack.c.bf16 %v2909, %v2908
    %2918 = vmatprep.subr.bf16.mxu0 0
    %2919 = vmatpush1.bf16.msra.mxu0 %v2543
    %2920 = vmatprep.subr.bf16.mxu0 0
    %2921 = vmatpush1.bf16.msra.mxu0 %v2544
    %2922 = vmatprep.subr.bf16.mxu0 0
    %2923 = vmatpush1.bf16.msra.mxu0 %v2545
    %2924 = vmatprep.subr.bf16.mxu0 0
    %2925 = vmatpush1.bf16.msra.mxu0 %v2546
    %2926 = vmatprep.subr.bf16.mxu0 0
    %2927 = vmatpush1.bf16.msra.mxu0 %v2547
    %2928 = vmatprep.subr.bf16.mxu0 0
    %2929 = vmatpush1.bf16.msra.mxu0 %v2548
    %2930 = vmatprep.subr.bf16.mxu0 0
    %2931 = vmatpush1.bf16.msra.mxu0 %v2549
    %2932 = vmatprep.subr.bf16.mxu0 0
    %2933 = vmatpush1.bf16.msra.mxu0 %v2550
    %2934 = vmatprep.subr.bf16.mxu0 0
    %2935 = vmatpush1.bf16.msra.mxu0 0
    %2936 = vmatprep.subr.bf16.mxu0 0
    %2937 = vmatpush1.bf16.msra.mxu0 0
    %2938 = vmatprep.subr.bf16.mxu0 0
    %2939 = vmatpush1.bf16.msra.mxu0 0
    %2940 = vmatprep.subr.bf16.mxu0 0
    %2941 = vmatpush1.bf16.msra.mxu0 0
    %2942 = vmatprep.subr.bf16.mxu0 0
    %2943 = vmatpush1.bf16.msra.mxu0 0
    %2944 = vmatprep.subr.bf16.mxu0 0
    %2945 = vmatpush1.bf16.msra.mxu0 0
    %2946 = vmatprep.subr.bf16.mxu0 0
    %2947 = vmatpush1.bf16.msra.mxu0 0
    %2948 = vmatprep.subr.bf16.mxu0 0
    %2949 = vmatpush1.bf16.msra.mxu0 0
    %2950 = vmatprep.mubr.bf16.mxu0 0
    %2951 = vmatmul.mubr.bf16.gmra.mrb[0].mxu0 %v2910
    %v2952 = vpop.f32.mrb[0].mxu0
    %v2953 = vadd.f32 0.0, %v2952
    %v2954 = vpop.f32.mrb[0].mxu0
    %v2955 = vpop.f32.mrb[0].mxu0
    %v2956 = vadd.f32 0.0, %v2955
    %v2957 = vpop.f32.mrb[0].mxu0
    %2958 = vmatprep.mubr.bf16.mxu0 0
    %2959 = vmatmul.mubr.bf16.gmra.mrb[0].mxu0 %v2911
    %v2960 = vpop.f32.mrb[0].mxu0
    %v2961 = vadd.f32 0.0, %v2960
    %v2962 = vpop.f32.mrb[0].mxu0
    %v2963 = vpop.f32.mrb[0].mxu0
    %v2964 = vadd.f32 0.0, %v2963
    %v2965 = vpop.f32.mrb[0].mxu0
    %2966 = vmatprep.mubr.bf16.mxu0 0
    %2967 = vmatmul.mubr.bf16.gmra.mrb[0].mxu0 %v2912
    %v2968 = vpop.f32.mrb[0].mxu0
    %v2969 = vadd.f32 0.0, %v2968
    %v2970 = vpop.f32.mrb[0].mxu0
    %v2971 = vpop.f32.mrb[0].mxu0
    %v2972 = vadd.f32 0.0, %v2971
    %v2973 = vpop.f32.mrb[0].mxu0
    %2974 = vmatprep.mubr.bf16.mxu0 0
    %2975 = vmatmul.mubr.bf16.gmra.mrb[0].mxu0 %v2913
    %v2976 = vpop.f32.mrb[0].mxu0
    %v2977 = vadd.f32 0.0, %v2976
    %v2978 = vpop.f32.mrb[0].mxu0
    %v2979 = vpop.f32.mrb[0].mxu0
    %v2980 = vadd.f32 0.0, %v2979
    %v2981 = vpop.f32.mrb[0].mxu0
    %2982 = vmatprep.mubr.bf16.mxu0 0
    %2983 = vmatmul.mubr.bf16.gmra.mrb[0].mxu0 %v2914
    %v2984 = vpop.f32.mrb[0].mxu0
    %v2985 = vadd.f32 0.0, %v2984
    %v2986 = vpop.f32.mrb[0].mxu0
    %v2987 = vpop.f32.mrb[0].mxu0
    %v2988 = vadd.f32 0.0, %v2987
    %v2989 = vpop.f32.mrb[0].mxu0
    %2990 = vmatprep.mubr.bf16.mxu0 0
    %2991 = vmatmul.mubr.bf16.gmra.mrb[0].mxu0 %v2915
    %v2992 = vpop.f32.mrb[0].mxu0
    %v2993 = vadd.f32 0.0, %v2992
    %v2994 = vpop.f32.mrb[0].mxu0
    %v2995 = vpop.f32.mrb[0].mxu0
    %v2996 = vadd.f32 0.0, %v2995
    %v2997 = vpop.f32.mrb[0].mxu0
    %2998 = vmatprep.mubr.bf16.mxu0 0
    %2999 = vmatmul.mubr.bf16.gmra.mrb[0].mxu0 %v2916
    %v3000 = vpop.f32.mrb[0].mxu0
    %v3001 = vadd.f32 0.0, %v3000
    %v3002 = vpop.f32.mrb[0].mxu0
    %v3003 = vpop.f32.mrb[0].mxu0
    %v3004 = vadd.f32 0.0, %v3003
    %v3005 = vpop.f32.mrb[0].mxu0
    %3006 = vmatprep.mubr.bf16.mxu0 0
    %3007 = vmatmul.mubr.bf16.gmra.mrb[0].mxu0 %v2917
    %v3008 = vpop.f32.mrb[0].mxu0
    %v3009 = vadd.f32 0.0, %v3008
    %v3010 = vpop.f32.mrb[0].mxu0
    %v3011 = vpop.f32.mrb[0].mxu0
    %v3012 = vadd.f32 0.0, %v3011
    %v3013 = vpop.f32.mrb[0].mxu0
    %3014 = vdwg.mxu0
    %v3015 = vmax.f32 %v2953, 0.0
    %v3016 = vmax.f32 %v2956, 0.0
    %v3017 = vmax.f32 %v2961, 0.0
    %v3018 = vmax.f32 %v2964, 0.0
    %v3019 = vmax.f32 %v2969, 0.0
    %v3020 = vmax.f32 %v2972, 0.0
    %v3021 = vmax.f32 %v2977, 0.0
    %v3022 = vmax.f32 %v2980, 0.0
    %v3023 = vmax.f32 %v2985, 0.0
    %v3024 = vmax.f32 %v2988, 0.0
    %v3025 = vmax.f32 %v2993, 0.0
    %v3026 = vmax.f32 %v2996, 0.0
    %v3027 = vmax.f32 %v3001, 0.0
    %v3028 = vmax.f32 %v3004, 0.0
    %v3029 = vmax.f32 %v3009, 0.0
    %v3030 = vmax.f32 %v3012, 0.0
    %v3031 = vpack.c.bf16 %v1800, %v1799
    %v3032 = vpack.c.bf16 %v3016, %v3015
    %v3033 = vpack.c.bf16 %v1802, %v1801
    %v3034 = vpack.c.bf16 %v3018, %v3017
    %v3035 = vpack.c.bf16 %v1804, %v1803
    %v3036 = vpack.c.bf16 %v3020, %v3019
    %v3037 = vpack.c.bf16 %v1806, %v1805
    %v3038 = vpack.c.bf16 %v3022, %v3021
    %v3039 = vpack.c.bf16 %v1808, %v1807
    %v3040 = vpack.c.bf16 %v3024, %v3023
    %v3041 = vpack.c.bf16 %v1810, %v1809
    %v3042 = vpack.c.bf16 %v3026, %v3025
    %v3043 = vpack.c.bf16 %v1812, %v1811
    %v3044 = vpack.c.bf16 %v3028, %v3027
    %v3045 = vpack.c.bf16 %v1814, %v1813
    %v3046 = vpack.c.bf16 %v3030, %v3029
    %v3047 = vld [vmem:[#allocation19] sm:$0xff]
    %v3048 = vld [vmem:[#allocation19 + $0x8] sm:$0xff]
    %v3049 = vld [vmem:[#allocation19 + $0x10] sm:$0xff]
    %v3050 = vld [vmem:[#allocation19 + $0x18] sm:$0xff]
    %v3051 = vld [vmem:[#allocation19 + $0x20] sm:$0xff]
    %v3052 = vld [vmem:[#allocation19 + $0x28] sm:$0xff]
    %v3053 = vld [vmem:[#allocation19 + $0x30] sm:$0xff]
    %v3054 = vld [vmem:[#allocation19 + $0x38] sm:$0xff]
    %v3055 = vld [vmem:[#allocation19 + $0x40] sm:$0xff]
    %v3056 = vld [vmem:[#allocation19 + $0x48] sm:$0xff]
    %v3057 = vld [vmem:[#allocation19 + $0x50] sm:$0xff]
    %v3058 = vld [vmem:[#allocation19 + $0x58] sm:$0xff]
    %v3059 = vld [vmem:[#allocation19 + $0x60] sm:$0xff]
    %v3060 = vld [vmem:[#allocation19 + $0x68] sm:$0xff]
    %v3061 = vld [vmem:[#allocation19 + $0x70] sm:$0xff]
    %v3062 = vld [vmem:[#allocation19 + $0x78] sm:$0xff]
    %v3063 = vld [vmem:[#allocation19 + $0x80] sm:$0xff]
    %v3064 = vld [vmem:[#allocation19 + $0x88] sm:$0xff]
    %v3065 = vld [vmem:[#allocation19 + $0x90] sm:$0xff]
    %v3066 = vld [vmem:[#allocation19 + $0x98] sm:$0xff]
    %v3067 = vld [vmem:[#allocation19 + $0xa0] sm:$0xff]
    %v3068 = vld [vmem:[#allocation19 + $0xa8] sm:$0xff]
    %v3069 = vld [vmem:[#allocation19 + $0xb0] sm:$0xff]
    %v3070 = vld [vmem:[#allocation19 + $0xb8] sm:$0xff]
    %v3071 = vld [vmem:[#allocation19 + $0xc0] sm:$0xff]
    %v3072 = vld [vmem:[#allocation19 + $0xc8] sm:$0xff]
    %v3073 = vld [vmem:[#allocation19 + $0xd0] sm:$0xff]
    %v3074 = vld [vmem:[#allocation19 + $0xd8] sm:$0xff]
    %v3075 = vld [vmem:[#allocation19 + $0xe0] sm:$0xff]
    %v3076 = vld [vmem:[#allocation19 + $0xe8] sm:$0xff]
    %v3077 = vld [vmem:[#allocation19 + $0xf0] sm:$0xff]
    %v3078 = vld [vmem:[#allocation19 + $0xf8] sm:$0xff]
    %v3079 = vpack.c.bf16 %v3048, %v3047
    %v3080 = vpack.c.bf16 %v3050, %v3049
    %v3081 = vpack.c.bf16 %v3052, %v3051
    %v3082 = vpack.c.bf16 %v3054, %v3053
    %v3083 = vpack.c.bf16 %v3056, %v3055
    %v3084 = vpack.c.bf16 %v3058, %v3057
    %v3085 = vpack.c.bf16 %v3060, %v3059
    %v3086 = vpack.c.bf16 %v3062, %v3061
    %v3087 = vpack.c.bf16 %v3064, %v3063
    %v3088 = vpack.c.bf16 %v3066, %v3065
    %v3089 = vpack.c.bf16 %v3068, %v3067
    %v3090 = vpack.c.bf16 %v3070, %v3069
    %v3091 = vpack.c.bf16 %v3072, %v3071
    %v3092 = vpack.c.bf16 %v3074, %v3073
    %v3093 = vpack.c.bf16 %v3076, %v3075
    %v3094 = vpack.c.bf16 %v3078, %v3077
    %v3095 = vld [vmem:[#allocation20] sm:$0x1]
    %v3097 = vlaneseq
    %v3098 = vshrl.u32 %v3097, 7
    %v3099 = vsub.s32 0, %v3098
    %v3100 = vrot.slane %v3095, %v3099
    %3102 = vmatprep.subr.bf16.mxu0 0
    %3103 = vmatpush1.bf16.msra.mxu0 %v3079
    %3104 = vmatprep.subr.bf16.mxu0 0
    %3105 = vmatpush1.bf16.msra.mxu0 %v3080
    %3106 = vmatprep.subr.bf16.mxu0 0
    %3107 = vmatpush1.bf16.msra.mxu0 %v3081
    %3108 = vmatprep.subr.bf16.mxu0 0
    %3109 = vmatpush1.bf16.msra.mxu0 %v3082
    %3110 = vmatprep.subr.bf16.mxu0 0
    %3111 = vmatpush1.bf16.msra.mxu0 %v3083
    %3112 = vmatprep.subr.bf16.mxu0 0
    %3113 = vmatpush1.bf16.msra.mxu0 %v3084
    %3114 = vmatprep.subr.bf16.mxu0 0
    %3115 = vmatpush1.bf16.msra.mxu0 %v3085
    %3116 = vmatprep.subr.bf16.mxu0 0
    %3117 = vmatpush1.bf16.msra.mxu0 %v3086
    %3118 = vmatprep.subr.bf16.mxu0 0
    %3119 = vmatpush1.bf16.msra.mxu0 %v3087
    %3120 = vmatprep.subr.bf16.mxu0 0
    %3121 = vmatpush1.bf16.msra.mxu0 %v3088
    %3122 = vmatprep.subr.bf16.mxu0 0
    %3123 = vmatpush1.bf16.msra.mxu0 %v3089
    %3124 = vmatprep.subr.bf16.mxu0 0
    %3125 = vmatpush1.bf16.msra.mxu0 %v3090
    %3126 = vmatprep.subr.bf16.mxu0 0
    %3127 = vmatpush1.bf16.msra.mxu0 %v3091
    %3128 = vmatprep.subr.bf16.mxu0 0
    %3129 = vmatpush1.bf16.msra.mxu0 %v3092
    %3130 = vmatprep.subr.bf16.mxu0 0
    %3131 = vmatpush1.bf16.msra.mxu0 %v3093
    %3132 = vmatprep.subr.bf16.mxu0 0
    %3133 = vmatpush1.bf16.msra.mxu0 %v3094
    %3134 = vmatprep.mubr.bf16.mxu0 %v3032
    %3135 = vmatmul.mubr.bf16.gmra.mrb[0].mxu0 %v3031
    %v3136 = vpop.f32.mrb[0].mxu0
    %v3137 = vadd.f32 %v3100, %v3136
    %v3138 = vpop.f32.mrb[0].mxu0
    %v3139 = vpop.f32.mrb[0].mxu0
    %v3140 = vadd.f32 %v3100, %v3139
    %v3141 = vpop.f32.mrb[0].mxu0
    %3142 = vmatprep.mubr.bf16.mxu0 %v3034
    %3143 = vmatmul.mubr.bf16.gmra.mrb[0].mxu0 %v3033
    %v3144 = vpop.f32.mrb[0].mxu0
    %v3145 = vadd.f32 %v3100, %v3144
    %v3146 = vpop.f32.mrb[0].mxu0
    %v3147 = vpop.f32.mrb[0].mxu0
    %v3148 = vadd.f32 %v3100, %v3147
    %v3149 = vpop.f32.mrb[0].mxu0
    %3150 = vmatprep.mubr.bf16.mxu0 %v3036
    %3151 = vmatmul.mubr.bf16.gmra.mrb[0].mxu0 %v3035
    %v3152 = vpop.f32.mrb[0].mxu0
    %v3153 = vadd.f32 %v3100, %v3152
    %v3154 = vpop.f32.mrb[0].mxu0
    %v3155 = vpop.f32.mrb[0].mxu0
    %v3156 = vadd.f32 %v3100, %v3155
    %v3157 = vpop.f32.mrb[0].mxu0
    %3158 = vmatprep.mubr.bf16.mxu0 %v3038
    %3159 = vmatmul.mubr.bf16.gmra.mrb[0].mxu0 %v3037
    %v3160 = vpop.f32.mrb[0].mxu0
    %v3161 = vadd.f32 %v3100, %v3160
    %v3162 = vpop.f32.mrb[0].mxu0
    %v3163 = vpop.f32.mrb[0].mxu0
    %v3164 = vadd.f32 %v3100, %v3163
    %v3165 = vpop.f32.mrb[0].mxu0
    %3166 = vmatprep.mubr.bf16.mxu0 %v3040
    %3167 = vmatmul.mubr.bf16.gmra.mrb[0].mxu0 %v3039
    %v3168 = vpop.f32.mrb[0].mxu0
    %v3169 = vadd.f32 %v3100, %v3168
    %v3170 = vpop.f32.mrb[0].mxu0
    %v3171 = vpop.f32.mrb[0].mxu0
    %v3172 = vadd.f32 %v3100, %v3171
    %v3173 = vpop.f32.mrb[0].mxu0
    %3174 = vmatprep.mubr.bf16.mxu0 %v3042
    %3175 = vmatmul.mubr.bf16.gmra.mrb[0].mxu0 %v3041
    %v3176 = vpop.f32.mrb[0].mxu0
    %v3177 = vadd.f32 %v3100, %v3176
    %v3178 = vpop.f32.mrb[0].mxu0
    %v3179 = vpop.f32.mrb[0].mxu0
    %v3180 = vadd.f32 %v3100, %v3179
    %v3181 = vpop.f32.mrb[0].mxu0
    %3182 = vmatprep.mubr.bf16.mxu0 %v3044
    %3183 = vmatmul.mubr.bf16.gmra.mrb[0].mxu0 %v3043
    %v3184 = vpop.f32.mrb[0].mxu0
    %v3185 = vadd.f32 %v3100, %v3184
    %v3186 = vpop.f32.mrb[0].mxu0
    %v3187 = vpop.f32.mrb[0].mxu0
    %v3188 = vadd.f32 %v3100, %v3187
    %v3189 = vpop.f32.mrb[0].mxu0
    %3190 = vmatprep.mubr.bf16.mxu0 %v3046
    %3191 = vmatmul.mubr.bf16.gmra.mrb[0].mxu0 %v3045
    %v3192 = vpop.f32.mrb[0].mxu0
    %v3193 = vadd.f32 %v3100, %v3192
    %v3194 = vpop.f32.mrb[0].mxu0
    %v3195 = vpop.f32.mrb[0].mxu0
    %v3196 = vadd.f32 %v3100, %v3195
    %v3197 = vpop.f32.mrb[0].mxu0
    %3198 = vdwg.mxu0
    %v3199 = vsub.f32 0.0, %v3137
    %v3200 = vsub.f32 0.0, %v3140
    %v3201 = vsub.f32 0.0, %v3145
    %v3202 = vsub.f32 0.0, %v3148
    %v3203 = vsub.f32 0.0, %v3153
    %v3204 = vsub.f32 0.0, %v3156
    %v3205 = vsub.f32 0.0, %v3161
    %v3206 = vsub.f32 0.0, %v3164
    %v3207 = vsub.f32 0.0, %v3169
    %v3208 = vsub.f32 0.0, %v3172
    %v3209 = vsub.f32 0.0, %v3177
    %v3210 = vsub.f32 0.0, %v3180
    %v3211 = vsub.f32 0.0, %v3185
    %v3212 = vsub.f32 0.0, %v3188
    %v3213 = vsub.f32 0.0, %v3193
    %v3214 = vsub.f32 0.0, %v3196
    %v3215 = vmul.f32 %v3199, 1.442695
    %v3216 = vpow.pop %v3215
    %v3217 = vmul.f32 %v3200, 1.442695
    %v3218 = vpow.pop %v3217
    %v3219 = vmul.f32 %v3201, 1.442695
    %v3220 = vpow.pop %v3219
    %v3221 = vmul.f32 %v3202, 1.442695
    %v3222 = vpow.pop %v3221
    %v3223 = vmul.f32 %v3203, 1.442695
    %v3224 = vpow.pop %v3223
    %v3225 = vmul.f32 %v3204, 1.442695
    %v3226 = vpow.pop %v3225
    %v3227 = vmul.f32 %v3205, 1.442695
    %v3228 = vpow.pop %v3227
    %v3229 = vmul.f32 %v3206, 1.442695
    %v3230 = vpow.pop %v3229
    %v3231 = vmul.f32 %v3207, 1.442695
    %v3232 = vpow.pop %v3231
    %v3233 = vmul.f32 %v3208, 1.442695
    %v3234 = vpow.pop %v3233
    %v3235 = vmul.f32 %v3209, 1.442695
    %v3236 = vpow.pop %v3235
    %v3237 = vmul.f32 %v3210, 1.442695
    %v3238 = vpow.pop %v3237
    %v3239 = vmul.f32 %v3211, 1.442695
    %v3240 = vpow.pop %v3239
    %v3241 = vmul.f32 %v3212, 1.442695
    %v3242 = vpow.pop %v3241
    %v3243 = vmul.f32 %v3213, 1.442695
    %v3244 = vpow.pop %v3243
    %v3245 = vmul.f32 %v3214, 1.442695
    %v3246 = vpow.pop %v3245
    %v3247 = vadd.f32 %v3216, 1.0
    %v3248 = vadd.f32 %v3218, 1.0
    %v3249 = vadd.f32 %v3220, 1.0
    %v3250 = vadd.f32 %v3222, 1.0
    %v3251 = vadd.f32 %v3224, 1.0
    %v3252 = vadd.f32 %v3226, 1.0
    %v3253 = vadd.f32 %v3228, 1.0
    %v3254 = vadd.f32 %v3230, 1.0
    %v3255 = vadd.f32 %v3232, 1.0
    %v3256 = vadd.f32 %v3234, 1.0
    %v3257 = vadd.f32 %v3236, 1.0
    %v3258 = vadd.f32 %v3238, 1.0
    %v3259 = vadd.f32 %v3240, 1.0
    %v3260 = vadd.f32 %v3242, 1.0
    %v3261 = vadd.f32 %v3244, 1.0
    %v3262 = vadd.f32 %v3246, 1.0
    %v3263 = vrcp.pop %v3247
    %v3264 = vmul.f32 1.0, %v3263
    %v3265 = vrcp.pop %v3248
    %v3266 = vmul.f32 1.0, %v3265
    %v3267 = vrcp.pop %v3249
    %v3268 = vmul.f32 1.0, %v3267
    %v3269 = vrcp.pop %v3250
    %v3270 = vmul.f32 1.0, %v3269
    %v3271 = vrcp.pop %v3251
    %v3272 = vmul.f32 1.0, %v3271
    %v3273 = vrcp.pop %v3252
    %v3274 = vmul.f32 1.0, %v3273
    %v3275 = vrcp.pop %v3253
    %v3276 = vmul.f32 1.0, %v3275
    %v3277 = vrcp.pop %v3254
    %v3278 = vmul.f32 1.0, %v3277
    %v3279 = vrcp.pop %v3255
    %v3280 = vmul.f32 1.0, %v3279
    %v3281 = vrcp.pop %v3256
    %v3282 = vmul.f32 1.0, %v3281
    %v3283 = vrcp.pop %v3257
    %v3284 = vmul.f32 1.0, %v3283
    %v3285 = vrcp.pop %v3258
    %v3286 = vmul.f32 1.0, %v3285
    %v3287 = vrcp.pop %v3259
    %v3288 = vmul.f32 1.0, %v3287
    %v3289 = vrcp.pop %v3260
    %v3290 = vmul.f32 1.0, %v3289
    %v3291 = vrcp.pop %v3261
    %v3292 = vmul.f32 1.0, %v3291
    %v3293 = vrcp.pop %v3262
    %v3294 = vmul.f32 1.0, %v3293
    %v3295 = vmul.f32 %v3264, %v1799
    %v3296 = vmul.f32 %v3266, %v1800
    %v3297 = vmul.f32 %v3268, %v1801
    %v3298 = vmul.f32 %v3270, %v1802
    %v3299 = vmul.f32 %v3272, %v1803
    %v3300 = vmul.f32 %v3274, %v1804
    %v3301 = vmul.f32 %v3276, %v1805
    %v3302 = vmul.f32 %v3278, %v1806
    %v3303 = vmul.f32 %v3280, %v1807
    %v3304 = vmul.f32 %v3282, %v1808
    %v3305 = vmul.f32 %v3284, %v1809
    %v3306 = vmul.f32 %v3286, %v1810
    %v3307 = vmul.f32 %v3288, %v1811
    %v3308 = vmul.f32 %v3290, %v1812
    %v3309 = vmul.f32 %v3292, %v1813
    %v3310 = vmul.f32 %v3294, %v1814
    %v3311 = vsub.f32 1.0, %v3264
    %v3312 = vsub.f32 1.0, %v3266
    %v3313 = vsub.f32 1.0, %v3268
    %v3314 = vsub.f32 1.0, %v3270
    %v3315 = vsub.f32 1.0, %v3272
    %v3316 = vsub.f32 1.0, %v3274
    %v3317 = vsub.f32 1.0, %v3276
    %v3318 = vsub.f32 1.0, %v3278
    %v3319 = vsub.f32 1.0, %v3280
    %v3320 = vsub.f32 1.0, %v3282
    %v3321 = vsub.f32 1.0, %v3284
    %v3322 = vsub.f32 1.0, %v3286
    %v3323 = vsub.f32 1.0, %v3288
    %v3324 = vsub.f32 1.0, %v3290
    %v3325 = vsub.f32 1.0, %v3292
    %v3326 = vsub.f32 1.0, %v3294
    %v3327 = vmul.f32 %v3311, %v3015
    %v3328 = vmul.f32 %v3312, %v3016
    %v3329 = vmul.f32 %v3313, %v3017
    %v3330 = vmul.f32 %v3314, %v3018
    %v3331 = vmul.f32 %v3315, %v3019
    %v3332 = vmul.f32 %v3316, %v3020
    %v3333 = vmul.f32 %v3317, %v3021
    %v3334 = vmul.f32 %v3318, %v3022
    %v3335 = vmul.f32 %v3319, %v3023
    %v3336 = vmul.f32 %v3320, %v3024
    %v3337 = vmul.f32 %v3321, %v3025
    %v3338 = vmul.f32 %v3322, %v3026
    %v3339 = vmul.f32 %v3323, %v3027
    %v3340 = vmul.f32 %v3324, %v3028
    %v3341 = vmul.f32 %v3325, %v3029
    %v3342 = vmul.f32 %v3326, %v3030
    %v3343 = vadd.f32 %v3295, %v3327
    %v3344 = vadd.f32 %v3296, %v3328
    %v3345 = vadd.f32 %v3297, %v3329
    %v3346 = vadd.f32 %v3298, %v3330
    %v3347 = vadd.f32 %v3299, %v3331
    %v3348 = vadd.f32 %v3300, %v3332
    %v3349 = vadd.f32 %v3301, %v3333
    %v3350 = vadd.f32 %v3302, %v3334
    %v3351 = vadd.f32 %v3303, %v3335
    %v3352 = vadd.f32 %v3304, %v3336
    %v3353 = vadd.f32 %v3305, %v3337
    %v3354 = vadd.f32 %v3306, %v3338
    %v3355 = vadd.f32 %v3307, %v3339
    %v3356 = vadd.f32 %v3308, %v3340
    %v3357 = vadd.f32 %v3309, %v3341
    %v3358 = vadd.f32 %v3310, %v3342
    %v3359 = vld [vmem:[#allocation22] sm:$0x1]
    %v3360 = vld [vmem:[#allocation23] sm:$0x1]
    %3361 = vadd.xlane.f32.xlu0 %v3343
    %v3362 = vpop.xlane.xlu0 %3361
    %3363 = vadd.xlane.f32.xlu0 %v3344
    %v3364 = vpop.xlane.xlu0 %3363
    %3365 = vadd.xlane.f32.xlu0 %v3345
    %v3366 = vpop.xlane.xlu0 %3365
    %3367 = vadd.xlane.f32.xlu0 %v3346
    %v3368 = vpop.xlane.xlu0 %3367
    %3369 = vadd.xlane.f32.xlu0 %v3347
    %v3370 = vpop.xlane.xlu0 %3369
    %3371 = vadd.xlane.f32.xlu0 %v3348
    %v3372 = vpop.xlane.xlu0 %3371
    %3373 = vadd.xlane.f32.xlu0 %v3349
    %v3374 = vpop.xlane.xlu0 %3373
    %3375 = vadd.xlane.f32.xlu0 %v3350
    %v3376 = vpop.xlane.xlu0 %3375
    %3377 = vadd.xlane.f32.xlu0 %v3351
    %v3378 = vpop.xlane.xlu0 %3377
    %3379 = vadd.xlane.f32.xlu0 %v3352
    %v3380 = vpop.xlane.xlu0 %3379
    %3381 = vadd.xlane.f32.xlu0 %v3353
    %v3382 = vpop.xlane.xlu0 %3381
    %3383 = vadd.xlane.f32.xlu0 %v3354
    %v3384 = vpop.xlane.xlu0 %3383
    %3385 = vadd.xlane.f32.xlu0 %v3355
    %v3386 = vpop.xlane.xlu0 %3385
    %3387 = vadd.xlane.f32.xlu0 %v3356
    %v3388 = vpop.xlane.xlu0 %3387
    %3389 = vadd.xlane.f32.xlu0 %v3357
    %v3390 = vpop.xlane.xlu0 %3389
    %3391 = vadd.xlane.f32.xlu0 %v3358
    %v3392 = vpop.xlane.xlu0 %3391
    %v3393 = vmul.f32 %v3362, 0.015625
    %v3394 = vmul.f32 %v3364, 0.015625
    %v3395 = vmul.f32 %v3366, 0.015625
    %v3396 = vmul.f32 %v3368, 0.015625
    %v3397 = vmul.f32 %v3370, 0.015625
    %v3398 = vmul.f32 %v3372, 0.015625
    %v3399 = vmul.f32 %v3374, 0.015625
    %v3400 = vmul.f32 %v3376, 0.015625
    %v3401 = vmul.f32 %v3378, 0.015625
    %v3402 = vmul.f32 %v3380, 0.015625
    %v3403 = vmul.f32 %v3382, 0.015625
    %v3404 = vmul.f32 %v3384, 0.015625
    %v3405 = vmul.f32 %v3386, 0.015625
    %v3406 = vmul.f32 %v3388, 0.015625
    %v3407 = vmul.f32 %v3390, 0.015625
    %v3408 = vmul.f32 %v3392, 0.015625
    %v3409 = vsub.f32 %v3343, %v3393
    %v3410 = vsub.f32 %v3344, %v3394
    %v3411 = vsub.f32 %v3345, %v3395
    %v3412 = vsub.f32 %v3346, %v3396
    %v3413 = vsub.f32 %v3347, %v3397
    %v3414 = vsub.f32 %v3348, %v3398
    %v3415 = vsub.f32 %v3349, %v3399
    %v3416 = vsub.f32 %v3350, %v3400
    %v3417 = vsub.f32 %v3351, %v3401
    %v3418 = vsub.f32 %v3352, %v3402
    %v3419 = vsub.f32 %v3353, %v3403
    %v3420 = vsub.f32 %v3354, %v3404
    %v3421 = vsub.f32 %v3355, %v3405
    %v3422 = vsub.f32 %v3356, %v3406
    %v3423 = vsub.f32 %v3357, %v3407
    %v3424 = vsub.f32 %v3358, %v3408
    %v3425 = vmul.f32 %v3409, %v237
    %v3426 = vmul.f32 %v3410, %v237
    %v3427 = vmul.f32 %v3411, %v237
    %v3428 = vmul.f32 %v3412, %v237
    %v3429 = vmul.f32 %v3413, %v237
    %v3430 = vmul.f32 %v3414, %v237
    %v3431 = vmul.f32 %v3415, %v237
    %v3432 = vmul.f32 %v3416, %v237
    %v3433 = vmul.f32 %v3417, %v237
    %v3434 = vmul.f32 %v3418, %v237
    %v3435 = vmul.f32 %v3419, %v237
    %v3436 = vmul.f32 %v3420, %v237
    %v3437 = vmul.f32 %v3421, %v237
    %v3438 = vmul.f32 %v3422, %v237
    %v3439 = vmul.f32 %v3423, %v237
    %v3440 = vmul.f32 %v3424, %v237
    %v3441 = vmul.f32 %v3425, %v3425
    %v3442 = vmul.f32 %v3426, %v3426
    %v3443 = vmul.f32 %v3427, %v3427
    %v3444 = vmul.f32 %v3428, %v3428
    %v3445 = vmul.f32 %v3429, %v3429
    %v3446 = vmul.f32 %v3430, %v3430
    %v3447 = vmul.f32 %v3431, %v3431
    %v3448 = vmul.f32 %v3432, %v3432
    %v3449 = vmul.f32 %v3433, %v3433
    %v3450 = vmul.f32 %v3434, %v3434
    %v3451 = vmul.f32 %v3435, %v3435
    %v3452 = vmul.f32 %v3436, %v3436
    %v3453 = vmul.f32 %v3437, %v3437
    %v3454 = vmul.f32 %v3438, %v3438
    %v3455 = vmul.f32 %v3439, %v3439
    %v3456 = vmul.f32 %v3440, %v3440
    %3457 = vadd.xlane.f32.xlu0 %v3441
    %v3458 = vpop.xlane.xlu0 %3457
    %3459 = vadd.xlane.f32.xlu0 %v3442
    %v3460 = vpop.xlane.xlu0 %3459
    %3461 = vadd.xlane.f32.xlu0 %v3443
    %v3462 = vpop.xlane.xlu0 %3461
    %3463 = vadd.xlane.f32.xlu0 %v3444
    %v3464 = vpop.xlane.xlu0 %3463
    %3465 = vadd.xlane.f32.xlu0 %v3445
    %v3466 = vpop.xlane.xlu0 %3465
    %3467 = vadd.xlane.f32.xlu0 %v3446
    %v3468 = vpop.xlane.xlu0 %3467
    %3469 = vadd.xlane.f32.xlu0 %v3447
    %v3470 = vpop.xlane.xlu0 %3469
    %3471 = vadd.xlane.f32.xlu0 %v3448
    %v3472 = vpop.xlane.xlu0 %3471
    %3473 = vadd.xlane.f32.xlu0 %v3449
    %v3474 = vpop.xlane.xlu0 %3473
    %3475 = vadd.xlane.f32.xlu0 %v3450
    %v3476 = vpop.xlane.xlu0 %3475
    %3477 = vadd.xlane.f32.xlu0 %v3451
    %v3478 = vpop.xlane.xlu0 %3477
    %3479 = vadd.xlane.f32.xlu0 %v3452
    %v3480 = vpop.xlane.xlu0 %3479
    %3481 = vadd.xlane.f32.xlu0 %v3453
    %v3482 = vpop.xlane.xlu0 %3481
    %3483 = vadd.xlane.f32.xlu0 %v3454
    %v3484 = vpop.xlane.xlu0 %3483
    %3485 = vadd.xlane.f32.xlu0 %v3455
    %v3486 = vpop.xlane.xlu0 %3485
    %3487 = vadd.xlane.f32.xlu0 %v3456
    %v3488 = vpop.xlane.xlu0 %3487
    %v3489 = vmul.f32 %v3458, 0.015625
    %v3490 = vmul.f32 %v3460, 0.015625
    %v3491 = vmul.f32 %v3462, 0.015625
    %v3492 = vmul.f32 %v3464, 0.015625
    %v3493 = vmul.f32 %v3466, 0.015625
    %v3494 = vmul.f32 %v3468, 0.015625
    %v3495 = vmul.f32 %v3470, 0.015625
    %v3496 = vmul.f32 %v3472, 0.015625
    %v3497 = vmul.f32 %v3474, 0.015625
    %v3498 = vmul.f32 %v3476, 0.015625
    %v3499 = vmul.f32 %v3478, 0.015625
    %v3500 = vmul.f32 %v3480, 0.015625
    %v3501 = vmul.f32 %v3482, 0.015625
    %v3502 = vmul.f32 %v3484, 0.015625
    %v3503 = vmul.f32 %v3486, 0.015625
    %v3504 = vmul.f32 %v3488, 0.015625
    %v3505 = vadd.f32 %v3489, 1e-05
    %v3506 = vadd.f32 %v3490, 1e-05
    %v3507 = vadd.f32 %v3491, 1e-05
    %v3508 = vadd.f32 %v3492, 1e-05
    %v3509 = vadd.f32 %v3493, 1e-05
    %v3510 = vadd.f32 %v3494, 1e-05
    %v3511 = vadd.f32 %v3495, 1e-05
    %v3512 = vadd.f32 %v3496, 1e-05
    %v3513 = vadd.f32 %v3497, 1e-05
    %v3514 = vadd.f32 %v3498, 1e-05
    %v3515 = vadd.f32 %v3499, 1e-05
    %v3516 = vadd.f32 %v3500, 1e-05
    %v3517 = vadd.f32 %v3501, 1e-05
    %v3518 = vadd.f32 %v3502, 1e-05
    %v3519 = vadd.f32 %v3503, 1e-05
    %v3520 = vadd.f32 %v3504, 1e-05
    %v3521 = vrsqrt.pop %v3505
    %v3522 = vrsqrt.pop %v3506
    %v3523 = vrsqrt.pop %v3507
    %v3524 = vrsqrt.pop %v3508
    %v3525 = vrsqrt.pop %v3509
    %v3526 = vrsqrt.pop %v3510
    %v3527 = vrsqrt.pop %v3511
    %v3528 = vrsqrt.pop %v3512
    %v3529 = vrsqrt.pop %v3513
    %v3530 = vrsqrt.pop %v3514
    %v3531 = vrsqrt.pop %v3515
    %v3532 = vrsqrt.pop %v3516
    %v3533 = vrsqrt.pop %v3517
    %v3534 = vrsqrt.pop %v3518
    %v3535 = vrsqrt.pop %v3519
    %v3536 = vrsqrt.pop %v3520
    %v3537 = vmul.f32 %v3425, %v3521
    %v3538 = vmul.f32 %v3426, %v3522
    %v3539 = vmul.f32 %v3427, %v3523
    %v3540 = vmul.f32 %v3428, %v3524
    %v3541 = vmul.f32 %v3429, %v3525
    %v3542 = vmul.f32 %v3430, %v3526
    %v3543 = vmul.f32 %v3431, %v3527
    %v3544 = vmul.f32 %v3432, %v3528
    %v3545 = vmul.f32 %v3433, %v3529
    %v3546 = vmul.f32 %v3434, %v3530
    %v3547 = vmul.f32 %v3435, %v3531
    %v3548 = vmul.f32 %v3436, %v3532
    %v3549 = vmul.f32 %v3437, %v3533
    %v3550 = vmul.f32 %v3438, %v3534
    %v3551 = vmul.f32 %v3439, %v3535
    %v3552 = vmul.f32 %v3440, %v3536
    %v3554 = vlaneseq
    %v3555 = vshrl.u32 %v3554, 7
    %v3556 = vsub.s32 0, %v3555
    %v3557 = vrot.slane %v3359, %v3556
    %v3559 = vmul.f32 %v3537, %v3557
    %v3560 = vmul.f32 %v3538, %v3557
    %v3561 = vmul.f32 %v3539, %v3557
    %v3562 = vmul.f32 %v3540, %v3557
    %v3563 = vmul.f32 %v3541, %v3557
    %v3564 = vmul.f32 %v3542, %v3557
    %v3565 = vmul.f32 %v3543, %v3557
    %v3566 = vmul.f32 %v3544, %v3557
    %v3567 = vmul.f32 %v3545, %v3557
    %v3568 = vmul.f32 %v3546, %v3557
    %v3569 = vmul.f32 %v3547, %v3557
    %v3570 = vmul.f32 %v3548, %v3557
    %v3571 = vmul.f32 %v3549, %v3557
    %v3572 = vmul.f32 %v3550, %v3557
    %v3573 = vmul.f32 %v3551, %v3557
    %v3574 = vmul.f32 %v3552, %v3557
    %v3576 = vlaneseq
    %v3577 = vshrl.u32 %v3576, 7
    %v3578 = vsub.s32 0, %v3577
    %v3579 = vrot.slane %v3360, %v3578
    %v3581 = vadd.f32 %v3559, %v3579
    %v3582 = vadd.f32 %v3560, %v3579
    %v3583 = vadd.f32 %v3561, %v3579
    %v3584 = vadd.f32 %v3562, %v3579
    %v3585 = vadd.f32 %v3563, %v3579
    %v3586 = vadd.f32 %v3564, %v3579
    %v3587 = vadd.f32 %v3565, %v3579
    %v3588 = vadd.f32 %v3566, %v3579
    %v3589 = vadd.f32 %v3567, %v3579
    %v3590 = vadd.f32 %v3568, %v3579
    %v3591 = vadd.f32 %v3569, %v3579
    %v3592 = vadd.f32 %v3570, %v3579
    %v3593 = vadd.f32 %v3571, %v3579
    %v3594 = vadd.f32 %v3572, %v3579
    %v3595 = vadd.f32 %v3573, %v3579
    %v3596 = vadd.f32 %v3574, %v3579
    %3597 = vst [vmem:[#allocation25] sm:$0xff] %v3581
    %3598 = vst [vmem:[#allocation25 + $0x8] sm:$0xff] %v3582
    %3599 = vst [vmem:[#allocation25 + $0x10] sm:$0xff] %v3583
    %3600 = vst [vmem:[#allocation25 + $0x18] sm:$0xff] %v3584
    %3601 = vst [vmem:[#allocation25 + $0x20] sm:$0xff] %v3585
    %3602 = vst [vmem:[#allocation25 + $0x28] sm:$0xff] %v3586
    %3603 = vst [vmem:[#allocation25 + $0x30] sm:$0xff] %v3587
    %3604 = vst [vmem:[#allocation25 + $0x38] sm:$0xff] %v3588
    %3605 = vst [vmem:[#allocation25 + $0x40] sm:$0xff] %v3589
    %3606 = vst [vmem:[#allocation25 + $0x48] sm:$0xff] %v3590
    %3607 = vst [vmem:[#allocation25 + $0x50] sm:$0xff] %v3591
    %3608 = vst [vmem:[#allocation25 + $0x58] sm:$0xff] %v3592
    %3609 = vst [vmem:[#allocation25 + $0x60] sm:$0xff] %v3593
    %3610 = vst [vmem:[#allocation25 + $0x68] sm:$0xff] %v3594
    %3611 = vst [vmem:[#allocation25 + $0x70] sm:$0xff] %v3595
    %3612 = vst [vmem:[#allocation25 + $0x78] sm:$0xff] %v3596
    // Predicated region
    $region114: #{graph_encoders_forward.1} parent=1 // pred_check
      _
    $region115: #{graph_encoders_forward.1} parent=1 // pred_check_branch
      %3614 = sbr.rel (0) target = $region117
    $region116: #{graph_encoders_forward.1} parent=1 // pred_region
      %s3616 = ssub.s32 2048, 2048
      %3617 = vsyncadd [#allocation4], %s3616
      %s3618 = sshll.u32 [#allocation25], 4
      %s3619 = int_to_ptr.vmem [resolvable:$true] %s3618
      %3624 = dma.vmem_to_hbm [thread:$0]  %s3619, 2048, %s14, [#allocation4], 128, 128, 8
    $region117: #{graph_encoders_forward.1} parent=1 // pred_fallthru
      _
    // Predicated region
    $region118: #{graph_encoders_forward.1} parent=1 // pred_check
      _
    $region119: #{graph_encoders_forward.1} parent=1 // pred_check_branch
      %3626 = sbr.rel (0) target = $region121
    $region120: #{graph_encoders_forward.1} parent=1 // pred_region
      %3627 = dma.done [#allocation4], 2048
    $region121: #{graph_encoders_forward.1} parent=1 // pred_fallthru
      _
    %3628 = vsyncpa [#allocation3], 1
    %3629 = vsyncpa [#allocation6], 1
    %3630 = vsyncpa [#allocation9], 1
    %3631 = vsyncpa [#allocation12], 1
    %3632 = vsyncpa [#allocation15], 1
    %3633 = vsyncpa [#allocation18], 1
    %3634 = vsyncpa [#allocation21], 1
    %3635 = vsyncpa [#allocation24], 1
    %3636 = vsyncpa [#allocation4], 1

</llo_original>
